<compile_context>
chip_gen: v6e
topology: v6e:2x2x1
jax: 0.10.0
libtpu: 0.0.40
codegen_flags: <defaults>
</compile_context>

<pallas_src>
import numpy as np
import jax
import jax.numpy as jnp
from jax import lax
from jax.experimental import pallas as pl
from jax.experimental.pallas import tpu as pltpu

# ---------------------------------------------------------------------------
# Model constants / slab layout
# ---------------------------------------------------------------------------
H = 128              # LSTM hidden size
GATES = 4 * H        # 512
BP = 8               # batch rows padded to one sublane group
NB = 3               # conv branches (time / speed / HR)
C1 = 32              # conv1 out channels per branch
C2 = 64              # conv2 out channels per branch
D = NB * C2          # 192 = LSTM input size
XW = 16              # input-slab width (9 im2col cols + pad; also holds general)

# Slab A (width 512): LSTM weights
A_WIH = 0            # rows 0..191   : W_ih^T
A_WHH = 192          # rows 192..319 : W_hh^T
A_BL = 320           # row  320      : b_ih + b_hh
A_ROWS = 328

# Slab B (width 192): conv weights (block-diagonal over the 3 branches)
B_W2 = (0, 192, 384) # three tap blocks of 192 rows each (rows >= 96 inside a block are zero)
B_B2 = 576           # conv2 bias row
B_W1 = 584           # conv1 im2col weights, 16 rows (rows 9..15 zero)
B_B1 = 600           # conv1 bias row
B_ROWS = 608

# Slab C (width 64): MLP head
C_FC1H = 0           # rows 0..127   : fc1 weights for the LSTM hidden
C_FC1G = 128         # rows 128..143 : fc1 weights for `general` (rows 132..143 zero)
C_BFC1 = 144
C_FC2 = 152          # rows 152..215 (cols 0..31 real)
C_BFC2 = 216
C_FC3 = 224          # rows 224..287 (rows 224..255, col 0 real)
C_BFC3 = 288
C_ROWS = 296


def _sigmoid(x):
    # sigmoid(x) == 0.5 * tanh(0.5 * x) + 0.5  -> a single EUP transcendental.
    return 0.5 * jnp.tanh(0.5 * x) + 0.5


# ---------------------------------------------------------------------------
# Fused kernel: conv1 -> conv2 -> LSTM-input projection -> LSTM -> fc1/fc2/fc3
# ---------------------------------------------------------------------------
def rnn2_fused_kernel(xin_ref,    # (L*BP + BP, 16)  im2col signals + padded general
                      pa_ref,     # (328, 512)       LSTM slab
                      pb_ref,     # (608, 192)       conv slab
                      pc_ref,     # (296, 64)        FC-head slab
                      o_ref,      # (BP, 64)         output (col 0 real)
                      gates_ref): # VMEM scratch (L*BP, 512)
    f32 = jnp.float32
    LBP = xin_ref.shape[0] - BP          # L * BP conv rows (row = t*BP + b)
    L = LBP // BP

    # ---- conv1 + ReLU: one block-diagonal im2col matmul for all 3 branches --
    x = xin_ref[0:LBP, :]                                            # (LBP, 16)
    y1 = (jnp.dot(x, pb_ref[B_W1:B_W1 + XW, :], preferred_element_type=f32)
          + pb_ref[B_B1:B_B1 + 1, :])
    y1 = jnp.maximum(y1, 0.0)                                        # (LBP, 192); cols >= 96 stay 0

    # ---- conv2 + ReLU (SAME, k=3): sublane-aligned shifted taps, 3 MXU dots -
    zrow = jnp.zeros((BP, y1.shape[1]), f32)
    y1_prev = jnp.concatenate([zrow, y1[0:LBP - BP, :]], axis=0)     # y1[t-1] (zero halo at t=0)
    y1_next = jnp.concatenate([y1[BP:LBP, :], zrow], axis=0)         # y1[t+1] (zero halo at t=L-1)
    y2 = pb_ref[B_B2:B_B2 + 1, :]
    for k, ytap in enumerate((y1_prev, y1, y1_next)):
        y2 = y2 + jnp.dot(ytap, pb_ref[B_W2[k]:B_W2[k] + D, :],
                          preferred_element_type=f32)
    y2 = jnp.maximum(y2, 0.0)                                        # (LBP, 192)

    # ---- hoisted LSTM input projection for ALL timesteps, kept in VMEM ------
    gates_ref[...] = (jnp.dot(y2, pa_ref[A_WIH:A_WIH + D, :],
                              preferred_element_type=f32)
                      + pa_ref[A_BL:A_BL + 1, :])                    # (LBP, 512)

    # ---- LSTM recurrence (gate order i, f, g, o); only the final h is kept --
    # W_hh and the gate rows are read from VMEM inside the body so nothing big
    # stays pinned in vregs across the unrolled steps.
    def step(t, carry):
        h, c = carry
        r0 = pl.multiple_of(t * BP, BP)
        g = gates_ref[pl.ds(r0, BP), :] + jnp.dot(
            h, pa_ref[A_WHH:A_WHH + H, :], preferred_element_type=f32)
        i_g = _sigmoid(g[:, 0:H])
        f_g = _sigmoid(g[:, H:2 * H])
        g_g = jnp.tanh(g[:, 2 * H:3 * H])
        o_g = _sigmoid(g[:, 3 * H:4 * H])
        c = f_g * c + i_g * g_g
        h = o_g * jnp.tanh(c)
        return h, c

    h0 = jnp.zeros((BP, H), f32)
    c0 = jnp.zeros((BP, H), f32)
    h, _ = lax.fori_loop(0, L, step, (h0, c0), unroll=True)

    # ---- MLP head on [h, general] -------------------------------------------
    gen = xin_ref[LBP:LBP + BP, :]                                   # (BP, 16)
    z = (jnp.dot(h, pc_ref[C_FC1H:C_FC1H + H, :], preferred_element_type=f32)
         + jnp.dot(gen, pc_ref[C_FC1G:C_FC1G + XW, :], preferred_element_type=f32)
         + pc_ref[C_BFC1:C_BFC1 + 1, :])
    z = jnp.maximum(z, 0.0)
    z = jnp.maximum(jnp.dot(z, pc_ref[C_FC2:C_FC2 + 64, :],
                            preferred_element_type=f32)
                    + pc_ref[C_BFC2:C_BFC2 + 1, :], 0.0)             # cols 32..63 stay 0
    o_ref[...] = (jnp.dot(z, pc_ref[C_FC3:C_FC3 + 64, :],
                          preferred_element_type=f32)
                  + pc_ref[C_BFC3:C_BFC3 + 1, :])                    # (BP, 64), col 0 real


def _rnn2_pallas(xin, pa, pb, pc):
    lbp = xin.shape[0] - BP
    # No grid / BlockSpecs: every operand is a whole-array VMEM block (total
    # footprint ~1.4 MiB, far under the scoped VMEM limit on every generation),
    # so the model runs as one launch with 4 input DMAs.
    return pl.pallas_call(
        rnn2_fused_kernel,
        out_shape=jax.ShapeDtypeStruct((BP, 64), jnp.float32),
        scratch_shapes=[pltpu.VMEM((lbp, GATES), jnp.float32)],
    )(xin, pa, pb, pc)


# ---------------------------------------------------------------------------
# Forward wrapper.  One small fused layout op builds the lane-dense im2col
# slab (row = t*BP + b, col = 3*branch + tap, zero time/batch padding) and
# appends the zero-padded `general` rows; then a single pallas_call.
# ---------------------------------------------------------------------------
def rnn2_forward(packed, time_x, speed_x, hr_x, general):
    # time_x / speed_x / hr_x: (B, 1, L) torch NCL layout; general: (B, 4)
    B = time_x.shape[0]
    L = time_x.shape[-1]
    assert B <= BP, "toy kernel packs the batch into one 8-sublane group"
    sig = jnp.stack([time_x[:, 0, :], speed_x[:, 0, :], hr_x[:, 0, :]], axis=0)  # (3, B, L)
    sig = jnp.transpose(sig, (0, 2, 1))                                          # (3, L, B)
    sigp = jnp.pad(sig, ((0, 0), (1, 1), (0, BP - B)))                           # (3, L+2, BP)
    taps = [sigp[br, k:k + L, :] for br in range(NB) for k in range(3)]          # 9 x (L, BP)
    x9 = jnp.stack(taps, axis=-1).reshape(L * BP, NB * 3)                        # (L*BP, 9)
    x9 = jnp.pad(x9, ((0, 0), (0, XW - NB * 3)))                                 # (L*BP, 16)
    genp = jnp.pad(general, ((0, BP - B), (0, XW - general.shape[1])))           # (BP, 16)
    xin = jnp.concatenate([x9, genp], axis=0)                                    # (L*BP + BP, 16)
    out = _rnn2_pallas(xin, packed["A"], packed["B"], packed["C"])               # (BP, 64)
    return out[:B, 0]


# ---------------------------------------------------------------------------
# Logical parameters (PyTorch-style shapes) and slab packing.
# ---------------------------------------------------------------------------
def init_params(key):
    keys = jax.random.split(key, 16)
    ki = iter(keys)

    def u(shape, scale):
        return jax.random.uniform(next(ki), shape, jnp.float32, -scale, scale)

    p = {}
    s1 = 1.0 / np.sqrt(1 * 3)
    s2 = 1.0 / np.sqrt(C1 * 3)
    p["w1"] = u((NB * 3, 1, C1), s1)        # [3*br + tap, Cin=1, Cout]
    p["b1"] = u((NB, 1, C1), s1)
    p["w2"] = u((NB * 3, C1, C2), s2)       # [3*br + tap, Cin, Cout]
    p["b2"] = u((NB, 1, C2), s2)

    s = 1.0 / np.sqrt(H)
    p["wih_t"] = u((D, GATES), s)           # W_ih^T, gate order i, f, g, o
    p["whh_t"] = u((H, GATES), s)           # W_hh^T
    p["b_lstm"] = u((1, GATES), s)          # b_ih + b_hh combined

    s = 1.0 / np.sqrt(H + 4)
    p["wfc1h"] = u((H, 64), s)              # fc1 rows for the LSTM hidden
    p["wfc1g"] = u((4, 64), s)              # fc1 rows for `general`
    p["bfc1"] = u((1, 64), s)
    s = 1.0 / np.sqrt(64)
    p["wfc2"] = u((64, 32), s)
    p["bfc2"] = u((1, 32), s)
    s = 1.0 / np.sqrt(32)
    p["wfc3"] = u((32, 1), s)
    p["bfc3"] = u((1, 1), s)
    return p


def pack_params(p):
    """Pack the 17 logical tensors into 3 contiguous f32 slabs (3 DMAs)."""
    A = np.zeros((A_ROWS, GATES), np.float32)
    A[A_WIH:A_WIH + D] = np.asarray(p["wih_t"])
    A[A_WHH:A_WHH + H] = np.asarray(p["whh_t"])
    A[A_BL] = np.asarray(p["b_lstm"])[0]

    Bm = np.zeros((B_ROWS, D), np.float32)
    w1 = np.asarray(p["w1"]); b1 = np.asarray(p["b1"])
    w2 = np.asarray(p["w2"]); b2 = np.asarray(p["b2"])
    for br in range(NB):
        for k in range(3):
            Bm[B_W2[k] + C1 * br:B_W2[k] + C1 * (br + 1),
               C2 * br:C2 * (br + 1)] = w2[3 * br + k]
            Bm[B_W1 + 3 * br + k, C1 * br:C1 * (br + 1)] = w1[3 * br + k, 0]
        Bm[B_B2, C2 * br:C2 * (br + 1)] = b2[br, 0]
        Bm[B_B1, C1 * br:C1 * (br + 1)] = b1[br, 0]

    C = np.zeros((C_ROWS, 64), np.float32)
    C[C_FC1H:C_FC1H + H] = np.asarray(p["wfc1h"])
    C[C_FC1G:C_FC1G + 4] = np.asarray(p["wfc1g"])
    C[C_BFC1] = np.asarray(p["bfc1"])[0]
    C[C_FC2:C_FC2 + 64, 0:32] = np.asarray(p["wfc2"])
    C[C_BFC2, 0:32] = np.asarray(p["bfc2"])[0]
    C[C_FC3:C_FC3 + 32, 0:1] = np.asarray(p["wfc3"])
    C[C_BFC3, 0] = np.asarray(p["bfc3"])[0, 0]

    return {"A": jnp.asarray(A), "B": jnp.asarray(Bm), "C": jnp.asarray(C)}


# ---------------------------------------------------------------------------
# Pure-JAX reference (mirrors the PyTorch forward exactly; high-precision dots).
# ---------------------------------------------------------------------------
_HI = jax.lax.Precision.HIGHEST


def _conv1d_relu_ref(x_blc, w_kcd, b):
    L = x_blc.shape[1]
    xp = jnp.pad(x_blc, ((0, 0), (1, 1), (0, 0)))
    y = sum(jnp.einsum("blc,cd->bld", xp[:, k:k + L], w_kcd[k], precision=_HI)
            for k in range(3)) + b
    return jnp.maximum(y, 0.0)


def _lstm_ref(x_bld, wih_t, whh_t, b):
    Bb = x_bld.shape[0]
    h = jnp.zeros((Bb, H), jnp.float32)
    c = jnp.zeros((Bb, H), jnp.float32)
    for t in range(x_bld.shape[1]):
        gates = (jnp.dot(x_bld[:, t], wih_t, precision=_HI)
                 + jnp.dot(h, whh_t, precision=_HI) + b)
        i = jax.nn.sigmoid(gates[:, :H])
        f = jax.nn.sigmoid(gates[:, H:2 * H])
        g = jnp.tanh(gates[:, 2 * H:3 * H])
        o = jax.nn.sigmoid(gates[:, 3 * H:])
        c = f * c + i * g
        h = o * jnp.tanh(c)
    return h


def rnn2_forward_ref(p, time_x, speed_x, hr_x, general):
    outs = []
    for br, x in enumerate([time_x, speed_x, hr_x]):
        x = jnp.transpose(x, (0, 2, 1))                                 # (B, L, 1)
        x = _conv1d_relu_ref(x, p["w1"][3 * br:3 * br + 3], p["b1"][br])
        x = _conv1d_relu_ref(x, p["w2"][3 * br:3 * br + 3], p["b2"][br])
        outs.append(x)
    merged = jnp.concatenate(outs, axis=-1)                             # (B, L, 192)
    h = _lstm_ref(merged, p["wih_t"], p["whh_t"], p["b_lstm"])
    z = jnp.concatenate([h, general], axis=1)                           # (B, 132)
    wfc1 = jnp.concatenate([p["wfc1h"], p["wfc1g"]], axis=0)
    h1 = jnp.maximum(jnp.dot(z, wfc1, precision=_HI) + p["bfc1"], 0.0)
    h2 = jnp.maximum(jnp.dot(h1, p["wfc2"], precision=_HI) + p["bfc2"], 0.0)
    out = jnp.dot(h2, p["wfc3"], precision=_HI) + p["bfc3"]
    return out[:, 0]


if __name__ == "__main__":
    key = jax.random.PRNGKey(0)
    kp, k1, k2, k3, k4 = jax.random.split(key, 5)
    logical = init_params(kp)
    packed = pack_params(logical)

    Bsz, L = 2, 8
    time_x = jax.random.normal(k1, (Bsz, 1, L), jnp.float32)
    speed_x = jax.random.normal(k2, (Bsz, 1, L), jnp.float32)
    hr_x = jax.random.normal(k3, (Bsz, 1, L), jnp.float32)
    general = jax.random.normal(k4, (Bsz, 4), jnp.float32)

    out = jax.jit(rnn2_forward)(packed, time_x, speed_x, hr_x, general)
    out = jax.block_until_ready(out)

    ref = rnn2_forward_ref(logical, time_x, speed_x, hr_x, general)
    np.testing.assert_allclose(np.asarray(out), np.asarray(ref), rtol=1e-4, atol=1e-4)
    assert out.shape == (Bsz,)
    print("KERNEL_OK")
</pallas_src>

<mosaic_0001>
module attributes {stable_mosaic.version = 11 : i64} {
  func.func @rnn2_fused_kernel(%arg0: memref<72x16xf32, #tpu.memory_space<vmem>>, %arg1: memref<328x512xf32, #tpu.memory_space<vmem>>, %arg2: memref<608x192xf32, #tpu.memory_space<vmem>>, %arg3: memref<296x64xf32, #tpu.memory_space<vmem>>, %arg4: memref<8x64xf32, #tpu.memory_space<vmem>>, %arg5: memref<64x512xf32, #tpu.memory_space<vmem>>) attributes {dimension_semantics = [], scalar_prefetch = 0 : i64, scratch_operands = 1 : i64, tpu.core_type = #tpu.core_type<tc>} {
    %c0 = arith.constant 0 : index
    %c0_0 = arith.constant 0 : index
    %0 = vector.load %arg0[%c0, %c0_0] : memref<72x16xf32, #tpu.memory_space<vmem>>, vector<64x16xf32>
    %c584 = arith.constant 584 : index
    %c0_1 = arith.constant 0 : index
    %1 = vector.load %arg2[%c584, %c0_1] : memref<608x192xf32, #tpu.memory_space<vmem>>, vector<16x192xf32>
    %cst = arith.constant dense<0.000000e+00> : vector<64x192xf32>
    %2 = tpu.matmul %0, %1, %cst {dimension_numbers = #tpu.dot_dimension_numbers<[1], [0], [0], [1], [0, 0, 1, 1], [], []>} : vector<64x16xf32>, vector<16x192xf32>, vector<64x192xf32> -> vector<64x192xf32>
    %c600 = arith.constant 600 : index
    %c0_2 = arith.constant 0 : index
    %3 = vector.load %arg2[%c600, %c0_2] : memref<608x192xf32, #tpu.memory_space<vmem>>, vector<1x192xf32>
    %4 = vector.broadcast %3 : vector<1x192xf32> to vector<64x192xf32>
    %5 = arith.addf %2, %4 : vector<64x192xf32>
    %cst_3 = arith.constant 0.000000e+00 : f32
    %6 = vector.broadcast %cst_3 : f32 to vector<64x192xf32>
    %7 = arith.maximumf %5, %6 : vector<64x192xf32>
    %cst_4 = arith.constant 0.000000e+00 : f32
    %8 = vector.broadcast %cst_4 : f32 to vector<8x192xf32>
    %9 = vector.extract_strided_slice %7 {offsets = [0, 0], sizes = [56, 192], strides = [1, 1]} : vector<64x192xf32> to vector<56x192xf32>
    %10 = tpu.concatenate %8, %9 in 0 : vector<8x192xf32>, vector<56x192xf32> -> vector<64x192xf32>
    %11 = vector.extract_strided_slice %7 {offsets = [8, 0], sizes = [56, 192], strides = [1, 1]} : vector<64x192xf32> to vector<56x192xf32>
    %12 = tpu.concatenate %11, %8 in 0 : vector<56x192xf32>, vector<8x192xf32> -> vector<64x192xf32>
    %c576 = arith.constant 576 : index
    %c0_5 = arith.constant 0 : index
    %13 = vector.load %arg2[%c576, %c0_5] : memref<608x192xf32, #tpu.memory_space<vmem>>, vector<1x192xf32>
    %c0_6 = arith.constant 0 : index
    %c0_7 = arith.constant 0 : index
    %14 = vector.load %arg2[%c0_6, %c0_7] : memref<608x192xf32, #tpu.memory_space<vmem>>, vector<192x192xf32>
    %cst_8 = arith.constant dense<0.000000e+00> : vector<64x192xf32>
    %15 = tpu.matmul %10, %14, %cst_8 {dimension_numbers = #tpu.dot_dimension_numbers<[1], [0], [0], [1], [0, 0, 1, 1], [], []>} : vector<64x192xf32>, vector<192x192xf32>, vector<64x192xf32> -> vector<64x192xf32>
    %16 = vector.broadcast %13 : vector<1x192xf32> to vector<64x192xf32>
    %17 = arith.addf %16, %15 : vector<64x192xf32>
    %c192 = arith.constant 192 : index
    %c0_9 = arith.constant 0 : index
    %18 = vector.load %arg2[%c192, %c0_9] : memref<608x192xf32, #tpu.memory_space<vmem>>, vector<192x192xf32>
    %cst_10 = arith.constant dense<0.000000e+00> : vector<64x192xf32>
    %19 = tpu.matmul %7, %18, %cst_10 {dimension_numbers = #tpu.dot_dimension_numbers<[1], [0], [0], [1], [0, 0, 1, 1], [], []>} : vector<64x192xf32>, vector<192x192xf32>, vector<64x192xf32> -> vector<64x192xf32>
    %20 = arith.addf %17, %19 : vector<64x192xf32>
    %c384 = arith.constant 384 : index
    %c0_11 = arith.constant 0 : index
    %21 = vector.load %arg2[%c384, %c0_11] : memref<608x192xf32, #tpu.memory_space<vmem>>, vector<192x192xf32>
    %cst_12 = arith.constant dense<0.000000e+00> : vector<64x192xf32>
    %22 = tpu.matmul %12, %21, %cst_12 {dimension_numbers = #tpu.dot_dimension_numbers<[1], [0], [0], [1], [0, 0, 1, 1], [], []>} : vector<64x192xf32>, vector<192x192xf32>, vector<64x192xf32> -> vector<64x192xf32>
    %23 = arith.addf %20, %22 : vector<64x192xf32>
    %cst_13 = arith.constant 0.000000e+00 : f32
    %24 = vector.broadcast %cst_13 : f32 to vector<64x192xf32>
    %25 = arith.maximumf %23, %24 : vector<64x192xf32>
    %c0_14 = arith.constant 0 : index
    %c0_15 = arith.constant 0 : index
    %26 = vector.load %arg1[%c0_14, %c0_15] : memref<328x512xf32, #tpu.memory_space<vmem>>, vector<192x512xf32>
    %cst_16 = arith.constant dense<0.000000e+00> : vector<64x512xf32>
    %27 = tpu.matmul %25, %26, %cst_16 {dimension_numbers = #tpu.dot_dimension_numbers<[1], [0], [0], [1], [0, 0, 1, 1], [], []>} : vector<64x192xf32>, vector<192x512xf32>, vector<64x512xf32> -> vector<64x512xf32>
    %c320 = arith.constant 320 : index
    %c0_17 = arith.constant 0 : index
    %28 = vector.load %arg1[%c320, %c0_17] : memref<328x512xf32, #tpu.memory_space<vmem>>, vector<1x512xf32>
    %29 = vector.broadcast %28 : vector<1x512xf32> to vector<64x512xf32>
    %30 = arith.addf %27, %29 : vector<64x512xf32>
    %c0_18 = arith.constant 0 : index
    %c0_19 = arith.constant 0 : index
    %31 = vector.load %arg5[%c0_18, %c0_19] : memref<64x512xf32, #tpu.memory_space<vmem>>, vector<64x512xf32>
    tpu.vector_store %arg5[%c0_18, %c0_19], %30 {strides = array<i32>} : memref<64x512xf32, #tpu.memory_space<vmem>>, vector<64x512xf32>,
    %cst_20 = arith.constant 0.000000e+00 : f32
    %32 = vector.broadcast %cst_20 : f32 to vector<8x128xf32>
    %cst_21 = arith.constant 0.000000e+00 : f32
    %33 = vector.broadcast %cst_21 : f32 to vector<8x128xf32>
    %c0_i32 = arith.constant 0 : i32
    %c8_i32 = arith.constant 8 : i32
    %34 = arith.muli %c0_i32, %c8_i32 : i32
    %35 = tpu.assume_multiple %34, 8 : i32
    %36 = arith.index_cast %35 : i32 to index
    %c0_22 = arith.constant 0 : index
    %37 = vector.load %arg5[%36, %c0_22] : memref<64x512xf32, #tpu.memory_space<vmem>>, vector<8x512xf32>
    %c192_23 = arith.constant 192 : index
    %c0_24 = arith.constant 0 : index
    %38 = vector.load %arg1[%c192_23, %c0_24] : memref<328x512xf32, #tpu.memory_space<vmem>>, vector<128x512xf32>
    %cst_25 = arith.constant dense<0.000000e+00> : vector<8x512xf32>
    %39 = tpu.matmul %32, %38, %cst_25 {dimension_numbers = #tpu.dot_dimension_numbers<[1], [0], [0], [1], [0, 0, 1, 1], [], []>} : vector<8x128xf32>, vector<128x512xf32>, vector<8x512xf32> -> vector<8x512xf32>
    %40 = arith.addf %37, %39 : vector<8x512xf32>
    %41 = vector.extract_strided_slice %40 {offsets = [0, 0], sizes = [8, 128], strides = [1, 1]} : vector<8x512xf32> to vector<8x128xf32>
    %cst_26 = arith.constant 5.000000e-01 : f32
    %42 = vector.broadcast %cst_26 : f32 to vector<8x128xf32>
    %43 = arith.mulf %42, %41 : vector<8x128xf32>
    %44 = math.tanh %43 : vector<8x128xf32>
    %cst_27 = arith.constant 5.000000e-01 : f32
    %45 = vector.broadcast %cst_27 : f32 to vector<8x128xf32>
    %46 = arith.mulf %45, %44 : vector<8x128xf32>
    %cst_28 = arith.constant 5.000000e-01 : f32
    %47 = vector.broadcast %cst_28 : f32 to vector<8x128xf32>
    %48 = arith.addf %46, %47 : vector<8x128xf32>
    %49 = vector.extract_strided_slice %40 {offsets = [0, 128], sizes = [8, 128], strides = [1, 1]} : vector<8x512xf32> to vector<8x128xf32>
    %cst_29 = arith.constant 5.000000e-01 : f32
    %50 = vector.broadcast %cst_29 : f32 to vector<8x128xf32>
    %51 = arith.mulf %50, %49 : vector<8x128xf32>
    %52 = math.tanh %51 : vector<8x128xf32>
    %cst_30 = arith.constant 5.000000e-01 : f32
    %53 = vector.broadcast %cst_30 : f32 to vector<8x128xf32>
    %54 = arith.mulf %53, %52 : vector<8x128xf32>
    %cst_31 = arith.constant 5.000000e-01 : f32
    %55 = vector.broadcast %cst_31 : f32 to vector<8x128xf32>
    %56 = arith.addf %54, %55 : vector<8x128xf32>
    %57 = vector.extract_strided_slice %40 {offsets = [0, 256], sizes = [8, 128], strides = [1, 1]} : vector<8x512xf32> to vector<8x128xf32>
    %58 = math.tanh %57 : vector<8x128xf32>
    %59 = vector.extract_strided_slice %40 {offsets = [0, 384], sizes = [8, 128], strides = [1, 1]} : vector<8x512xf32> to vector<8x128xf32>
    %cst_32 = arith.constant 5.000000e-01 : f32
    %60 = vector.broadcast %cst_32 : f32 to vector<8x128xf32>
    %61 = arith.mulf %60, %59 : vector<8x128xf32>
    %62 = math.tanh %61 : vector<8x128xf32>
    %cst_33 = arith.constant 5.000000e-01 : f32
    %63 = vector.broadcast %cst_33 : f32 to vector<8x128xf32>
    %64 = arith.mulf %63, %62 : vector<8x128xf32>
    %cst_34 = arith.constant 5.000000e-01 : f32
    %65 = vector.broadcast %cst_34 : f32 to vector<8x128xf32>
    %66 = arith.addf %64, %65 : vector<8x128xf32>
    %67 = arith.mulf %56, %33 : vector<8x128xf32>
    %68 = arith.mulf %48, %58 : vector<8x128xf32>
    %69 = arith.addf %67, %68 : vector<8x128xf32>
    %70 = math.tanh %69 : vector<8x128xf32>
    %71 = arith.mulf %66, %70 : vector<8x128xf32>
    %c1_i32 = arith.constant 1 : i32
    %c8_i32_35 = arith.constant 8 : i32
    %72 = arith.muli %c1_i32, %c8_i32_35 : i32
    %73 = tpu.assume_multiple %72, 8 : i32
    %74 = arith.index_cast %73 : i32 to index
    %c0_36 = arith.constant 0 : index
    %75 = vector.load %arg5[%74, %c0_36] : memref<64x512xf32, #tpu.memory_space<vmem>>, vector<8x512xf32>
    %c192_37 = arith.constant 192 : index
    %c0_38 = arith.constant 0 : index
    %76 = vector.load %arg1[%c192_37, %c0_38] : memref<328x512xf32, #tpu.memory_space<vmem>>, vector<128x512xf32>
    %cst_39 = arith.constant dense<0.000000e+00> : vector<8x512xf32>
    %77 = tpu.matmul %71, %76, %cst_39 {dimension_numbers = #tpu.dot_dimension_numbers<[1], [0], [0], [1], [0, 0, 1, 1], [], []>} : vector<8x128xf32>, vector<128x512xf32>, vector<8x512xf32> -> vector<8x512xf32>
    %78 = arith.addf %75, %77 : vector<8x512xf32>
    %79 = vector.extract_strided_slice %78 {offsets = [0, 0], sizes = [8, 128], strides = [1, 1]} : vector<8x512xf32> to vector<8x128xf32>
    %cst_40 = arith.constant 5.000000e-01 : f32
    %80 = vector.broadcast %cst_40 : f32 to vector<8x128xf32>
    %81 = arith.mulf %80, %79 : vector<8x128xf32>
    %82 = math.tanh %81 : vector<8x128xf32>
    %cst_41 = arith.constant 5.000000e-01 : f32
    %83 = vector.broadcast %cst_41 : f32 to vector<8x128xf32>
    %84 = arith.mulf %83, %82 : vector<8x128xf32>
    %cst_42 = arith.constant 5.000000e-01 : f32
    %85 = vector.broadcast %cst_42 : f32 to vector<8x128xf32>
    %86 = arith.addf %84, %85 : vector<8x128xf32>
    %87 = vector.extract_strided_slice %78 {offsets = [0, 128], sizes = [8, 128], strides = [1, 1]} : vector<8x512xf32> to vector<8x128xf32>
    %cst_43 = arith.constant 5.000000e-01 : f32
    %88 = vector.broadcast %cst_43 : f32 to vector<8x128xf32>
    %89 = arith.mulf %88, %87 : vector<8x128xf32>
    %90 = math.tanh %89 : vector<8x128xf32>
    %cst_44 = arith.constant 5.000000e-01 : f32
    %91 = vector.broadcast %cst_44 : f32 to vector<8x128xf32>
    %92 = arith.mulf %91, %90 : vector<8x128xf32>
    %cst_45 = arith.constant 5.000000e-01 : f32
    %93 = vector.broadcast %cst_45 : f32 to vector<8x128xf32>
    %94 = arith.addf %92, %93 : vector<8x128xf32>
    %95 = vector.extract_strided_slice %78 {offsets = [0, 256], sizes = [8, 128], strides = [1, 1]} : vector<8x512xf32> to vector<8x128xf32>
    %96 = math.tanh %95 : vector<8x128xf32>
    %97 = vector.extract_strided_slice %78 {offsets = [0, 384], sizes = [8, 128], strides = [1, 1]} : vector<8x512xf32> to vector<8x128xf32>
    %cst_46 = arith.constant 5.000000e-01 : f32
    %98 = vector.broadcast %cst_46 : f32 to vector<8x128xf32>
    %99 = arith.mulf %98, %97 : vector<8x128xf32>
    %100 = math.tanh %99 : vector<8x128xf32>
    %cst_47 = arith.constant 5.000000e-01 : f32
    %101 = vector.broadcast %cst_47 : f32 to vector<8x128xf32>
    %102 = arith.mulf %101, %100 : vector<8x128xf32>
    %cst_48 = arith.constant 5.000000e-01 : f32
    %103 = vector.broadcast %cst_48 : f32 to vector<8x128xf32>
    %104 = arith.addf %102, %103 : vector<8x128xf32>
    %105 = arith.mulf %94, %69 : vector<8x128xf32>
    %106 = arith.mulf %86, %96 : vector<8x128xf32>
    %107 = arith.addf %105, %106 : vector<8x128xf32>
    %108 = math.tanh %107 : vector<8x128xf32>
    %109 = arith.mulf %104, %108 : vector<8x128xf32>
    %c2_i32 = arith.constant 2 : i32
    %c8_i32_49 = arith.constant 8 : i32
    %110 = arith.muli %c2_i32, %c8_i32_49 : i32
    %111 = tpu.assume_multiple %110, 8 : i32
    %112 = arith.index_cast %111 : i32 to index
    %c0_50 = arith.constant 0 : index
    %113 = vector.load %arg5[%112, %c0_50] : memref<64x512xf32, #tpu.memory_space<vmem>>, vector<8x512xf32>
    %c192_51 = arith.constant 192 : index
    %c0_52 = arith.constant 0 : index
    %114 = vector.load %arg1[%c192_51, %c0_52] : memref<328x512xf32, #tpu.memory_space<vmem>>, vector<128x512xf32>
    %cst_53 = arith.constant dense<0.000000e+00> : vector<8x512xf32>
    %115 = tpu.matmul %109, %114, %cst_53 {dimension_numbers = #tpu.dot_dimension_numbers<[1], [0], [0], [1], [0, 0, 1, 1], [], []>} : vector<8x128xf32>, vector<128x512xf32>, vector<8x512xf32> -> vector<8x512xf32>
    %116 = arith.addf %113, %115 : vector<8x512xf32>
    %117 = vector.extract_strided_slice %116 {offsets = [0, 0], sizes = [8, 128], strides = [1, 1]} : vector<8x512xf32> to vector<8x128xf32>
    %cst_54 = arith.constant 5.000000e-01 : f32
    %118 = vector.broadcast %cst_54 : f32 to vector<8x128xf32>
    %119 = arith.mulf %118, %117 : vector<8x128xf32>
    %120 = math.tanh %119 : vector<8x128xf32>
    %cst_55 = arith.constant 5.000000e-01 : f32
    %121 = vector.broadcast %cst_55 : f32 to vector<8x128xf32>
    %122 = arith.mulf %121, %120 : vector<8x128xf32>
    %cst_56 = arith.constant 5.000000e-01 : f32
    %123 = vector.broadcast %cst_56 : f32 to vector<8x128xf32>
    %124 = arith.addf %122, %123 : vector<8x128xf32>
    %125 = vector.extract_strided_slice %116 {offsets = [0, 128], sizes = [8, 128], strides = [1, 1]} : vector<8x512xf32> to vector<8x128xf32>
    %cst_57 = arith.constant 5.000000e-01 : f32
    %126 = vector.broadcast %cst_57 : f32 to vector<8x128xf32>
    %127 = arith.mulf %126, %125 : vector<8x128xf32>
    %128 = math.tanh %127 : vector<8x128xf32>
    %cst_58 = arith.constant 5.000000e-01 : f32
    %129 = vector.broadcast %cst_58 : f32 to vector<8x128xf32>
    %130 = arith.mulf %129, %128 : vector<8x128xf32>
    %cst_59 = arith.constant 5.000000e-01 : f32
    %131 = vector.broadcast %cst_59 : f32 to vector<8x128xf32>
    %132 = arith.addf %130, %131 : vector<8x128xf32>
    %133 = vector.extract_strided_slice %116 {offsets = [0, 256], sizes = [8, 128], strides = [1, 1]} : vector<8x512xf32> to vector<8x128xf32>
    %134 = math.tanh %133 : vector<8x128xf32>
    %135 = vector.extract_strided_slice %116 {offsets = [0, 384], sizes = [8, 128], strides = [1, 1]} : vector<8x512xf32> to vector<8x128xf32>
    %cst_60 = arith.constant 5.000000e-01 : f32
    %136 = vector.broadcast %cst_60 : f32 to vector<8x128xf32>
    %137 = arith.mulf %136, %135 : vector<8x128xf32>
    %138 = math.tanh %137 : vector<8x128xf32>
    %cst_61 = arith.constant 5.000000e-01 : f32
    %139 = vector.broadcast %cst_61 : f32 to vector<8x128xf32>
    %140 = arith.mulf %139, %138 : vector<8x128xf32>
    %cst_62 = arith.constant 5.000000e-01 : f32
    %141 = vector.broadcast %cst_62 : f32 to vector<8x128xf32>
    %142 = arith.addf %140, %141 : vector<8x128xf32>
    %143 = arith.mulf %132, %107 : vector<8x128xf32>
    %144 = arith.mulf %124, %134 : vector<8x128xf32>
    %145 = arith.addf %143, %144 : vector<8x128xf32>
    %146 = math.tanh %145 : vector<8x128xf32>
    %147 = arith.mulf %142, %146 : vector<8x128xf32>
    %c3_i32 = arith.constant 3 : i32
    %c8_i32_63 = arith.constant 8 : i32
    %148 = arith.muli %c3_i32, %c8_i32_63 : i32
    %149 = tpu.assume_multiple %148, 8 : i32
    %150 = arith.index_cast %149 : i32 to index
    %c0_64 = arith.constant 0 : index
    %151 = vector.load %arg5[%150, %c0_64] : memref<64x512xf32, #tpu.memory_space<vmem>>, vector<8x512xf32>
    %c192_65 = arith.constant 192 : index
    %c0_66 = arith.constant 0 : index
    %152 = vector.load %arg1[%c192_65, %c0_66] : memref<328x512xf32, #tpu.memory_space<vmem>>, vector<128x512xf32>
    %cst_67 = arith.constant dense<0.000000e+00> : vector<8x512xf32>
    %153 = tpu.matmul %147, %152, %cst_67 {dimension_numbers = #tpu.dot_dimension_numbers<[1], [0], [0], [1], [0, 0, 1, 1], [], []>} : vector<8x128xf32>, vector<128x512xf32>, vector<8x512xf32> -> vector<8x512xf32>
    %154 = arith.addf %151, %153 : vector<8x512xf32>
    %155 = vector.extract_strided_slice %154 {offsets = [0, 0], sizes = [8, 128], strides = [1, 1]} : vector<8x512xf32> to vector<8x128xf32>
    %cst_68 = arith.constant 5.000000e-01 : f32
    %156 = vector.broadcast %cst_68 : f32 to vector<8x128xf32>
    %157 = arith.mulf %156, %155 : vector<8x128xf32>
    %158 = math.tanh %157 : vector<8x128xf32>
    %cst_69 = arith.constant 5.000000e-01 : f32
    %159 = vector.broadcast %cst_69 : f32 to vector<8x128xf32>
    %160 = arith.mulf %159, %158 : vector<8x128xf32>
    %cst_70 = arith.constant 5.000000e-01 : f32
    %161 = vector.broadcast %cst_70 : f32 to vector<8x128xf32>
    %162 = arith.addf %160, %161 : vector<8x128xf32>
    %163 = vector.extract_strided_slice %154 {offsets = [0, 128], sizes = [8, 128], strides = [1, 1]} : vector<8x512xf32> to vector<8x128xf32>
    %cst_71 = arith.constant 5.000000e-01 : f32
    %164 = vector.broadcast %cst_71 : f32 to vector<8x128xf32>
    %165 = arith.mulf %164, %163 : vector<8x128xf32>
    %166 = math.tanh %165 : vector<8x128xf32>
    %cst_72 = arith.constant 5.000000e-01 : f32
    %167 = vector.broadcast %cst_72 : f32 to vector<8x128xf32>
    %168 = arith.mulf %167, %166 : vector<8x128xf32>
    %cst_73 = arith.constant 5.000000e-01 : f32
    %169 = vector.broadcast %cst_73 : f32 to vector<8x128xf32>
    %170 = arith.addf %168, %169 : vector<8x128xf32>
    %171 = vector.extract_strided_slice %154 {offsets = [0, 256], sizes = [8, 128], strides = [1, 1]} : vector<8x512xf32> to vector<8x128xf32>
    %172 = math.tanh %171 : vector<8x128xf32>
    %173 = vector.extract_strided_slice %154 {offsets = [0, 384], sizes = [8, 128], strides = [1, 1]} : vector<8x512xf32> to vector<8x128xf32>
    %cst_74 = arith.constant 5.000000e-01 : f32
    %174 = vector.broadcast %cst_74 : f32 to vector<8x128xf32>
    %175 = arith.mulf %174, %173 : vector<8x128xf32>
    %176 = math.tanh %175 : vector<8x128xf32>
    %cst_75 = arith.constant 5.000000e-01 : f32
    %177 = vector.broadcast %cst_75 : f32 to vector<8x128xf32>
    %178 = arith.mulf %177, %176 : vector<8x128xf32>
    %cst_76 = arith.constant 5.000000e-01 : f32
    %179 = vector.broadcast %cst_76 : f32 to vector<8x128xf32>
    %180 = arith.addf %178, %179 : vector<8x128xf32>
    %181 = arith.mulf %170, %145 : vector<8x128xf32>
    %182 = arith.mulf %162, %172 : vector<8x128xf32>
    %183 = arith.addf %181, %182 : vector<8x128xf32>
    %184 = math.tanh %183 : vector<8x128xf32>
    %185 = arith.mulf %180, %184 : vector<8x128xf32>
    %c4_i32 = arith.constant 4 : i32
    %c8_i32_77 = arith.constant 8 : i32
    %186 = arith.muli %c4_i32, %c8_i32_77 : i32
    %187 = tpu.assume_multiple %186, 8 : i32
    %188 = arith.index_cast %187 : i32 to index
    %c0_78 = arith.constant 0 : index
    %189 = vector.load %arg5[%188, %c0_78] : memref<64x512xf32, #tpu.memory_space<vmem>>, vector<8x512xf32>
    %c192_79 = arith.constant 192 : index
    %c0_80 = arith.constant 0 : index
    %190 = vector.load %arg1[%c192_79, %c0_80] : memref<328x512xf32, #tpu.memory_space<vmem>>, vector<128x512xf32>
    %cst_81 = arith.constant dense<0.000000e+00> : vector<8x512xf32>
    %191 = tpu.matmul %185, %190, %cst_81 {dimension_numbers = #tpu.dot_dimension_numbers<[1], [0], [0], [1], [0, 0, 1, 1], [], []>} : vector<8x128xf32>, vector<128x512xf32>, vector<8x512xf32> -> vector<8x512xf32>
    %192 = arith.addf %189, %191 : vector<8x512xf32>
    %193 = vector.extract_strided_slice %192 {offsets = [0, 0], sizes = [8, 128], strides = [1, 1]} : vector<8x512xf32> to vector<8x128xf32>
    %cst_82 = arith.constant 5.000000e-01 : f32
    %194 = vector.broadcast %cst_82 : f32 to vector<8x128xf32>
    %195 = arith.mulf %194, %193 : vector<8x128xf32>
    %196 = math.tanh %195 : vector<8x128xf32>
    %cst_83 = arith.constant 5.000000e-01 : f32
    %197 = vector.broadcast %cst_83 : f32 to vector<8x128xf32>
    %198 = arith.mulf %197, %196 : vector<8x128xf32>
    %cst_84 = arith.constant 5.000000e-01 : f32
    %199 = vector.broadcast %cst_84 : f32 to vector<8x128xf32>
    %200 = arith.addf %198, %199 : vector<8x128xf32>
    %201 = vector.extract_strided_slice %192 {offsets = [0, 128], sizes = [8, 128], strides = [1, 1]} : vector<8x512xf32> to vector<8x128xf32>
    %cst_85 = arith.constant 5.000000e-01 : f32
    %202 = vector.broadcast %cst_85 : f32 to vector<8x128xf32>
    %203 = arith.mulf %202, %201 : vector<8x128xf32>
    %204 = math.tanh %203 : vector<8x128xf32>
    %cst_86 = arith.constant 5.000000e-01 : f32
    %205 = vector.broadcast %cst_86 : f32 to vector<8x128xf32>
    %206 = arith.mulf %205, %204 : vector<8x128xf32>
    %cst_87 = arith.constant 5.000000e-01 : f32
    %207 = vector.broadcast %cst_87 : f32 to vector<8x128xf32>
    %208 = arith.addf %206, %207 : vector<8x128xf32>
    %209 = vector.extract_strided_slice %192 {offsets = [0, 256], sizes = [8, 128], strides = [1, 1]} : vector<8x512xf32> to vector<8x128xf32>
    %210 = math.tanh %209 : vector<8x128xf32>
    %211 = vector.extract_strided_slice %192 {offsets = [0, 384], sizes = [8, 128], strides = [1, 1]} : vector<8x512xf32> to vector<8x128xf32>
    %cst_88 = arith.constant 5.000000e-01 : f32
    %212 = vector.broadcast %cst_88 : f32 to vector<8x128xf32>
    %213 = arith.mulf %212, %211 : vector<8x128xf32>
    %214 = math.tanh %213 : vector<8x128xf32>
    %cst_89 = arith.constant 5.000000e-01 : f32
    %215 = vector.broadcast %cst_89 : f32 to vector<8x128xf32>
    %216 = arith.mulf %215, %214 : vector<8x128xf32>
    %cst_90 = arith.constant 5.000000e-01 : f32
    %217 = vector.broadcast %cst_90 : f32 to vector<8x128xf32>
    %218 = arith.addf %216, %217 : vector<8x128xf32>
    %219 = arith.mulf %208, %183 : vector<8x128xf32>
    %220 = arith.mulf %200, %210 : vector<8x128xf32>
    %221 = arith.addf %219, %220 : vector<8x128xf32>
    %222 = math.tanh %221 : vector<8x128xf32>
    %223 = arith.mulf %218, %222 : vector<8x128xf32>
    %c5_i32 = arith.constant 5 : i32
    %c8_i32_91 = arith.constant 8 : i32
    %224 = arith.muli %c5_i32, %c8_i32_91 : i32
    %225 = tpu.assume_multiple %224, 8 : i32
    %226 = arith.index_cast %225 : i32 to index
    %c0_92 = arith.constant 0 : index
    %227 = vector.load %arg5[%226, %c0_92] : memref<64x512xf32, #tpu.memory_space<vmem>>, vector<8x512xf32>
    %c192_93 = arith.constant 192 : index
    %c0_94 = arith.constant 0 : index
    %228 = vector.load %arg1[%c192_93, %c0_94] : memref<328x512xf32, #tpu.memory_space<vmem>>, vector<128x512xf32>
    %cst_95 = arith.constant dense<0.000000e+00> : vector<8x512xf32>
    %229 = tpu.matmul %223, %228, %cst_95 {dimension_numbers = #tpu.dot_dimension_numbers<[1], [0], [0], [1], [0, 0, 1, 1], [], []>} : vector<8x128xf32>, vector<128x512xf32>, vector<8x512xf32> -> vector<8x512xf32>
    %230 = arith.addf %227, %229 : vector<8x512xf32>
    %231 = vector.extract_strided_slice %230 {offsets = [0, 0], sizes = [8, 128], strides = [1, 1]} : vector<8x512xf32> to vector<8x128xf32>
    %cst_96 = arith.constant 5.000000e-01 : f32
    %232 = vector.broadcast %cst_96 : f32 to vector<8x128xf32>
    %233 = arith.mulf %232, %231 : vector<8x128xf32>
    %234 = math.tanh %233 : vector<8x128xf32>
    %cst_97 = arith.constant 5.000000e-01 : f32
    %235 = vector.broadcast %cst_97 : f32 to vector<8x128xf32>
    %236 = arith.mulf %235, %234 : vector<8x128xf32>
    %cst_98 = arith.constant 5.000000e-01 : f32
    %237 = vector.broadcast %cst_98 : f32 to vector<8x128xf32>
    %238 = arith.addf %236, %237 : vector<8x128xf32>
    %239 = vector.extract_strided_slice %230 {offsets = [0, 128], sizes = [8, 128], strides = [1, 1]} : vector<8x512xf32> to vector<8x128xf32>
    %cst_99 = arith.constant 5.000000e-01 : f32
    %240 = vector.broadcast %cst_99 : f32 to vector<8x128xf32>
    %241 = arith.mulf %240, %239 : vector<8x128xf32>
    %242 = math.tanh %241 : vector<8x128xf32>
    %cst_100 = arith.constant 5.000000e-01 : f32
    %243 = vector.broadcast %cst_100 : f32 to vector<8x128xf32>
    %244 = arith.mulf %243, %242 : vector<8x128xf32>
    %cst_101 = arith.constant 5.000000e-01 : f32
    %245 = vector.broadcast %cst_101 : f32 to vector<8x128xf32>
    %246 = arith.addf %244, %245 : vector<8x128xf32>
    %247 = vector.extract_strided_slice %230 {offsets = [0, 256], sizes = [8, 128], strides = [1, 1]} : vector<8x512xf32> to vector<8x128xf32>
    %248 = math.tanh %247 : vector<8x128xf32>
    %249 = vector.extract_strided_slice %230 {offsets = [0, 384], sizes = [8, 128], strides = [1, 1]} : vector<8x512xf32> to vector<8x128xf32>
    %cst_102 = arith.constant 5.000000e-01 : f32
    %250 = vector.broadcast %cst_102 : f32 to vector<8x128xf32>
    %251 = arith.mulf %250, %249 : vector<8x128xf32>
    %252 = math.tanh %251 : vector<8x128xf32>
    %cst_103 = arith.constant 5.000000e-01 : f32
    %253 = vector.broadcast %cst_103 : f32 to vector<8x128xf32>
    %254 = arith.mulf %253, %252 : vector<8x128xf32>
    %cst_104 = arith.constant 5.000000e-01 : f32
    %255 = vector.broadcast %cst_104 : f32 to vector<8x128xf32>
    %256 = arith.addf %254, %255 : vector<8x128xf32>
    %257 = arith.mulf %246, %221 : vector<8x128xf32>
    %258 = arith.mulf %238, %248 : vector<8x128xf32>
    %259 = arith.addf %257, %258 : vector<8x128xf32>
    %260 = math.tanh %259 : vector<8x128xf32>
    %261 = arith.mulf %256, %260 : vector<8x128xf32>
    %c6_i32 = arith.constant 6 : i32
    %c8_i32_105 = arith.constant 8 : i32
    %262 = arith.muli %c6_i32, %c8_i32_105 : i32
    %263 = tpu.assume_multiple %262, 8 : i32
    %264 = arith.index_cast %263 : i32 to index
    %c0_106 = arith.constant 0 : index
    %265 = vector.load %arg5[%264, %c0_106] : memref<64x512xf32, #tpu.memory_space<vmem>>, vector<8x512xf32>
    %c192_107 = arith.constant 192 : index
    %c0_108 = arith.constant 0 : index
    %266 = vector.load %arg1[%c192_107, %c0_108] : memref<328x512xf32, #tpu.memory_space<vmem>>, vector<128x512xf32>
    %cst_109 = arith.constant dense<0.000000e+00> : vector<8x512xf32>
    %267 = tpu.matmul %261, %266, %cst_109 {dimension_numbers = #tpu.dot_dimension_numbers<[1], [0], [0], [1], [0, 0, 1, 1], [], []>} : vector<8x128xf32>, vector<128x512xf32>, vector<8x512xf32> -> vector<8x512xf32>
    %268 = arith.addf %265, %267 : vector<8x512xf32>
    %269 = vector.extract_strided_slice %268 {offsets = [0, 0], sizes = [8, 128], strides = [1, 1]} : vector<8x512xf32> to vector<8x128xf32>
    %cst_110 = arith.constant 5.000000e-01 : f32
    %270 = vector.broadcast %cst_110 : f32 to vector<8x128xf32>
    %271 = arith.mulf %270, %269 : vector<8x128xf32>
    %272 = math.tanh %271 : vector<8x128xf32>
    %cst_111 = arith.constant 5.000000e-01 : f32
    %273 = vector.broadcast %cst_111 : f32 to vector<8x128xf32>
    %274 = arith.mulf %273, %272 : vector<8x128xf32>
    %cst_112 = arith.constant 5.000000e-01 : f32
    %275 = vector.broadcast %cst_112 : f32 to vector<8x128xf32>
    %276 = arith.addf %274, %275 : vector<8x128xf32>
    %277 = vector.extract_strided_slice %268 {offsets = [0, 128], sizes = [8, 128], strides = [1, 1]} : vector<8x512xf32> to vector<8x128xf32>
    %cst_113 = arith.constant 5.000000e-01 : f32
    %278 = vector.broadcast %cst_113 : f32 to vector<8x128xf32>
    %279 = arith.mulf %278, %277 : vector<8x128xf32>
    %280 = math.tanh %279 : vector<8x128xf32>
    %cst_114 = arith.constant 5.000000e-01 : f32
    %281 = vector.broadcast %cst_114 : f32 to vector<8x128xf32>
    %282 = arith.mulf %281, %280 : vector<8x128xf32>
    %cst_115 = arith.constant 5.000000e-01 : f32
    %283 = vector.broadcast %cst_115 : f32 to vector<8x128xf32>
    %284 = arith.addf %282, %283 : vector<8x128xf32>
    %285 = vector.extract_strided_slice %268 {offsets = [0, 256], sizes = [8, 128], strides = [1, 1]} : vector<8x512xf32> to vector<8x128xf32>
    %286 = math.tanh %285 : vector<8x128xf32>
    %287 = vector.extract_strided_slice %268 {offsets = [0, 384], sizes = [8, 128], strides = [1, 1]} : vector<8x512xf32> to vector<8x128xf32>
    %cst_116 = arith.constant 5.000000e-01 : f32
    %288 = vector.broadcast %cst_116 : f32 to vector<8x128xf32>
    %289 = arith.mulf %288, %287 : vector<8x128xf32>
    %290 = math.tanh %289 : vector<8x128xf32>
    %cst_117 = arith.constant 5.000000e-01 : f32
    %291 = vector.broadcast %cst_117 : f32 to vector<8x128xf32>
    %292 = arith.mulf %291, %290 : vector<8x128xf32>
    %cst_118 = arith.constant 5.000000e-01 : f32
    %293 = vector.broadcast %cst_118 : f32 to vector<8x128xf32>
    %294 = arith.addf %292, %293 : vector<8x128xf32>
    %295 = arith.mulf %284, %259 : vector<8x128xf32>
    %296 = arith.mulf %276, %286 : vector<8x128xf32>
    %297 = arith.addf %295, %296 : vector<8x128xf32>
    %298 = math.tanh %297 : vector<8x128xf32>
    %299 = arith.mulf %294, %298 : vector<8x128xf32>
    %c7_i32 = arith.constant 7 : i32
    %c8_i32_119 = arith.constant 8 : i32
    %300 = arith.muli %c7_i32, %c8_i32_119 : i32
    %301 = tpu.assume_multiple %300, 8 : i32
    %302 = arith.index_cast %301 : i32 to index
    %c0_120 = arith.constant 0 : index
    %303 = vector.load %arg5[%302, %c0_120] : memref<64x512xf32, #tpu.memory_space<vmem>>, vector<8x512xf32>
    %c192_121 = arith.constant 192 : index
    %c0_122 = arith.constant 0 : index
    %304 = vector.load %arg1[%c192_121, %c0_122] : memref<328x512xf32, #tpu.memory_space<vmem>>, vector<128x512xf32>
    %cst_123 = arith.constant dense<0.000000e+00> : vector<8x512xf32>
    %305 = tpu.matmul %299, %304, %cst_123 {dimension_numbers = #tpu.dot_dimension_numbers<[1], [0], [0], [1], [0, 0, 1, 1], [], []>} : vector<8x128xf32>, vector<128x512xf32>, vector<8x512xf32> -> vector<8x512xf32>
    %306 = arith.addf %303, %305 : vector<8x512xf32>
    %307 = vector.extract_strided_slice %306 {offsets = [0, 0], sizes = [8, 128], strides = [1, 1]} : vector<8x512xf32> to vector<8x128xf32>
    %cst_124 = arith.constant 5.000000e-01 : f32
    %308 = vector.broadcast %cst_124 : f32 to vector<8x128xf32>
    %309 = arith.mulf %308, %307 : vector<8x128xf32>
    %310 = math.tanh %309 : vector<8x128xf32>
    %cst_125 = arith.constant 5.000000e-01 : f32
    %311 = vector.broadcast %cst_125 : f32 to vector<8x128xf32>
    %312 = arith.mulf %311, %310 : vector<8x128xf32>
    %cst_126 = arith.constant 5.000000e-01 : f32
    %313 = vector.broadcast %cst_126 : f32 to vector<8x128xf32>
    %314 = arith.addf %312, %313 : vector<8x128xf32>
    %315 = vector.extract_strided_slice %306 {offsets = [0, 128], sizes = [8, 128], strides = [1, 1]} : vector<8x512xf32> to vector<8x128xf32>
    %cst_127 = arith.constant 5.000000e-01 : f32
    %316 = vector.broadcast %cst_127 : f32 to vector<8x128xf32>
    %317 = arith.mulf %316, %315 : vector<8x128xf32>
    %318 = math.tanh %317 : vector<8x128xf32>
    %cst_128 = arith.constant 5.000000e-01 : f32
    %319 = vector.broadcast %cst_128 : f32 to vector<8x128xf32>
    %320 = arith.mulf %319, %318 : vector<8x128xf32>
    %cst_129 = arith.constant 5.000000e-01 : f32
    %321 = vector.broadcast %cst_129 : f32 to vector<8x128xf32>
    %322 = arith.addf %320, %321 : vector<8x128xf32>
    %323 = vector.extract_strided_slice %306 {offsets = [0, 256], sizes = [8, 128], strides = [1, 1]} : vector<8x512xf32> to vector<8x128xf32>
    %324 = math.tanh %323 : vector<8x128xf32>
    %325 = vector.extract_strided_slice %306 {offsets = [0, 384], sizes = [8, 128], strides = [1, 1]} : vector<8x512xf32> to vector<8x128xf32>
    %cst_130 = arith.constant 5.000000e-01 : f32
    %326 = vector.broadcast %cst_130 : f32 to vector<8x128xf32>
    %327 = arith.mulf %326, %325 : vector<8x128xf32>
    %328 = math.tanh %327 : vector<8x128xf32>
    %cst_131 = arith.constant 5.000000e-01 : f32
    %329 = vector.broadcast %cst_131 : f32 to vector<8x128xf32>
    %330 = arith.mulf %329, %328 : vector<8x128xf32>
    %cst_132 = arith.constant 5.000000e-01 : f32
    %331 = vector.broadcast %cst_132 : f32 to vector<8x128xf32>
    %332 = arith.addf %330, %331 : vector<8x128xf32>
    %333 = arith.mulf %322, %297 : vector<8x128xf32>
    %334 = arith.mulf %314, %324 : vector<8x128xf32>
    %335 = arith.addf %333, %334 : vector<8x128xf32>
    %336 = math.tanh %335 : vector<8x128xf32>
    %337 = arith.mulf %332, %336 : vector<8x128xf32>
    %c8_i32_133 = arith.constant 8 : i32
    %c64 = arith.constant 64 : index
    %c0_134 = arith.constant 0 : index
    %338 = vector.load %arg0[%c64, %c0_134] : memref<72x16xf32, #tpu.memory_space<vmem>>, vector<8x16xf32>
    %c0_135 = arith.constant 0 : index
    %c0_136 = arith.constant 0 : index
    %339 = vector.load %arg3[%c0_135, %c0_136] : memref<296x64xf32, #tpu.memory_space<vmem>>, vector<128x64xf32>
    %cst_137 = arith.constant dense<0.000000e+00> : vector<8x64xf32>
    %340 = tpu.matmul %337, %339, %cst_137 {dimension_numbers = #tpu.dot_dimension_numbers<[1], [0], [0], [1], [0, 0, 1, 1], [], []>} : vector<8x128xf32>, vector<128x64xf32>, vector<8x64xf32> -> vector<8x64xf32>
    %c128 = arith.constant 128 : index
    %c0_138 = arith.constant 0 : index
    %341 = vector.load %arg3[%c128, %c0_138] : memref<296x64xf32, #tpu.memory_space<vmem>>, vector<16x64xf32>
    %cst_139 = arith.constant dense<0.000000e+00> : vector<8x64xf32>
    %342 = tpu.matmul %338, %341, %cst_139 {dimension_numbers = #tpu.dot_dimension_numbers<[1], [0], [0], [1], [0, 0, 1, 1], [], []>} : vector<8x16xf32>, vector<16x64xf32>, vector<8x64xf32> -> vector<8x64xf32>
    %343 = arith.addf %340, %342 : vector<8x64xf32>
    %c144 = arith.constant 144 : index
    %c0_140 = arith.constant 0 : index
    %344 = vector.load %arg3[%c144, %c0_140] : memref<296x64xf32, #tpu.memory_space<vmem>>, vector<1x64xf32>
    %345 = vector.broadcast %344 : vector<1x64xf32> to vector<8x64xf32>
    %346 = arith.addf %343, %345 : vector<8x64xf32>
    %cst_141 = arith.constant 0.000000e+00 : f32
    %347 = vector.broadcast %cst_141 : f32 to vector<8x64xf32>
    %348 = arith.maximumf %346, %347 : vector<8x64xf32>
    %c152 = arith.constant 152 : index
    %c0_142 = arith.constant 0 : index
    %349 = vector.load %arg3[%c152, %c0_142] : memref<296x64xf32, #tpu.memory_space<vmem>>, vector<64x64xf32>
    %cst_143 = arith.constant dense<0.000000e+00> : vector<8x64xf32>
    %350 = tpu.matmul %348, %349, %cst_143 {dimension_numbers = #tpu.dot_dimension_numbers<[1], [0], [0], [1], [0, 0, 1, 1], [], []>} : vector<8x64xf32>, vector<64x64xf32>, vector<8x64xf32> -> vector<8x64xf32>
    %c216 = arith.constant 216 : index
    %c0_144 = arith.constant 0 : index
    %351 = vector.load %arg3[%c216, %c0_144] : memref<296x64xf32, #tpu.memory_space<vmem>>, vector<1x64xf32>
    %352 = vector.broadcast %351 : vector<1x64xf32> to vector<8x64xf32>
    %353 = arith.addf %350, %352 : vector<8x64xf32>
    %cst_145 = arith.constant 0.000000e+00 : f32
    %354 = vector.broadcast %cst_145 : f32 to vector<8x64xf32>
    %355 = arith.maximumf %353, %354 : vector<8x64xf32>
    %c224 = arith.constant 224 : index
    %c0_146 = arith.constant 0 : index
    %356 = vector.load %arg3[%c224, %c0_146] : memref<296x64xf32, #tpu.memory_space<vmem>>, vector<64x64xf32>
    %cst_147 = arith.constant dense<0.000000e+00> : vector<8x64xf32>
    %357 = tpu.matmul %355, %356, %cst_147 {dimension_numbers = #tpu.dot_dimension_numbers<[1], [0], [0], [1], [0, 0, 1, 1], [], []>} : vector<8x64xf32>, vector<64x64xf32>, vector<8x64xf32> -> vector<8x64xf32>
    %c288 = arith.constant 288 : index
    %c0_148 = arith.constant 0 : index
    %358 = vector.load %arg3[%c288, %c0_148] : memref<296x64xf32, #tpu.memory_space<vmem>>, vector<1x64xf32>
    %359 = vector.broadcast %358 : vector<1x64xf32> to vector<8x64xf32>
    %360 = arith.addf %357, %359 : vector<8x64xf32>
    %c0_149 = arith.constant 0 : index
    %c0_150 = arith.constant 0 : index
    %361 = vector.load %arg4[%c0_149, %c0_150] : memref<8x64xf32, #tpu.memory_space<vmem>>, vector<8x64xf32>
    tpu.vector_store %arg4[%c0_149, %c0_150], %360 {strides = array<i32>} : memref<8x64xf32, #tpu.memory_space<vmem>>, vector<8x64xf32>,
    return
  }
}

</mosaic_0001>

<llo_original>
// kernel: rnn2_forward.1
$region0: #{rnn2_forward.1}
  #allocation0 [shape = 'u32[]', space=smem, size = 0x4, offset = 0x4, fixed_abs, tag = 'smem constant byte address 0x4 - core index']
  #allocation1 [shape = 'u32[144,128]{1,0:T(1,128)}', space=vmem, size = 0x12000, scoped, tag = 'internal scratch']
  #allocation2 [shape = 'f32[64,512]{1,0:T(8,128)}', space=vmem, size = 0x20000, scoped, tag = 'scratch operand']
  %s0 = inlined_call_operand.vmem [shape: f32[72,16], index: 0, kind: input, shape index: {}]
  %s1 = inlined_call_operand.vmem [shape: f32[328,512], index: 1, kind: input, shape index: {}]
  %s2 = inlined_call_operand.vmem [shape: f32[608,192], index: 2, kind: input, shape index: {}]
  %s3 = inlined_call_operand.vmem [shape: f32[296,64], index: 3, kind: input, shape index: {}]
  %s4 = inlined_call_operand.vmem [shape: f32[8,64], index: 4, kind: output, shape index: {}]
  %s5 = sld [smem:[#allocation0]]
  $region26: #{rnn2_forward.1} parent=0
    _
  %s7 = ssub.s32 1, %s5
  %s8 = scalar_select 0, %s7, %s5
  // Predicated region
  $region2: #{rnn2_forward.1} parent=0 // pred_check
    _
  $region3: #{rnn2_forward.1} parent=0 // pred_check_branch
    %10 = sbr.rel (0) target = $region5
  $region4: #{rnn2_forward.1} parent=0 // pred_region
    _
  $region5: #{rnn2_forward.1} parent=0 // pred_fallthru
    _
  // Predicated region
  $region6: #{rnn2_forward.1} parent=0 // pred_check
    _
  $region7: #{rnn2_forward.1} parent=0 // pred_check_branch
    %12 = sbr.rel (0) target = $region9
  $region8: #{rnn2_forward.1} parent=0 // pred_region
    _
  $region9: #{rnn2_forward.1} parent=0 // pred_fallthru
    _
  // Predicated region
  $region10: #{rnn2_forward.1} parent=0 // pred_check
    _
  $region11: #{rnn2_forward.1} parent=0 // pred_check_branch
    %14 = sbr.rel (0) target = $region13
  $region12: #{rnn2_forward.1} parent=0 // pred_region
    _
  $region13: #{rnn2_forward.1} parent=0 // pred_fallthru
    _
  // Predicated region
  $region14: #{rnn2_forward.1} parent=0 // pred_check
    _
  $region15: #{rnn2_forward.1} parent=0 // pred_check_branch
    %16 = sbr.rel (0) target = $region17
  $region16: #{rnn2_forward.1} parent=0 // pred_region
    _
  $region17: #{rnn2_forward.1} parent=0 // pred_fallthru
    _
  %v17 = vld [vmem:[%s0] sm:$0xff]
  %v18 = vld [vmem:[%s0 + $0x8] sm:$0xff]
  %v19 = vld [vmem:[%s0 + $0x10] sm:$0xff]
  %v20 = vld [vmem:[%s0 + $0x18] sm:$0xff]
  %v21 = vld [vmem:[%s0 + $0x20] sm:$0xff]
  %v22 = vld [vmem:[%s0 + $0x28] sm:$0xff]
  %v23 = vld [vmem:[%s0 + $0x30] sm:$0xff]
  %v24 = vld [vmem:[%s0 + $0x38] sm:$0xff]
  %v25 = vld [vmem:[%s2 + $0x490] sm:$0xff]
  %v26 = vld [vmem:[%s2 + $0x498] sm:$0xff]
  %v27 = vld [vmem:[%s2 + $0x4a0] sm:$0xff]
  %v28 = vld [vmem:[%s2 + $0x4a8] sm:$0xff]
  %s29 = scalar_lea.vmem %s2, 1200
  %v30 = vld [vmem:[%s29] ss:$8 sm:$0x3]
  %v32 = vlaneseq
  %v33 = vshrl.u32 %v32, 7
  %v34 = vsub.s32 0, %v33
  %v35 = vrot.slane %v30, %v34
  %v36 = vlaneseq
  %v37 = vshrl.u32 %v36, 7
  %v38 = vsub.s32 1, %v37
  %v39 = vrot.slane %v30, %v38
  %vm42 = vcmask 130048
  %v44 = vsel %vm42, %v17, 0
  %v47 = vsel %vm42, %v18, 0
  %v50 = vsel %vm42, %v19, 0
  %v53 = vsel %vm42, %v20, 0
  %v56 = vsel %vm42, %v21, 0
  %v59 = vsel %vm42, %v22, 0
  %v62 = vsel %vm42, %v23, 0
  %v65 = vsel %vm42, %v24, 0
  %67 = vmatprep.subr.mxu0 0.0
  %68 = vmatpush1.msra.mxu0 0.0
  %69 = vmatprep.subr.mxu0 0.0
  %70 = vmatpush1.msra.mxu0 0.0
  %71 = vmatprep.subr.mxu0 0.0
  %72 = vmatpush1.msra.mxu0 0.0
  %73 = vmatprep.subr.mxu0 0.0
  %74 = vmatpush1.msra.mxu0 0.0
  %75 = vmatprep.subr.mxu0 0.0
  %76 = vmatpush1.msra.mxu0 0.0
  %77 = vmatprep.subr.mxu0 0.0
  %78 = vmatpush1.msra.mxu0 0.0
  %79 = vmatprep.subr.mxu0 0.0
  %80 = vmatpush1.msra.mxu0 0.0
  %81 = vmatprep.subr.mxu0 0.0
  %82 = vmatpush1.msra.mxu0 0.0
  %83 = vmatprep.subr.mxu0 0.0
  %84 = vmatpush1.msra.mxu0 0.0
  %85 = vmatprep.subr.mxu0 0.0
  %86 = vmatpush1.msra.mxu0 0.0
  %87 = vmatprep.subr.mxu0 0.0
  %88 = vmatpush1.msra.mxu0 0.0
  %89 = vmatprep.subr.mxu0 0.0
  %90 = vmatpush1.msra.mxu0 0.0
  %91 = vmatprep.subr.mxu0 0.0
  %92 = vmatpush1.msra.mxu0 0.0
  %93 = vmatprep.subr.mxu0 0.0
  %94 = vmatpush1.msra.mxu0 0.0
  %95 = vmatprep.subr.mxu0 %v28
  %96 = vmatpush1.msra.mxu0 %v27
  %97 = vmatprep.subr.mxu0 %v26
  %98 = vmatpush1.msra.mxu0 %v25
  %99 = vmatprep.subr.mxu0 0.0
  %100 = vmatpush2.msra.mxu0 0.0
  %101 = vmatprep.subr.mxu0 0.0
  %102 = vmatpush2.msra.mxu0 0.0
  %103 = vmatprep.subr.mxu0 0.0
  %104 = vmatpush2.msra.mxu0 0.0
  %105 = vmatprep.subr.mxu0 0.0
  %106 = vmatpush2.msra.mxu0 0.0
  %107 = vmatprep.subr.mxu0 0.0
  %108 = vmatpush2.msra.mxu0 0.0
  %109 = vmatprep.subr.mxu0 0.0
  %110 = vmatpush2.msra.mxu0 0.0
  %111 = vmatprep.subr.mxu0 0.0
  %112 = vmatpush2.msra.mxu0 0.0
  %113 = vmatprep.subr.mxu0 0.0
  %114 = vmatpush2.msra.mxu0 0.0
  %115 = vmatprep.subr.mxu0 0.0
  %116 = vmatpush2.msra.mxu0 0.0
  %117 = vmatprep.subr.mxu0 0.0
  %118 = vmatpush2.msra.mxu0 0.0
  %119 = vmatprep.subr.mxu0 0.0
  %120 = vmatpush2.msra.mxu0 0.0
  %121 = vmatprep.subr.mxu0 0.0
  %122 = vmatpush2.msra.mxu0 0.0
  %123 = vmatprep.subr.mxu0 0.0
  %124 = vmatpush2.msra.mxu0 0.0
  %125 = vmatprep.subr.mxu0 0.0
  %126 = vmatpush2.msra.mxu0 0.0
  %127 = vmatprep.subr.mxu0 0.0
  %128 = vmatpush2.msra.mxu0 0.0
  %129 = vmatprep.subr.mxu0 0.0
  %130 = vmatpush2.msra.mxu0 0.0
  %131 = vmatprep.mubr.f32.mxu0 0.0
  %132 = vmatmul.mubr.f32.gmra.mxu0 %v44
  %v133 = vpop.f32.mrf.mxu0
  %v134 = vadd.f32 %v35, %v133
  %v135 = vpop.f32.mrf.mxu0
  %v136 = vadd.f32 %v39, %v135
  %137 = vmatprep.mubr.f32.mxu0 0.0
  %138 = vmatmul.mubr.f32.gmra.mxu0 %v47
  %v139 = vpop.f32.mrf.mxu0
  %v140 = vadd.f32 %v35, %v139
  %v141 = vpop.f32.mrf.mxu0
  %v142 = vadd.f32 %v39, %v141
  %143 = vmatprep.mubr.f32.mxu0 0.0
  %144 = vmatmul.mubr.f32.gmra.mxu0 %v50
  %v145 = vpop.f32.mrf.mxu0
  %v146 = vadd.f32 %v35, %v145
  %v147 = vpop.f32.mrf.mxu0
  %v148 = vadd.f32 %v39, %v147
  %149 = vmatprep.mubr.f32.mxu0 0.0
  %150 = vmatmul.mubr.f32.gmra.mxu0 %v53
  %v151 = vpop.f32.mrf.mxu0
  %v152 = vadd.f32 %v35, %v151
  %v153 = vpop.f32.mrf.mxu0
  %v154 = vadd.f32 %v39, %v153
  %155 = vmatprep.mubr.f32.mxu0 0.0
  %156 = vmatmul.mubr.f32.gmra.mxu0 %v56
  %v157 = vpop.f32.mrf.mxu0
  %v158 = vadd.f32 %v35, %v157
  %v159 = vpop.f32.mrf.mxu0
  %v160 = vadd.f32 %v39, %v159
  %161 = vmatprep.mubr.f32.mxu0 0.0
  %162 = vmatmul.mubr.f32.gmra.mxu0 %v59
  %v163 = vpop.f32.mrf.mxu0
  %v164 = vadd.f32 %v35, %v163
  %v165 = vpop.f32.mrf.mxu0
  %v166 = vadd.f32 %v39, %v165
  %167 = vmatprep.mubr.f32.mxu0 0.0
  %168 = vmatmul.mubr.f32.gmra.mxu0 %v62
  %v169 = vpop.f32.mrf.mxu0
  %v170 = vadd.f32 %v35, %v169
  %v171 = vpop.f32.mrf.mxu0
  %v172 = vadd.f32 %v39, %v171
  %173 = vmatprep.mubr.f32.mxu0 0.0
  %174 = vmatmul.mubr.f32.gmra.mxu0 %v65
  %v175 = vpop.f32.mrf.mxu0
  %v176 = vadd.f32 %v35, %v175
  %v177 = vpop.f32.mrf.mxu0
  %v178 = vadd.f32 %v39, %v177
  %179 = vdwg.mxu0
  %v180 = vmax.f32 %v134, 0.0
  %v181 = vmax.f32 %v136, 0.0
  %v182 = vmax.f32 %v140, 0.0
  %v183 = vmax.f32 %v142, 0.0
  %v184 = vmax.f32 %v146, 0.0
  %v185 = vmax.f32 %v148, 0.0
  %v186 = vmax.f32 %v152, 0.0
  %v187 = vmax.f32 %v154, 0.0
  %v188 = vmax.f32 %v158, 0.0
  %v189 = vmax.f32 %v160, 0.0
  %v190 = vmax.f32 %v164, 0.0
  %v191 = vmax.f32 %v166, 0.0
  %v192 = vmax.f32 %v170, 0.0
  %v193 = vmax.f32 %v172, 0.0
  %v194 = vmax.f32 %v176, 0.0
  %v195 = vmax.f32 %v178, 0.0
  %s196 = scalar_lea.vmem %s2, 1152
  %v197 = vld [vmem:[%s196] ss:$8 sm:$0x3]
  %v198 = vld [vmem:[%s2] sm:$0xff]
  %v199 = vld [vmem:[%s2 + $0x8] sm:$0xff]
  %v200 = vld [vmem:[%s2 + $0x10] sm:$0xff]
  %v201 = vld [vmem:[%s2 + $0x18] sm:$0xff]
  %v202 = vld [vmem:[%s2 + $0x20] sm:$0xff]
  %v203 = vld [vmem:[%s2 + $0x28] sm:$0xff]
  %v204 = vld [vmem:[%s2 + $0x30] sm:$0xff]
  %v205 = vld [vmem:[%s2 + $0x38] sm:$0xff]
  %v206 = vld [vmem:[%s2 + $0x40] sm:$0xff]
  %v207 = vld [vmem:[%s2 + $0x48] sm:$0xff]
  %v208 = vld [vmem:[%s2 + $0x50] sm:$0xff]
  %v209 = vld [vmem:[%s2 + $0x58] sm:$0xff]
  %v210 = vld [vmem:[%s2 + $0x60] sm:$0xff]
  %v211 = vld [vmem:[%s2 + $0x68] sm:$0xff]
  %v212 = vld [vmem:[%s2 + $0x70] sm:$0xff]
  %v213 = vld [vmem:[%s2 + $0x78] sm:$0xff]
  %v214 = vld [vmem:[%s2 + $0x80] sm:$0xff]
  %v215 = vld [vmem:[%s2 + $0x88] sm:$0xff]
  %v216 = vld [vmem:[%s2 + $0x90] sm:$0xff]
  %v217 = vld [vmem:[%s2 + $0x98] sm:$0xff]
  %v218 = vld [vmem:[%s2 + $0xa0] sm:$0xff]
  %v219 = vld [vmem:[%s2 + $0xa8] sm:$0xff]
  %v220 = vld [vmem:[%s2 + $0xb0] sm:$0xff]
  %v221 = vld [vmem:[%s2 + $0xb8] sm:$0xff]
  %v222 = vld [vmem:[%s2 + $0xc0] sm:$0xff]
  %v223 = vld [vmem:[%s2 + $0xc8] sm:$0xff]
  %v224 = vld [vmem:[%s2 + $0xd0] sm:$0xff]
  %v225 = vld [vmem:[%s2 + $0xd8] sm:$0xff]
  %v226 = vld [vmem:[%s2 + $0xe0] sm:$0xff]
  %v227 = vld [vmem:[%s2 + $0xe8] sm:$0xff]
  %v228 = vld [vmem:[%s2 + $0xf0] sm:$0xff]
  %v229 = vld [vmem:[%s2 + $0xf8] sm:$0xff]
  %v230 = vld [vmem:[%s2 + $0x100] sm:$0xff]
  %v231 = vld [vmem:[%s2 + $0x108] sm:$0xff]
  %v232 = vld [vmem:[%s2 + $0x110] sm:$0xff]
  %v233 = vld [vmem:[%s2 + $0x118] sm:$0xff]
  %v234 = vld [vmem:[%s2 + $0x120] sm:$0xff]
  %v235 = vld [vmem:[%s2 + $0x128] sm:$0xff]
  %v236 = vld [vmem:[%s2 + $0x130] sm:$0xff]
  %v237 = vld [vmem:[%s2 + $0x138] sm:$0xff]
  %v238 = vld [vmem:[%s2 + $0x140] sm:$0xff]
  %v239 = vld [vmem:[%s2 + $0x148] sm:$0xff]
  %v240 = vld [vmem:[%s2 + $0x150] sm:$0xff]
  %v241 = vld [vmem:[%s2 + $0x158] sm:$0xff]
  %v242 = vld [vmem:[%s2 + $0x160] sm:$0xff]
  %v243 = vld [vmem:[%s2 + $0x168] sm:$0xff]
  %v244 = vld [vmem:[%s2 + $0x170] sm:$0xff]
  %v245 = vld [vmem:[%s2 + $0x178] sm:$0xff]
  %vm246 = vcmask 523264
  %v248 = vsel %vm246, 0.0, 0
  %v251 = vsel %vm246, %v181, 0
  %v254 = vsel %vm246, %v183, 0
  %v257 = vsel %vm246, %v185, 0
  %v260 = vsel %vm246, %v187, 0
  %v263 = vsel %vm246, %v189, 0
  %v266 = vsel %vm246, %v191, 0
  %v269 = vsel %vm246, %v193, 0
  %271 = vmatprep.subr.mxu0 %v229
  %272 = vmatpush1.msra.mxu0 %v228
  %273 = vmatprep.subr.mxu0 %v227
  %274 = vmatpush1.msra.mxu0 %v226
  %275 = vmatprep.subr.mxu0 %v225
  %276 = vmatpush1.msra.mxu0 %v224
  %277 = vmatprep.subr.mxu0 %v223
  %278 = vmatpush1.msra.mxu0 %v222
  %279 = vmatprep.subr.mxu0 %v221
  %280 = vmatpush1.msra.mxu0 %v220
  %281 = vmatprep.subr.mxu0 %v219
  %282 = vmatpush1.msra.mxu0 %v218
  %283 = vmatprep.subr.mxu0 %v217
  %284 = vmatpush1.msra.mxu0 %v216
  %285 = vmatprep.subr.mxu0 %v215
  %286 = vmatpush1.msra.mxu0 %v214
  %287 = vmatprep.subr.mxu0 %v213
  %288 = vmatpush1.msra.mxu0 %v212
  %289 = vmatprep.subr.mxu0 %v211
  %290 = vmatpush1.msra.mxu0 %v210
  %291 = vmatprep.subr.mxu0 %v209
  %292 = vmatpush1.msra.mxu0 %v208
  %293 = vmatprep.subr.mxu0 %v207
  %294 = vmatpush1.msra.mxu0 %v206
  %295 = vmatprep.subr.mxu0 %v205
  %296 = vmatpush1.msra.mxu0 %v204
  %297 = vmatprep.subr.mxu0 %v203
  %298 = vmatpush1.msra.mxu0 %v202
  %299 = vmatprep.subr.mxu0 %v201
  %300 = vmatpush1.msra.mxu0 %v200
  %301 = vmatprep.subr.mxu0 %v199
  %302 = vmatpush1.msra.mxu0 %v198
  %303 = vmatprep.subr.mxu0 0.0
  %304 = vmatpush2.msra.mxu0 0.0
  %305 = vmatprep.subr.mxu0 0.0
  %306 = vmatpush2.msra.mxu0 0.0
  %307 = vmatprep.subr.mxu0 0.0
  %308 = vmatpush2.msra.mxu0 0.0
  %309 = vmatprep.subr.mxu0 0.0
  %310 = vmatpush2.msra.mxu0 0.0
  %311 = vmatprep.subr.mxu0 0.0
  %312 = vmatpush2.msra.mxu0 0.0
  %313 = vmatprep.subr.mxu0 0.0
  %314 = vmatpush2.msra.mxu0 0.0
  %315 = vmatprep.subr.mxu0 0.0
  %316 = vmatpush2.msra.mxu0 0.0
  %317 = vmatprep.subr.mxu0 0.0
  %318 = vmatpush2.msra.mxu0 0.0
  %319 = vmatprep.subr.mxu0 %v245
  %320 = vmatpush2.msra.mxu0 %v244
  %321 = vmatprep.subr.mxu0 %v243
  %322 = vmatpush2.msra.mxu0 %v242
  %323 = vmatprep.subr.mxu0 %v241
  %324 = vmatpush2.msra.mxu0 %v240
  %325 = vmatprep.subr.mxu0 %v239
  %326 = vmatpush2.msra.mxu0 %v238
  %327 = vmatprep.subr.mxu0 %v237
  %328 = vmatpush2.msra.mxu0 %v236
  %329 = vmatprep.subr.mxu0 %v235
  %330 = vmatpush2.msra.mxu0 %v234
  %331 = vmatprep.subr.mxu0 %v233
  %332 = vmatpush2.msra.mxu0 %v232
  %333 = vmatprep.subr.mxu0 %v231
  %334 = vmatpush2.msra.mxu0 %v230
  %335 = vmatprep.mubr.f32.mxu0 %v248
  %336 = vmatmul.mubr.f32.gmra.mxu0 0.0
  %v337 = vpop.f32.mrf.mxu0
  %v338 = vadd.f32 0.0, %v337
  %v339 = vpop.f32.mrf.mxu0
  %v340 = vadd.f32 0.0, %v339
  %341 = vmatprep.mubr.f32.mxu0 %v251
  %342 = vmatmul.mubr.f32.gmra.mxu0 %v180
  %v343 = vpop.f32.mrf.mxu0
  %v344 = vadd.f32 0.0, %v343
  %v345 = vpop.f32.mrf.mxu0
  %v346 = vadd.f32 0.0, %v345
  %347 = vmatprep.mubr.f32.mxu0 %v254
  %348 = vmatmul.mubr.f32.gmra.mxu0 %v182
  %v349 = vpop.f32.mrf.mxu0
  %v350 = vadd.f32 0.0, %v349
  %v351 = vpop.f32.mrf.mxu0
  %v352 = vadd.f32 0.0, %v351
  %353 = vmatprep.mubr.f32.mxu0 %v257
  %354 = vmatmul.mubr.f32.gmra.mxu0 %v184
  %v355 = vpop.f32.mrf.mxu0
  %v356 = vadd.f32 0.0, %v355
  %v357 = vpop.f32.mrf.mxu0
  %v358 = vadd.f32 0.0, %v357
  %359 = vmatprep.mubr.f32.mxu0 %v260
  %360 = vmatmul.mubr.f32.gmra.mxu0 %v186
  %v361 = vpop.f32.mrf.mxu0
  %v362 = vadd.f32 0.0, %v361
  %v363 = vpop.f32.mrf.mxu0
  %v364 = vadd.f32 0.0, %v363
  %365 = vmatprep.mubr.f32.mxu0 %v263
  %366 = vmatmul.mubr.f32.gmra.mxu0 %v188
  %v367 = vpop.f32.mrf.mxu0
  %v368 = vadd.f32 0.0, %v367
  %v369 = vpop.f32.mrf.mxu0
  %v370 = vadd.f32 0.0, %v369
  %371 = vmatprep.mubr.f32.mxu0 %v266
  %372 = vmatmul.mubr.f32.gmra.mxu0 %v190
  %v373 = vpop.f32.mrf.mxu0
  %v374 = vadd.f32 0.0, %v373
  %v375 = vpop.f32.mrf.mxu0
  %v376 = vadd.f32 0.0, %v375
  %377 = vmatprep.mubr.f32.mxu0 %v269
  %378 = vmatmul.mubr.f32.gmra.mxu0 %v192
  %v379 = vpop.f32.mrf.mxu0
  %v380 = vadd.f32 0.0, %v379
  %v381 = vpop.f32.mrf.mxu0
  %v382 = vadd.f32 0.0, %v381
  %383 = vdwg.mxu0
  %v385 = vlaneseq
  %v386 = vshrl.u32 %v385, 7
  %v387 = vsub.s32 0, %v386
  %v388 = vrot.slane %v197, %v387
  %v389 = vlaneseq
  %v390 = vshrl.u32 %v389, 7
  %v391 = vsub.s32 1, %v390
  %v392 = vrot.slane %v197, %v391
  %v395 = vadd.f32 %v388, %v338
  %v396 = vadd.f32 %v392, %v340
  %v397 = vadd.f32 %v388, %v344
  %v398 = vadd.f32 %v392, %v346
  %v399 = vadd.f32 %v388, %v350
  %v400 = vadd.f32 %v392, %v352
  %v401 = vadd.f32 %v388, %v356
  %v402 = vadd.f32 %v392, %v358
  %v403 = vadd.f32 %v388, %v362
  %v404 = vadd.f32 %v392, %v364
  %v405 = vadd.f32 %v388, %v368
  %v406 = vadd.f32 %v392, %v370
  %v407 = vadd.f32 %v388, %v374
  %v408 = vadd.f32 %v392, %v376
  %v409 = vadd.f32 %v388, %v380
  %v410 = vadd.f32 %v392, %v382
  %v411 = vld [vmem:[%s2 + $0x180] sm:$0xff]
  %v412 = vld [vmem:[%s2 + $0x188] sm:$0xff]
  %v413 = vld [vmem:[%s2 + $0x190] sm:$0xff]
  %v414 = vld [vmem:[%s2 + $0x198] sm:$0xff]
  %v415 = vld [vmem:[%s2 + $0x1a0] sm:$0xff]
  %v416 = vld [vmem:[%s2 + $0x1a8] sm:$0xff]
  %v417 = vld [vmem:[%s2 + $0x1b0] sm:$0xff]
  %v418 = vld [vmem:[%s2 + $0x1b8] sm:$0xff]
  %v419 = vld [vmem:[%s2 + $0x1c0] sm:$0xff]
  %v420 = vld [vmem:[%s2 + $0x1c8] sm:$0xff]
  %v421 = vld [vmem:[%s2 + $0x1d0] sm:$0xff]
  %v422 = vld [vmem:[%s2 + $0x1d8] sm:$0xff]
  %v423 = vld [vmem:[%s2 + $0x1e0] sm:$0xff]
  %v424 = vld [vmem:[%s2 + $0x1e8] sm:$0xff]
  %v425 = vld [vmem:[%s2 + $0x1f0] sm:$0xff]
  %v426 = vld [vmem:[%s2 + $0x1f8] sm:$0xff]
  %v427 = vld [vmem:[%s2 + $0x200] sm:$0xff]
  %v428 = vld [vmem:[%s2 + $0x208] sm:$0xff]
  %v429 = vld [vmem:[%s2 + $0x210] sm:$0xff]
  %v430 = vld [vmem:[%s2 + $0x218] sm:$0xff]
  %v431 = vld [vmem:[%s2 + $0x220] sm:$0xff]
  %v432 = vld [vmem:[%s2 + $0x228] sm:$0xff]
  %v433 = vld [vmem:[%s2 + $0x230] sm:$0xff]
  %v434 = vld [vmem:[%s2 + $0x238] sm:$0xff]
  %v435 = vld [vmem:[%s2 + $0x240] sm:$0xff]
  %v436 = vld [vmem:[%s2 + $0x248] sm:$0xff]
  %v437 = vld [vmem:[%s2 + $0x250] sm:$0xff]
  %v438 = vld [vmem:[%s2 + $0x258] sm:$0xff]
  %v439 = vld [vmem:[%s2 + $0x260] sm:$0xff]
  %v440 = vld [vmem:[%s2 + $0x268] sm:$0xff]
  %v441 = vld [vmem:[%s2 + $0x270] sm:$0xff]
  %v442 = vld [vmem:[%s2 + $0x278] sm:$0xff]
  %v443 = vld [vmem:[%s2 + $0x280] sm:$0xff]
  %v444 = vld [vmem:[%s2 + $0x288] sm:$0xff]
  %v445 = vld [vmem:[%s2 + $0x290] sm:$0xff]
  %v446 = vld [vmem:[%s2 + $0x298] sm:$0xff]
  %v447 = vld [vmem:[%s2 + $0x2a0] sm:$0xff]
  %v448 = vld [vmem:[%s2 + $0x2a8] sm:$0xff]
  %v449 = vld [vmem:[%s2 + $0x2b0] sm:$0xff]
  %v450 = vld [vmem:[%s2 + $0x2b8] sm:$0xff]
  %v451 = vld [vmem:[%s2 + $0x2c0] sm:$0xff]
  %v452 = vld [vmem:[%s2 + $0x2c8] sm:$0xff]
  %v453 = vld [vmem:[%s2 + $0x2d0] sm:$0xff]
  %v454 = vld [vmem:[%s2 + $0x2d8] sm:$0xff]
  %v455 = vld [vmem:[%s2 + $0x2e0] sm:$0xff]
  %v456 = vld [vmem:[%s2 + $0x2e8] sm:$0xff]
  %v457 = vld [vmem:[%s2 + $0x2f0] sm:$0xff]
  %v458 = vld [vmem:[%s2 + $0x2f8] sm:$0xff]
  %v460 = vsel %vm246, %v195, 0
  %462 = vmatprep.subr.mxu0 %v442
  %463 = vmatpush1.msra.mxu0 %v441
  %464 = vmatprep.subr.mxu0 %v440
  %465 = vmatpush1.msra.mxu0 %v439
  %466 = vmatprep.subr.mxu0 %v438
  %467 = vmatpush1.msra.mxu0 %v437
  %468 = vmatprep.subr.mxu0 %v436
  %469 = vmatpush1.msra.mxu0 %v435
  %470 = vmatprep.subr.mxu0 %v434
  %471 = vmatpush1.msra.mxu0 %v433
  %472 = vmatprep.subr.mxu0 %v432
  %473 = vmatpush1.msra.mxu0 %v431
  %474 = vmatprep.subr.mxu0 %v430
  %475 = vmatpush1.msra.mxu0 %v429
  %476 = vmatprep.subr.mxu0 %v428
  %477 = vmatpush1.msra.mxu0 %v427
  %478 = vmatprep.subr.mxu0 %v426
  %479 = vmatpush1.msra.mxu0 %v425
  %480 = vmatprep.subr.mxu0 %v424
  %481 = vmatpush1.msra.mxu0 %v423
  %482 = vmatprep.subr.mxu0 %v422
  %483 = vmatpush1.msra.mxu0 %v421
  %484 = vmatprep.subr.mxu0 %v420
  %485 = vmatpush1.msra.mxu0 %v419
  %486 = vmatprep.subr.mxu0 %v418
  %487 = vmatpush1.msra.mxu0 %v417
  %488 = vmatprep.subr.mxu0 %v416
  %489 = vmatpush1.msra.mxu0 %v415
  %490 = vmatprep.subr.mxu0 %v414
  %491 = vmatpush1.msra.mxu0 %v413
  %492 = vmatprep.subr.mxu0 %v412
  %493 = vmatpush1.msra.mxu0 %v411
  %494 = vmatprep.subr.mxu0 0.0
  %495 = vmatpush2.msra.mxu0 0.0
  %496 = vmatprep.subr.mxu0 0.0
  %497 = vmatpush2.msra.mxu0 0.0
  %498 = vmatprep.subr.mxu0 0.0
  %499 = vmatpush2.msra.mxu0 0.0
  %500 = vmatprep.subr.mxu0 0.0
  %501 = vmatpush2.msra.mxu0 0.0
  %502 = vmatprep.subr.mxu0 0.0
  %503 = vmatpush2.msra.mxu0 0.0
  %504 = vmatprep.subr.mxu0 0.0
  %505 = vmatpush2.msra.mxu0 0.0
  %506 = vmatprep.subr.mxu0 0.0
  %507 = vmatpush2.msra.mxu0 0.0
  %508 = vmatprep.subr.mxu0 0.0
  %509 = vmatpush2.msra.mxu0 0.0
  %510 = vmatprep.subr.mxu0 %v458
  %511 = vmatpush2.msra.mxu0 %v457
  %512 = vmatprep.subr.mxu0 %v456
  %513 = vmatpush2.msra.mxu0 %v455
  %514 = vmatprep.subr.mxu0 %v454
  %515 = vmatpush2.msra.mxu0 %v453
  %516 = vmatprep.subr.mxu0 %v452
  %517 = vmatpush2.msra.mxu0 %v451
  %518 = vmatprep.subr.mxu0 %v450
  %519 = vmatpush2.msra.mxu0 %v449
  %520 = vmatprep.subr.mxu0 %v448
  %521 = vmatpush2.msra.mxu0 %v447
  %522 = vmatprep.subr.mxu0 %v446
  %523 = vmatpush2.msra.mxu0 %v445
  %524 = vmatprep.subr.mxu0 %v444
  %525 = vmatpush2.msra.mxu0 %v443
  %526 = vmatprep.mubr.f32.mxu0 %v251
  %527 = vmatmul.mubr.f32.gmra.mxu0 %v180
  %v528 = vpop.f32.mrf.mxu0
  %v529 = vadd.f32 0.0, %v528
  %v530 = vpop.f32.mrf.mxu0
  %v531 = vadd.f32 0.0, %v530
  %532 = vmatprep.mubr.f32.mxu0 %v254
  %533 = vmatmul.mubr.f32.gmra.mxu0 %v182
  %v534 = vpop.f32.mrf.mxu0
  %v535 = vadd.f32 0.0, %v534
  %v536 = vpop.f32.mrf.mxu0
  %v537 = vadd.f32 0.0, %v536
  %538 = vmatprep.mubr.f32.mxu0 %v257
  %539 = vmatmul.mubr.f32.gmra.mxu0 %v184
  %v540 = vpop.f32.mrf.mxu0
  %v541 = vadd.f32 0.0, %v540
  %v542 = vpop.f32.mrf.mxu0
  %v543 = vadd.f32 0.0, %v542
  %544 = vmatprep.mubr.f32.mxu0 %v260
  %545 = vmatmul.mubr.f32.gmra.mxu0 %v186
  %v546 = vpop.f32.mrf.mxu0
  %v547 = vadd.f32 0.0, %v546
  %v548 = vpop.f32.mrf.mxu0
  %v549 = vadd.f32 0.0, %v548
  %550 = vmatprep.mubr.f32.mxu0 %v263
  %551 = vmatmul.mubr.f32.gmra.mxu0 %v188
  %v552 = vpop.f32.mrf.mxu0
  %v553 = vadd.f32 0.0, %v552
  %v554 = vpop.f32.mrf.mxu0
  %v555 = vadd.f32 0.0, %v554
  %556 = vmatprep.mubr.f32.mxu0 %v266
  %557 = vmatmul.mubr.f32.gmra.mxu0 %v190
  %v558 = vpop.f32.mrf.mxu0
  %v559 = vadd.f32 0.0, %v558
  %v560 = vpop.f32.mrf.mxu0
  %v561 = vadd.f32 0.0, %v560
  %562 = vmatprep.mubr.f32.mxu0 %v269
  %563 = vmatmul.mubr.f32.gmra.mxu0 %v192
  %v564 = vpop.f32.mrf.mxu0
  %v565 = vadd.f32 0.0, %v564
  %v566 = vpop.f32.mrf.mxu0
  %v567 = vadd.f32 0.0, %v566
  %568 = vmatprep.mubr.f32.mxu0 %v460
  %569 = vmatmul.mubr.f32.gmra.mxu0 %v194
  %v570 = vpop.f32.mrf.mxu0
  %v571 = vadd.f32 0.0, %v570
  %v572 = vpop.f32.mrf.mxu0
  %v573 = vadd.f32 0.0, %v572
  %574 = vdwg.mxu0
  %v575 = vadd.f32 %v395, %v529
  %v576 = vadd.f32 %v396, %v531
  %v577 = vadd.f32 %v397, %v535
  %v578 = vadd.f32 %v398, %v537
  %v579 = vadd.f32 %v399, %v541
  %v580 = vadd.f32 %v400, %v543
  %v581 = vadd.f32 %v401, %v547
  %v582 = vadd.f32 %v402, %v549
  %v583 = vadd.f32 %v403, %v553
  %v584 = vadd.f32 %v404, %v555
  %v585 = vadd.f32 %v405, %v559
  %v586 = vadd.f32 %v406, %v561
  %v587 = vadd.f32 %v407, %v565
  %v588 = vadd.f32 %v408, %v567
  %v589 = vadd.f32 %v409, %v571
  %v590 = vadd.f32 %v410, %v573
  %v591 = vld [vmem:[%s2 + $0x300] sm:$0xff]
  %v592 = vld [vmem:[%s2 + $0x308] sm:$0xff]
  %v593 = vld [vmem:[%s2 + $0x310] sm:$0xff]
  %v594 = vld [vmem:[%s2 + $0x318] sm:$0xff]
  %v595 = vld [vmem:[%s2 + $0x320] sm:$0xff]
  %v596 = vld [vmem:[%s2 + $0x328] sm:$0xff]
  %v597 = vld [vmem:[%s2 + $0x330] sm:$0xff]
  %v598 = vld [vmem:[%s2 + $0x338] sm:$0xff]
  %v599 = vld [vmem:[%s2 + $0x340] sm:$0xff]
  %v600 = vld [vmem:[%s2 + $0x348] sm:$0xff]
  %v601 = vld [vmem:[%s2 + $0x350] sm:$0xff]
  %v602 = vld [vmem:[%s2 + $0x358] sm:$0xff]
  %v603 = vld [vmem:[%s2 + $0x360] sm:$0xff]
  %v604 = vld [vmem:[%s2 + $0x368] sm:$0xff]
  %v605 = vld [vmem:[%s2 + $0x370] sm:$0xff]
  %v606 = vld [vmem:[%s2 + $0x378] sm:$0xff]
  %v607 = vld [vmem:[%s2 + $0x380] sm:$0xff]
  %v608 = vld [vmem:[%s2 + $0x388] sm:$0xff]
  %v609 = vld [vmem:[%s2 + $0x390] sm:$0xff]
  %v610 = vld [vmem:[%s2 + $0x398] sm:$0xff]
  %v611 = vld [vmem:[%s2 + $0x3a0] sm:$0xff]
  %v612 = vld [vmem:[%s2 + $0x3a8] sm:$0xff]
  %v613 = vld [vmem:[%s2 + $0x3b0] sm:$0xff]
  %v614 = vld [vmem:[%s2 + $0x3b8] sm:$0xff]
  %v615 = vld [vmem:[%s2 + $0x3c0] sm:$0xff]
  %v616 = vld [vmem:[%s2 + $0x3c8] sm:$0xff]
  %v617 = vld [vmem:[%s2 + $0x3d0] sm:$0xff]
  %v618 = vld [vmem:[%s2 + $0x3d8] sm:$0xff]
  %v619 = vld [vmem:[%s2 + $0x3e0] sm:$0xff]
  %v620 = vld [vmem:[%s2 + $0x3e8] sm:$0xff]
  %v621 = vld [vmem:[%s2 + $0x3f0] sm:$0xff]
  %v622 = vld [vmem:[%s2 + $0x3f8] sm:$0xff]
  %v623 = vld [vmem:[%s2 + $0x400] sm:$0xff]
  %v624 = vld [vmem:[%s2 + $0x408] sm:$0xff]
  %v625 = vld [vmem:[%s2 + $0x410] sm:$0xff]
  %v626 = vld [vmem:[%s2 + $0x418] sm:$0xff]
  %v627 = vld [vmem:[%s2 + $0x420] sm:$0xff]
  %v628 = vld [vmem:[%s2 + $0x428] sm:$0xff]
  %v629 = vld [vmem:[%s2 + $0x430] sm:$0xff]
  %v630 = vld [vmem:[%s2 + $0x438] sm:$0xff]
  %v631 = vld [vmem:[%s2 + $0x440] sm:$0xff]
  %v632 = vld [vmem:[%s2 + $0x448] sm:$0xff]
  %v633 = vld [vmem:[%s2 + $0x450] sm:$0xff]
  %v634 = vld [vmem:[%s2 + $0x458] sm:$0xff]
  %v635 = vld [vmem:[%s2 + $0x460] sm:$0xff]
  %v636 = vld [vmem:[%s2 + $0x468] sm:$0xff]
  %v637 = vld [vmem:[%s2 + $0x470] sm:$0xff]
  %v638 = vld [vmem:[%s2 + $0x478] sm:$0xff]
  %639 = vmatprep.subr.mxu0 %v622
  %640 = vmatpush1.msra.mxu0 %v621
  %641 = vmatprep.subr.mxu0 %v620
  %642 = vmatpush1.msra.mxu0 %v619
  %643 = vmatprep.subr.mxu0 %v618
  %644 = vmatpush1.msra.mxu0 %v617
  %645 = vmatprep.subr.mxu0 %v616
  %646 = vmatpush1.msra.mxu0 %v615
  %647 = vmatprep.subr.mxu0 %v614
  %648 = vmatpush1.msra.mxu0 %v613
  %649 = vmatprep.subr.mxu0 %v612
  %650 = vmatpush1.msra.mxu0 %v611
  %651 = vmatprep.subr.mxu0 %v610
  %652 = vmatpush1.msra.mxu0 %v609
  %653 = vmatprep.subr.mxu0 %v608
  %654 = vmatpush1.msra.mxu0 %v607
  %655 = vmatprep.subr.mxu0 %v606
  %656 = vmatpush1.msra.mxu0 %v605
  %657 = vmatprep.subr.mxu0 %v604
  %658 = vmatpush1.msra.mxu0 %v603
  %659 = vmatprep.subr.mxu0 %v602
  %660 = vmatpush1.msra.mxu0 %v601
  %661 = vmatprep.subr.mxu0 %v600
  %662 = vmatpush1.msra.mxu0 %v599
  %663 = vmatprep.subr.mxu0 %v598
  %664 = vmatpush1.msra.mxu0 %v597
  %665 = vmatprep.subr.mxu0 %v596
  %666 = vmatpush1.msra.mxu0 %v595
  %667 = vmatprep.subr.mxu0 %v594
  %668 = vmatpush1.msra.mxu0 %v593
  %669 = vmatprep.subr.mxu0 %v592
  %670 = vmatpush1.msra.mxu0 %v591
  %671 = vmatprep.subr.mxu0 0.0
  %672 = vmatpush2.msra.mxu0 0.0
  %673 = vmatprep.subr.mxu0 0.0
  %674 = vmatpush2.msra.mxu0 0.0
  %675 = vmatprep.subr.mxu0 0.0
  %676 = vmatpush2.msra.mxu0 0.0
  %677 = vmatprep.subr.mxu0 0.0
  %678 = vmatpush2.msra.mxu0 0.0
  %679 = vmatprep.subr.mxu0 0.0
  %680 = vmatpush2.msra.mxu0 0.0
  %681 = vmatprep.subr.mxu0 0.0
  %682 = vmatpush2.msra.mxu0 0.0
  %683 = vmatprep.subr.mxu0 0.0
  %684 = vmatpush2.msra.mxu0 0.0
  %685 = vmatprep.subr.mxu0 0.0
  %686 = vmatpush2.msra.mxu0 0.0
  %687 = vmatprep.subr.mxu0 %v638
  %688 = vmatpush2.msra.mxu0 %v637
  %689 = vmatprep.subr.mxu0 %v636
  %690 = vmatpush2.msra.mxu0 %v635
  %691 = vmatprep.subr.mxu0 %v634
  %692 = vmatpush2.msra.mxu0 %v633
  %693 = vmatprep.subr.mxu0 %v632
  %694 = vmatpush2.msra.mxu0 %v631
  %695 = vmatprep.subr.mxu0 %v630
  %696 = vmatpush2.msra.mxu0 %v629
  %697 = vmatprep.subr.mxu0 %v628
  %698 = vmatpush2.msra.mxu0 %v627
  %699 = vmatprep.subr.mxu0 %v626
  %700 = vmatpush2.msra.mxu0 %v625
  %701 = vmatprep.subr.mxu0 %v624
  %702 = vmatpush2.msra.mxu0 %v623
  %703 = vmatprep.mubr.f32.mxu0 %v254
  %704 = vmatmul.mubr.f32.gmra.mxu0 %v182
  %v705 = vpop.f32.mrf.mxu0
  %v706 = vadd.f32 0.0, %v705
  %v707 = vpop.f32.mrf.mxu0
  %v708 = vadd.f32 0.0, %v707
  %709 = vmatprep.mubr.f32.mxu0 %v257
  %710 = vmatmul.mubr.f32.gmra.mxu0 %v184
  %v711 = vpop.f32.mrf.mxu0
  %v712 = vadd.f32 0.0, %v711
  %v713 = vpop.f32.mrf.mxu0
  %v714 = vadd.f32 0.0, %v713
  %715 = vmatprep.mubr.f32.mxu0 %v260
  %716 = vmatmul.mubr.f32.gmra.mxu0 %v186
  %v717 = vpop.f32.mrf.mxu0
  %v718 = vadd.f32 0.0, %v717
  %v719 = vpop.f32.mrf.mxu0
  %v720 = vadd.f32 0.0, %v719
  %721 = vmatprep.mubr.f32.mxu0 %v263
  %722 = vmatmul.mubr.f32.gmra.mxu0 %v188
  %v723 = vpop.f32.mrf.mxu0
  %v724 = vadd.f32 0.0, %v723
  %v725 = vpop.f32.mrf.mxu0
  %v726 = vadd.f32 0.0, %v725
  %727 = vmatprep.mubr.f32.mxu0 %v266
  %728 = vmatmul.mubr.f32.gmra.mxu0 %v190
  %v729 = vpop.f32.mrf.mxu0
  %v730 = vadd.f32 0.0, %v729
  %v731 = vpop.f32.mrf.mxu0
  %v732 = vadd.f32 0.0, %v731
  %733 = vmatprep.mubr.f32.mxu0 %v269
  %734 = vmatmul.mubr.f32.gmra.mxu0 %v192
  %v735 = vpop.f32.mrf.mxu0
  %v736 = vadd.f32 0.0, %v735
  %v737 = vpop.f32.mrf.mxu0
  %v738 = vadd.f32 0.0, %v737
  %739 = vmatprep.mubr.f32.mxu0 %v460
  %740 = vmatmul.mubr.f32.gmra.mxu0 %v194
  %v741 = vpop.f32.mrf.mxu0
  %v742 = vadd.f32 0.0, %v741
  %v743 = vpop.f32.mrf.mxu0
  %v744 = vadd.f32 0.0, %v743
  %745 = vmatprep.mubr.f32.mxu0 %v248
  %746 = vmatmul.mubr.f32.gmra.mxu0 0.0
  %v747 = vpop.f32.mrf.mxu0
  %v748 = vadd.f32 0.0, %v747
  %v749 = vpop.f32.mrf.mxu0
  %v750 = vadd.f32 0.0, %v749
  %751 = vdwg.mxu0
  %v752 = vadd.f32 %v575, %v706
  %v753 = vadd.f32 %v576, %v708
  %v754 = vadd.f32 %v577, %v712
  %v755 = vadd.f32 %v578, %v714
  %v756 = vadd.f32 %v579, %v718
  %v757 = vadd.f32 %v580, %v720
  %v758 = vadd.f32 %v581, %v724
  %v759 = vadd.f32 %v582, %v726
  %v760 = vadd.f32 %v583, %v730
  %v761 = vadd.f32 %v584, %v732
  %v762 = vadd.f32 %v585, %v736
  %v763 = vadd.f32 %v586, %v738
  %v764 = vadd.f32 %v587, %v742
  %v765 = vadd.f32 %v588, %v744
  %v766 = vadd.f32 %v589, %v748
  %v767 = vadd.f32 %v590, %v750
  %v768 = vmax.f32 %v752, 0.0
  %v769 = vmax.f32 %v753, 0.0
  %v770 = vmax.f32 %v754, 0.0
  %v771 = vmax.f32 %v755, 0.0
  %v772 = vmax.f32 %v756, 0.0
  %v773 = vmax.f32 %v757, 0.0
  %v774 = vmax.f32 %v758, 0.0
  %v775 = vmax.f32 %v759, 0.0
  %v776 = vmax.f32 %v760, 0.0
  %v777 = vmax.f32 %v761, 0.0
  %v778 = vmax.f32 %v762, 0.0
  %v779 = vmax.f32 %v763, 0.0
  %v780 = vmax.f32 %v764, 0.0
  %v781 = vmax.f32 %v765, 0.0
  %v782 = vmax.f32 %v766, 0.0
  %v783 = vmax.f32 %v767, 0.0
  %v784 = vld [vmem:[%s1] sm:$0xff]
  %v785 = vld [vmem:[%s1 + $0x8] sm:$0xff]
  %v786 = vld [vmem:[%s1 + $0x10] sm:$0xff]
  %v787 = vld [vmem:[%s1 + $0x18] sm:$0xff]
  %v788 = vld [vmem:[%s1 + $0x20] sm:$0xff]
  %v789 = vld [vmem:[%s1 + $0x28] sm:$0xff]
  %v790 = vld [vmem:[%s1 + $0x30] sm:$0xff]
  %v791 = vld [vmem:[%s1 + $0x38] sm:$0xff]
  %v792 = vld [vmem:[%s1 + $0x40] sm:$0xff]
  %v793 = vld [vmem:[%s1 + $0x48] sm:$0xff]
  %v794 = vld [vmem:[%s1 + $0x50] sm:$0xff]
  %v795 = vld [vmem:[%s1 + $0x58] sm:$0xff]
  %v796 = vld [vmem:[%s1 + $0x60] sm:$0xff]
  %v797 = vld [vmem:[%s1 + $0x68] sm:$0xff]
  %v798 = vld [vmem:[%s1 + $0x70] sm:$0xff]
  %v799 = vld [vmem:[%s1 + $0x78] sm:$0xff]
  %v800 = vld [vmem:[%s1 + $0x80] sm:$0xff]
  %v801 = vld [vmem:[%s1 + $0x88] sm:$0xff]
  %v802 = vld [vmem:[%s1 + $0x90] sm:$0xff]
  %v803 = vld [vmem:[%s1 + $0x98] sm:$0xff]
  %v804 = vld [vmem:[%s1 + $0xa0] sm:$0xff]
  %v805 = vld [vmem:[%s1 + $0xa8] sm:$0xff]
  %v806 = vld [vmem:[%s1 + $0xb0] sm:$0xff]
  %v807 = vld [vmem:[%s1 + $0xb8] sm:$0xff]
  %v808 = vld [vmem:[%s1 + $0xc0] sm:$0xff]
  %v809 = vld [vmem:[%s1 + $0xc8] sm:$0xff]
  %v810 = vld [vmem:[%s1 + $0xd0] sm:$0xff]
  %v811 = vld [vmem:[%s1 + $0xd8] sm:$0xff]
  %v812 = vld [vmem:[%s1 + $0xe0] sm:$0xff]
  %v813 = vld [vmem:[%s1 + $0xe8] sm:$0xff]
  %v814 = vld [vmem:[%s1 + $0xf0] sm:$0xff]
  %v815 = vld [vmem:[%s1 + $0xf8] sm:$0xff]
  %v816 = vld [vmem:[%s1 + $0x100] sm:$0xff]
  %v817 = vld [vmem:[%s1 + $0x108] sm:$0xff]
  %v818 = vld [vmem:[%s1 + $0x110] sm:$0xff]
  %v819 = vld [vmem:[%s1 + $0x118] sm:$0xff]
  %v820 = vld [vmem:[%s1 + $0x120] sm:$0xff]
  %v821 = vld [vmem:[%s1 + $0x128] sm:$0xff]
  %v822 = vld [vmem:[%s1 + $0x130] sm:$0xff]
  %v823 = vld [vmem:[%s1 + $0x138] sm:$0xff]
  %v824 = vld [vmem:[%s1 + $0x140] sm:$0xff]
  %v825 = vld [vmem:[%s1 + $0x148] sm:$0xff]
  %v826 = vld [vmem:[%s1 + $0x150] sm:$0xff]
  %v827 = vld [vmem:[%s1 + $0x158] sm:$0xff]
  %v828 = vld [vmem:[%s1 + $0x160] sm:$0xff]
  %v829 = vld [vmem:[%s1 + $0x168] sm:$0xff]
  %v830 = vld [vmem:[%s1 + $0x170] sm:$0xff]
  %v831 = vld [vmem:[%s1 + $0x178] sm:$0xff]
  %v832 = vld [vmem:[%s1 + $0x180] sm:$0xff]
  %v833 = vld [vmem:[%s1 + $0x188] sm:$0xff]
  %v834 = vld [vmem:[%s1 + $0x190] sm:$0xff]
  %v835 = vld [vmem:[%s1 + $0x198] sm:$0xff]
  %v836 = vld [vmem:[%s1 + $0x1a0] sm:$0xff]
  %v837 = vld [vmem:[%s1 + $0x1a8] sm:$0xff]
  %v838 = vld [vmem:[%s1 + $0x1b0] sm:$0xff]
  %v839 = vld [vmem:[%s1 + $0x1b8] sm:$0xff]
  %v840 = vld [vmem:[%s1 + $0x1c0] sm:$0xff]
  %v841 = vld [vmem:[%s1 + $0x1c8] sm:$0xff]
  %v842 = vld [vmem:[%s1 + $0x1d0] sm:$0xff]
  %v843 = vld [vmem:[%s1 + $0x1d8] sm:$0xff]
  %v844 = vld [vmem:[%s1 + $0x1e0] sm:$0xff]
  %v845 = vld [vmem:[%s1 + $0x1e8] sm:$0xff]
  %v846 = vld [vmem:[%s1 + $0x1f0] sm:$0xff]
  %v847 = vld [vmem:[%s1 + $0x1f8] sm:$0xff]
  %v848 = vld [vmem:[%s1 + $0x200] sm:$0xff]
  %v849 = vld [vmem:[%s1 + $0x208] sm:$0xff]
  %v850 = vld [vmem:[%s1 + $0x210] sm:$0xff]
  %v851 = vld [vmem:[%s1 + $0x218] sm:$0xff]
  %v852 = vld [vmem:[%s1 + $0x220] sm:$0xff]
  %v853 = vld [vmem:[%s1 + $0x228] sm:$0xff]
  %v854 = vld [vmem:[%s1 + $0x230] sm:$0xff]
  %v855 = vld [vmem:[%s1 + $0x238] sm:$0xff]
  %v856 = vld [vmem:[%s1 + $0x240] sm:$0xff]
  %v857 = vld [vmem:[%s1 + $0x248] sm:$0xff]
  %v858 = vld [vmem:[%s1 + $0x250] sm:$0xff]
  %v859 = vld [vmem:[%s1 + $0x258] sm:$0xff]
  %v860 = vld [vmem:[%s1 + $0x260] sm:$0xff]
  %v861 = vld [vmem:[%s1 + $0x268] sm:$0xff]
  %v862 = vld [vmem:[%s1 + $0x270] sm:$0xff]
  %v863 = vld [vmem:[%s1 + $0x278] sm:$0xff]
  %v864 = vld [vmem:[%s1 + $0x280] sm:$0xff]
  %v865 = vld [vmem:[%s1 + $0x288] sm:$0xff]
  %v866 = vld [vmem:[%s1 + $0x290] sm:$0xff]
  %v867 = vld [vmem:[%s1 + $0x298] sm:$0xff]
  %v868 = vld [vmem:[%s1 + $0x2a0] sm:$0xff]
  %v869 = vld [vmem:[%s1 + $0x2a8] sm:$0xff]
  %v870 = vld [vmem:[%s1 + $0x2b0] sm:$0xff]
  %v871 = vld [vmem:[%s1 + $0x2b8] sm:$0xff]
  %v872 = vld [vmem:[%s1 + $0x2c0] sm:$0xff]
  %v873 = vld [vmem:[%s1 + $0x2c8] sm:$0xff]
  %v874 = vld [vmem:[%s1 + $0x2d0] sm:$0xff]
  %v875 = vld [vmem:[%s1 + $0x2d8] sm:$0xff]
  %v876 = vld [vmem:[%s1 + $0x2e0] sm:$0xff]
  %v877 = vld [vmem:[%s1 + $0x2e8] sm:$0xff]
  %v878 = vld [vmem:[%s1 + $0x2f0] sm:$0xff]
  %v879 = vld [vmem:[%s1 + $0x2f8] sm:$0xff]
  %s880 = scalar_lea.vmem %s1, 1280
  %v881 = vld [vmem:[%s880] ss:$8 sm:$0xf]
  %v883 = vlaneseq
  %v884 = vshrl.u32 %v883, 7
  %v885 = vsub.s32 0, %v884
  %v886 = vrot.slane %v881, %v885
  %v887 = vlaneseq
  %v888 = vshrl.u32 %v887, 7
  %v889 = vsub.s32 1, %v888
  %v890 = vrot.slane %v881, %v889
  %v891 = vlaneseq
  %v892 = vshrl.u32 %v891, 7
  %v893 = vsub.s32 2, %v892
  %v894 = vrot.slane %v881, %v893
  %v895 = vlaneseq
  %v896 = vshrl.u32 %v895, 7
  %v897 = vsub.s32 3, %v896
  %v898 = vrot.slane %v881, %v897
  %v904 = vsel %vm246, %v769, 0
  %v907 = vsel %vm246, %v771, 0
  %v910 = vsel %vm246, %v773, 0
  %v913 = vsel %vm246, %v775, 0
  %v916 = vsel %vm246, %v777, 0
  %v919 = vsel %vm246, %v779, 0
  %v922 = vsel %vm246, %v781, 0
  %v925 = vsel %vm246, %v783, 0
  %927 = vmatprep.subr.mxu0 %v845
  %928 = vmatpush1.msra.mxu0 %v844
  %929 = vmatprep.subr.mxu0 %v841
  %930 = vmatpush1.msra.mxu0 %v840
  %931 = vmatprep.subr.mxu0 %v837
  %932 = vmatpush1.msra.mxu0 %v836
  %933 = vmatprep.subr.mxu0 %v833
  %934 = vmatpush1.msra.mxu0 %v832
  %935 = vmatprep.subr.mxu0 %v829
  %936 = vmatpush1.msra.mxu0 %v828
  %937 = vmatprep.subr.mxu0 %v825
  %938 = vmatpush1.msra.mxu0 %v824
  %939 = vmatprep.subr.mxu0 %v821
  %940 = vmatpush1.msra.mxu0 %v820
  %941 = vmatprep.subr.mxu0 %v817
  %942 = vmatpush1.msra.mxu0 %v816
  %943 = vmatprep.subr.mxu0 %v813
  %944 = vmatpush1.msra.mxu0 %v812
  %945 = vmatprep.subr.mxu0 %v809
  %946 = vmatpush1.msra.mxu0 %v808
  %947 = vmatprep.subr.mxu0 %v805
  %948 = vmatpush1.msra.mxu0 %v804
  %949 = vmatprep.subr.mxu0 %v801
  %950 = vmatpush1.msra.mxu0 %v800
  %951 = vmatprep.subr.mxu0 %v797
  %952 = vmatpush1.msra.mxu0 %v796
  %953 = vmatprep.subr.mxu0 %v793
  %954 = vmatpush1.msra.mxu0 %v792
  %955 = vmatprep.subr.mxu0 %v789
  %956 = vmatpush1.msra.mxu0 %v788
  %957 = vmatprep.subr.mxu0 %v785
  %958 = vmatpush1.msra.mxu0 %v784
  %959 = vmatprep.subr.mxu0 0.0
  %960 = vmatpush2.msra.mxu0 0.0
  %961 = vmatprep.subr.mxu0 0.0
  %962 = vmatpush2.msra.mxu0 0.0
  %963 = vmatprep.subr.mxu0 0.0
  %964 = vmatpush2.msra.mxu0 0.0
  %965 = vmatprep.subr.mxu0 0.0
  %966 = vmatpush2.msra.mxu0 0.0
  %967 = vmatprep.subr.mxu0 0.0
  %968 = vmatpush2.msra.mxu0 0.0
  %969 = vmatprep.subr.mxu0 0.0
  %970 = vmatpush2.msra.mxu0 0.0
  %971 = vmatprep.subr.mxu0 0.0
  %972 = vmatpush2.msra.mxu0 0.0
  %973 = vmatprep.subr.mxu0 0.0
  %974 = vmatpush2.msra.mxu0 0.0
  %975 = vmatprep.subr.mxu0 %v877
  %976 = vmatpush2.msra.mxu0 %v876
  %977 = vmatprep.subr.mxu0 %v873
  %978 = vmatpush2.msra.mxu0 %v872
  %979 = vmatprep.subr.mxu0 %v869
  %980 = vmatpush2.msra.mxu0 %v868
  %981 = vmatprep.subr.mxu0 %v865
  %982 = vmatpush2.msra.mxu0 %v864
  %983 = vmatprep.subr.mxu0 %v861
  %984 = vmatpush2.msra.mxu0 %v860
  %985 = vmatprep.subr.mxu0 %v857
  %986 = vmatpush2.msra.mxu0 %v856
  %987 = vmatprep.subr.mxu0 %v853
  %988 = vmatpush2.msra.mxu0 %v852
  %989 = vmatprep.subr.mxu0 %v849
  %990 = vmatpush2.msra.mxu0 %v848
  %991 = vmatprep.mubr.f32.mxu0 %v904
  %992 = vmatmul.mubr.f32.gmra.mxu0 %v768
  %v993 = vpop.f32.mrf.mxu0
  %v994 = vadd.f32 %v886, %v993
  %v995 = vpop.f32.mrf.mxu0
  %v996 = vadd.f32 %v890, %v995
  %997 = vmatprep.mubr.f32.mxu0 %v907
  %998 = vmatmul.mubr.f32.gmra.mxu0 %v770
  %v999 = vpop.f32.mrf.mxu0
  %v1000 = vadd.f32 %v886, %v999
  %v1001 = vpop.f32.mrf.mxu0
  %v1002 = vadd.f32 %v890, %v1001
  %1003 = vmatprep.mubr.f32.mxu0 %v910
  %1004 = vmatmul.mubr.f32.gmra.mxu0 %v772
  %v1005 = vpop.f32.mrf.mxu0
  %v1006 = vadd.f32 %v886, %v1005
  %v1007 = vpop.f32.mrf.mxu0
  %v1008 = vadd.f32 %v890, %v1007
  %1009 = vmatprep.mubr.f32.mxu0 %v913
  %1010 = vmatmul.mubr.f32.gmra.mxu0 %v774
  %v1011 = vpop.f32.mrf.mxu0
  %v1012 = vadd.f32 %v886, %v1011
  %v1013 = vpop.f32.mrf.mxu0
  %v1014 = vadd.f32 %v890, %v1013
  %1015 = vmatprep.mubr.f32.mxu0 %v916
  %1016 = vmatmul.mubr.f32.gmra.mxu0 %v776
  %v1017 = vpop.f32.mrf.mxu0
  %v1018 = vadd.f32 %v886, %v1017
  %v1019 = vpop.f32.mrf.mxu0
  %v1020 = vadd.f32 %v890, %v1019
  %1021 = vmatprep.mubr.f32.mxu0 %v919
  %1022 = vmatmul.mubr.f32.gmra.mxu0 %v778
  %v1023 = vpop.f32.mrf.mxu0
  %v1024 = vadd.f32 %v886, %v1023
  %v1025 = vpop.f32.mrf.mxu0
  %v1026 = vadd.f32 %v890, %v1025
  %1027 = vmatprep.mubr.f32.mxu0 %v922
  %1028 = vmatmul.mubr.f32.gmra.mxu0 %v780
  %v1029 = vpop.f32.mrf.mxu0
  %v1030 = vadd.f32 %v886, %v1029
  %v1031 = vpop.f32.mrf.mxu0
  %v1032 = vadd.f32 %v890, %v1031
  %1033 = vmatprep.mubr.f32.mxu0 %v925
  %1034 = vmatmul.mubr.f32.gmra.mxu0 %v782
  %v1035 = vpop.f32.mrf.mxu0
  %v1036 = vadd.f32 %v886, %v1035
  %v1037 = vpop.f32.mrf.mxu0
  %v1038 = vadd.f32 %v890, %v1037
  %1039 = vdwg.mxu0
  %1040 = vmatprep.subr.mxu0 %v847
  %1041 = vmatpush1.msra.mxu0 %v846
  %1042 = vmatprep.subr.mxu0 %v843
  %1043 = vmatpush1.msra.mxu0 %v842
  %1044 = vmatprep.subr.mxu0 %v839
  %1045 = vmatpush1.msra.mxu0 %v838
  %1046 = vmatprep.subr.mxu0 %v835
  %1047 = vmatpush1.msra.mxu0 %v834
  %1048 = vmatprep.subr.mxu0 %v831
  %1049 = vmatpush1.msra.mxu0 %v830
  %1050 = vmatprep.subr.mxu0 %v827
  %1051 = vmatpush1.msra.mxu0 %v826
  %1052 = vmatprep.subr.mxu0 %v823
  %1053 = vmatpush1.msra.mxu0 %v822
  %1054 = vmatprep.subr.mxu0 %v819
  %1055 = vmatpush1.msra.mxu0 %v818
  %1056 = vmatprep.subr.mxu0 %v815
  %1057 = vmatpush1.msra.mxu0 %v814
  %1058 = vmatprep.subr.mxu0 %v811
  %1059 = vmatpush1.msra.mxu0 %v810
  %1060 = vmatprep.subr.mxu0 %v807
  %1061 = vmatpush1.msra.mxu0 %v806
  %1062 = vmatprep.subr.mxu0 %v803
  %1063 = vmatpush1.msra.mxu0 %v802
  %1064 = vmatprep.subr.mxu0 %v799
  %1065 = vmatpush1.msra.mxu0 %v798
  %1066 = vmatprep.subr.mxu0 %v795
  %1067 = vmatpush1.msra.mxu0 %v794
  %1068 = vmatprep.subr.mxu0 %v791
  %1069 = vmatpush1.msra.mxu0 %v790
  %1070 = vmatprep.subr.mxu0 %v787
  %1071 = vmatpush1.msra.mxu0 %v786
  %1072 = vmatprep.subr.mxu0 0.0
  %1073 = vmatpush2.msra.mxu0 0.0
  %1074 = vmatprep.subr.mxu0 0.0
  %1075 = vmatpush2.msra.mxu0 0.0
  %1076 = vmatprep.subr.mxu0 0.0
  %1077 = vmatpush2.msra.mxu0 0.0
  %1078 = vmatprep.subr.mxu0 0.0
  %1079 = vmatpush2.msra.mxu0 0.0
  %1080 = vmatprep.subr.mxu0 0.0
  %1081 = vmatpush2.msra.mxu0 0.0
  %1082 = vmatprep.subr.mxu0 0.0
  %1083 = vmatpush2.msra.mxu0 0.0
  %1084 = vmatprep.subr.mxu0 0.0
  %1085 = vmatpush2.msra.mxu0 0.0
  %1086 = vmatprep.subr.mxu0 0.0
  %1087 = vmatpush2.msra.mxu0 0.0
  %1088 = vmatprep.subr.mxu0 %v879
  %1089 = vmatpush2.msra.mxu0 %v878
  %1090 = vmatprep.subr.mxu0 %v875
  %1091 = vmatpush2.msra.mxu0 %v874
  %1092 = vmatprep.subr.mxu0 %v871
  %1093 = vmatpush2.msra.mxu0 %v870
  %1094 = vmatprep.subr.mxu0 %v867
  %1095 = vmatpush2.msra.mxu0 %v866
  %1096 = vmatprep.subr.mxu0 %v863
  %1097 = vmatpush2.msra.mxu0 %v862
  %1098 = vmatprep.subr.mxu0 %v859
  %1099 = vmatpush2.msra.mxu0 %v858
  %1100 = vmatprep.subr.mxu0 %v855
  %1101 = vmatpush2.msra.mxu0 %v854
  %1102 = vmatprep.subr.mxu0 %v851
  %1103 = vmatpush2.msra.mxu0 %v850
  %1104 = vmatprep.mubr.f32.mxu0 %v904
  %1105 = vmatmul.mubr.f32.gmra.mxu0 %v768
  %v1106 = vpop.f32.mrf.mxu0
  %v1107 = vadd.f32 %v894, %v1106
  %v1108 = vpop.f32.mrf.mxu0
  %v1109 = vadd.f32 %v898, %v1108
  %1110 = vmatprep.mubr.f32.mxu0 %v907
  %1111 = vmatmul.mubr.f32.gmra.mxu0 %v770
  %v1112 = vpop.f32.mrf.mxu0
  %v1113 = vadd.f32 %v894, %v1112
  %v1114 = vpop.f32.mrf.mxu0
  %v1115 = vadd.f32 %v898, %v1114
  %1116 = vmatprep.mubr.f32.mxu0 %v910
  %1117 = vmatmul.mubr.f32.gmra.mxu0 %v772
  %v1118 = vpop.f32.mrf.mxu0
  %v1119 = vadd.f32 %v894, %v1118
  %v1120 = vpop.f32.mrf.mxu0
  %v1121 = vadd.f32 %v898, %v1120
  %1122 = vmatprep.mubr.f32.mxu0 %v913
  %1123 = vmatmul.mubr.f32.gmra.mxu0 %v774
  %v1124 = vpop.f32.mrf.mxu0
  %v1125 = vadd.f32 %v894, %v1124
  %v1126 = vpop.f32.mrf.mxu0
  %v1127 = vadd.f32 %v898, %v1126
  %1128 = vmatprep.mubr.f32.mxu0 %v916
  %1129 = vmatmul.mubr.f32.gmra.mxu0 %v776
  %v1130 = vpop.f32.mrf.mxu0
  %v1131 = vadd.f32 %v894, %v1130
  %v1132 = vpop.f32.mrf.mxu0
  %v1133 = vadd.f32 %v898, %v1132
  %1134 = vmatprep.mubr.f32.mxu0 %v919
  %1135 = vmatmul.mubr.f32.gmra.mxu0 %v778
  %v1136 = vpop.f32.mrf.mxu0
  %v1137 = vadd.f32 %v894, %v1136
  %v1138 = vpop.f32.mrf.mxu0
  %v1139 = vadd.f32 %v898, %v1138
  %1140 = vmatprep.mubr.f32.mxu0 %v922
  %1141 = vmatmul.mubr.f32.gmra.mxu0 %v780
  %v1142 = vpop.f32.mrf.mxu0
  %v1143 = vadd.f32 %v894, %v1142
  %v1144 = vpop.f32.mrf.mxu0
  %v1145 = vadd.f32 %v898, %v1144
  %1146 = vmatprep.mubr.f32.mxu0 %v925
  %1147 = vmatmul.mubr.f32.gmra.mxu0 %v782
  %v1148 = vpop.f32.mrf.mxu0
  %v1149 = vadd.f32 %v894, %v1148
  %v1150 = vpop.f32.mrf.mxu0
  %v1151 = vadd.f32 %v898, %v1150
  %1152 = vdwg.mxu0
  %1153 = vst [vmem:[#allocation2] sm:$0xff] %v994
  %1154 = vst [vmem:[#allocation2 + $0x8] sm:$0xff] %v996
  %1155 = vst [vmem:[#allocation2 + $0x10] sm:$0xff] %v1107
  %1156 = vst [vmem:[#allocation2 + $0x18] sm:$0xff] %v1109
  %1157 = vst [vmem:[#allocation2 + $0x20] sm:$0xff] %v1000
  %1158 = vst [vmem:[#allocation2 + $0x28] sm:$0xff] %v1002
  %1159 = vst [vmem:[#allocation2 + $0x30] sm:$0xff] %v1113
  %1160 = vst [vmem:[#allocation2 + $0x38] sm:$0xff] %v1115
  %1161 = vst [vmem:[#allocation2 + $0x40] sm:$0xff] %v1006
  %1162 = vst [vmem:[#allocation2 + $0x48] sm:$0xff] %v1008
  %1163 = vst [vmem:[#allocation2 + $0x50] sm:$0xff] %v1119
  %1164 = vst [vmem:[#allocation2 + $0x58] sm:$0xff] %v1121
  %1165 = vst [vmem:[#allocation2 + $0x60] sm:$0xff] %v1012
  %1166 = vst [vmem:[#allocation2 + $0x68] sm:$0xff] %v1014
  %1167 = vst [vmem:[#allocation2 + $0x70] sm:$0xff] %v1125
  %1168 = vst [vmem:[#allocation2 + $0x78] sm:$0xff] %v1127
  %1169 = vst [vmem:[#allocation2 + $0x80] sm:$0xff] %v1018
  %1170 = vst [vmem:[#allocation2 + $0x88] sm:$0xff] %v1020
  %1171 = vst [vmem:[#allocation2 + $0x90] sm:$0xff] %v1131
  %1172 = vst [vmem:[#allocation2 + $0x98] sm:$0xff] %v1133
  %1173 = vst [vmem:[#allocation2 + $0xa0] sm:$0xff] %v1024
  %1174 = vst [vmem:[#allocation2 + $0xa8] sm:$0xff] %v1026
  %1175 = vst [vmem:[#allocation2 + $0xb0] sm:$0xff] %v1137
  %1176 = vst [vmem:[#allocation2 + $0xb8] sm:$0xff] %v1139
  %1177 = vst [vmem:[#allocation2 + $0xc0] sm:$0xff] %v1030
  %1178 = vst [vmem:[#allocation2 + $0xc8] sm:$0xff] %v1032
  %1179 = vst [vmem:[#allocation2 + $0xd0] sm:$0xff] %v1143
  %1180 = vst [vmem:[#allocation2 + $0xd8] sm:$0xff] %v1145
  %1181 = vst [vmem:[#allocation2 + $0xe0] sm:$0xff] %v1036
  %1182 = vst [vmem:[#allocation2 + $0xe8] sm:$0xff] %v1038
  %1183 = vst [vmem:[#allocation2 + $0xf0] sm:$0xff] %v1149
  %1184 = vst [vmem:[#allocation2 + $0xf8] sm:$0xff] %v1151
  %s1185 = smul.u32 0, 4
  %s1186 = smul.addr %s1185, 8
  %s1187 = scalar_lea.vmem [#allocation2], %s1186
  %v1188 = vld [vmem:[%s1187] sm:$0xff]
  %v1189 = vld [vmem:[%s1187 + $0x8] sm:$0xff]
  %v1190 = vld [vmem:[%s1187 + $0x10] sm:$0xff]
  %v1191 = vld [vmem:[%s1187 + $0x18] sm:$0xff]
  %v1192 = vld [vmem:[%s1 + $0x300] sm:$0xff]
  %v1193 = vld [vmem:[%s1 + $0x308] sm:$0xff]
  %v1194 = vld [vmem:[%s1 + $0x310] sm:$0xff]
  %v1195 = vld [vmem:[%s1 + $0x318] sm:$0xff]
  %v1196 = vld [vmem:[%s1 + $0x320] sm:$0xff]
  %v1197 = vld [vmem:[%s1 + $0x328] sm:$0xff]
  %v1198 = vld [vmem:[%s1 + $0x330] sm:$0xff]
  %v1199 = vld [vmem:[%s1 + $0x338] sm:$0xff]
  %v1200 = vld [vmem:[%s1 + $0x340] sm:$0xff]
  %v1201 = vld [vmem:[%s1 + $0x348] sm:$0xff]
  %v1202 = vld [vmem:[%s1 + $0x350] sm:$0xff]
  %v1203 = vld [vmem:[%s1 + $0x358] sm:$0xff]
  %v1204 = vld [vmem:[%s1 + $0x360] sm:$0xff]
  %v1205 = vld [vmem:[%s1 + $0x368] sm:$0xff]
  %v1206 = vld [vmem:[%s1 + $0x370] sm:$0xff]
  %v1207 = vld [vmem:[%s1 + $0x378] sm:$0xff]
  %v1208 = vld [vmem:[%s1 + $0x380] sm:$0xff]
  %v1209 = vld [vmem:[%s1 + $0x388] sm:$0xff]
  %v1210 = vld [vmem:[%s1 + $0x390] sm:$0xff]
  %v1211 = vld [vmem:[%s1 + $0x398] sm:$0xff]
  %v1212 = vld [vmem:[%s1 + $0x3a0] sm:$0xff]
  %v1213 = vld [vmem:[%s1 + $0x3a8] sm:$0xff]
  %v1214 = vld [vmem:[%s1 + $0x3b0] sm:$0xff]
  %v1215 = vld [vmem:[%s1 + $0x3b8] sm:$0xff]
  %v1216 = vld [vmem:[%s1 + $0x3c0] sm:$0xff]
  %v1217 = vld [vmem:[%s1 + $0x3c8] sm:$0xff]
  %v1218 = vld [vmem:[%s1 + $0x3d0] sm:$0xff]
  %v1219 = vld [vmem:[%s1 + $0x3d8] sm:$0xff]
  %v1220 = vld [vmem:[%s1 + $0x3e0] sm:$0xff]
  %v1221 = vld [vmem:[%s1 + $0x3e8] sm:$0xff]
  %v1222 = vld [vmem:[%s1 + $0x3f0] sm:$0xff]
  %v1223 = vld [vmem:[%s1 + $0x3f8] sm:$0xff]
  %v1224 = vld [vmem:[%s1 + $0x400] sm:$0xff]
  %v1225 = vld [vmem:[%s1 + $0x408] sm:$0xff]
  %v1226 = vld [vmem:[%s1 + $0x410] sm:$0xff]
  %v1227 = vld [vmem:[%s1 + $0x418] sm:$0xff]
  %v1228 = vld [vmem:[%s1 + $0x420] sm:$0xff]
  %v1229 = vld [vmem:[%s1 + $0x428] sm:$0xff]
  %v1230 = vld [vmem:[%s1 + $0x430] sm:$0xff]
  %v1231 = vld [vmem:[%s1 + $0x438] sm:$0xff]
  %v1232 = vld [vmem:[%s1 + $0x440] sm:$0xff]
  %v1233 = vld [vmem:[%s1 + $0x448] sm:$0xff]
  %v1234 = vld [vmem:[%s1 + $0x450] sm:$0xff]
  %v1235 = vld [vmem:[%s1 + $0x458] sm:$0xff]
  %v1236 = vld [vmem:[%s1 + $0x460] sm:$0xff]
  %v1237 = vld [vmem:[%s1 + $0x468] sm:$0xff]
  %v1238 = vld [vmem:[%s1 + $0x470] sm:$0xff]
  %v1239 = vld [vmem:[%s1 + $0x478] sm:$0xff]
  %v1240 = vld [vmem:[%s1 + $0x480] sm:$0xff]
  %v1241 = vld [vmem:[%s1 + $0x488] sm:$0xff]
  %v1242 = vld [vmem:[%s1 + $0x490] sm:$0xff]
  %v1243 = vld [vmem:[%s1 + $0x498] sm:$0xff]
  %v1244 = vld [vmem:[%s1 + $0x4a0] sm:$0xff]
  %v1245 = vld [vmem:[%s1 + $0x4a8] sm:$0xff]
  %v1246 = vld [vmem:[%s1 + $0x4b0] sm:$0xff]
  %v1247 = vld [vmem:[%s1 + $0x4b8] sm:$0xff]
  %v1248 = vld [vmem:[%s1 + $0x4c0] sm:$0xff]
  %v1249 = vld [vmem:[%s1 + $0x4c8] sm:$0xff]
  %v1250 = vld [vmem:[%s1 + $0x4d0] sm:$0xff]
  %v1251 = vld [vmem:[%s1 + $0x4d8] sm:$0xff]
  %v1252 = vld [vmem:[%s1 + $0x4e0] sm:$0xff]
  %v1253 = vld [vmem:[%s1 + $0x4e8] sm:$0xff]
  %v1254 = vld [vmem:[%s1 + $0x4f0] sm:$0xff]
  %v1255 = vld [vmem:[%s1 + $0x4f8] sm:$0xff]
  %1256 = vmatprep.subr.mxu0 %v1253
  %1257 = vmatpush1.msra.mxu0 %v1252
  %1258 = vmatprep.subr.mxu0 %v1249
  %1259 = vmatpush1.msra.mxu0 %v1248
  %1260 = vmatprep.subr.mxu0 %v1245
  %1261 = vmatpush1.msra.mxu0 %v1244
  %1262 = vmatprep.subr.mxu0 %v1241
  %1263 = vmatpush1.msra.mxu0 %v1240
  %1264 = vmatprep.subr.mxu0 %v1237
  %1265 = vmatpush1.msra.mxu0 %v1236
  %1266 = vmatprep.subr.mxu0 %v1233
  %1267 = vmatpush1.msra.mxu0 %v1232
  %1268 = vmatprep.subr.mxu0 %v1229
  %1269 = vmatpush1.msra.mxu0 %v1228
  %1270 = vmatprep.subr.mxu0 %v1225
  %1271 = vmatpush1.msra.mxu0 %v1224
  %1272 = vmatprep.subr.mxu0 %v1221
  %1273 = vmatpush1.msra.mxu0 %v1220
  %1274 = vmatprep.subr.mxu0 %v1217
  %1275 = vmatpush1.msra.mxu0 %v1216
  %1276 = vmatprep.subr.mxu0 %v1213
  %1277 = vmatpush1.msra.mxu0 %v1212
  %1278 = vmatprep.subr.mxu0 %v1209
  %1279 = vmatpush1.msra.mxu0 %v1208
  %1280 = vmatprep.subr.mxu0 %v1205
  %1281 = vmatpush1.msra.mxu0 %v1204
  %1282 = vmatprep.subr.mxu0 %v1201
  %1283 = vmatpush1.msra.mxu0 %v1200
  %1284 = vmatprep.subr.mxu0 %v1197
  %1285 = vmatpush1.msra.mxu0 %v1196
  %1286 = vmatprep.subr.mxu0 %v1193
  %1287 = vmatpush1.msra.mxu0 %v1192
  %1288 = vmatprep.subr.mxu0 0.0
  %1289 = vmatpush2.msra.mxu0 0.0
  %1290 = vmatprep.subr.mxu0 0.0
  %1291 = vmatpush2.msra.mxu0 0.0
  %1292 = vmatprep.subr.mxu0 0.0
  %1293 = vmatpush2.msra.mxu0 0.0
  %1294 = vmatprep.subr.mxu0 0.0
  %1295 = vmatpush2.msra.mxu0 0.0
  %1296 = vmatprep.subr.mxu0 0.0
  %1297 = vmatpush2.msra.mxu0 0.0
  %1298 = vmatprep.subr.mxu0 0.0
  %1299 = vmatpush2.msra.mxu0 0.0
  %1300 = vmatprep.subr.mxu0 0.0
  %1301 = vmatpush2.msra.mxu0 0.0
  %1302 = vmatprep.subr.mxu0 0.0
  %1303 = vmatpush2.msra.mxu0 0.0
  %1304 = vmatprep.subr.mxu0 0.0
  %1305 = vmatpush2.msra.mxu0 0.0
  %1306 = vmatprep.subr.mxu0 0.0
  %1307 = vmatpush2.msra.mxu0 0.0
  %1308 = vmatprep.subr.mxu0 0.0
  %1309 = vmatpush2.msra.mxu0 0.0
  %1310 = vmatprep.subr.mxu0 0.0
  %1311 = vmatpush2.msra.mxu0 0.0
  %1312 = vmatprep.subr.mxu0 0.0
  %1313 = vmatpush2.msra.mxu0 0.0
  %1314 = vmatprep.subr.mxu0 0.0
  %1315 = vmatpush2.msra.mxu0 0.0
  %1316 = vmatprep.subr.mxu0 0.0
  %1317 = vmatpush2.msra.mxu0 0.0
  %1318 = vmatprep.subr.mxu0 0.0
  %1319 = vmatpush2.msra.mxu0 0.0
  %1320 = vmatprep.mubr.f32.mxu0 0.0
  %1321 = vmatmul.mubr.f32.gmra.mxu0 0.0
  %v1322 = vpop.f32.mrf.mxu0
  %v1323 = vadd.f32 0.0, %v1322
  %v1324 = vpop.f32.mrf.mxu0
  %v1325 = vadd.f32 0.0, %v1324
  %1326 = vdwg.mxu0
  %1327 = vmatprep.subr.mxu0 %v1255
  %1328 = vmatpush1.msra.mxu0 %v1254
  %1329 = vmatprep.subr.mxu0 %v1251
  %1330 = vmatpush1.msra.mxu0 %v1250
  %1331 = vmatprep.subr.mxu0 %v1247
  %1332 = vmatpush1.msra.mxu0 %v1246
  %1333 = vmatprep.subr.mxu0 %v1243
  %1334 = vmatpush1.msra.mxu0 %v1242
  %1335 = vmatprep.subr.mxu0 %v1239
  %1336 = vmatpush1.msra.mxu0 %v1238
  %1337 = vmatprep.subr.mxu0 %v1235
  %1338 = vmatpush1.msra.mxu0 %v1234
  %1339 = vmatprep.subr.mxu0 %v1231
  %1340 = vmatpush1.msra.mxu0 %v1230
  %1341 = vmatprep.subr.mxu0 %v1227
  %1342 = vmatpush1.msra.mxu0 %v1226
  %1343 = vmatprep.subr.mxu0 %v1223
  %1344 = vmatpush1.msra.mxu0 %v1222
  %1345 = vmatprep.subr.mxu0 %v1219
  %1346 = vmatpush1.msra.mxu0 %v1218
  %1347 = vmatprep.subr.mxu0 %v1215
  %1348 = vmatpush1.msra.mxu0 %v1214
  %1349 = vmatprep.subr.mxu0 %v1211
  %1350 = vmatpush1.msra.mxu0 %v1210
  %1351 = vmatprep.subr.mxu0 %v1207
  %1352 = vmatpush1.msra.mxu0 %v1206
  %1353 = vmatprep.subr.mxu0 %v1203
  %1354 = vmatpush1.msra.mxu0 %v1202
  %1355 = vmatprep.subr.mxu0 %v1199
  %1356 = vmatpush1.msra.mxu0 %v1198
  %1357 = vmatprep.subr.mxu0 %v1195
  %1358 = vmatpush1.msra.mxu0 %v1194
  %1359 = vmatprep.subr.mxu0 0.0
  %1360 = vmatpush2.msra.mxu0 0.0
  %1361 = vmatprep.subr.mxu0 0.0
  %1362 = vmatpush2.msra.mxu0 0.0
  %1363 = vmatprep.subr.mxu0 0.0
  %1364 = vmatpush2.msra.mxu0 0.0
  %1365 = vmatprep.subr.mxu0 0.0
  %1366 = vmatpush2.msra.mxu0 0.0
  %1367 = vmatprep.subr.mxu0 0.0
  %1368 = vmatpush2.msra.mxu0 0.0
  %1369 = vmatprep.subr.mxu0 0.0
  %1370 = vmatpush2.msra.mxu0 0.0
  %1371 = vmatprep.subr.mxu0 0.0
  %1372 = vmatpush2.msra.mxu0 0.0
  %1373 = vmatprep.subr.mxu0 0.0
  %1374 = vmatpush2.msra.mxu0 0.0
  %1375 = vmatprep.subr.mxu0 0.0
  %1376 = vmatpush2.msra.mxu0 0.0
  %1377 = vmatprep.subr.mxu0 0.0
  %1378 = vmatpush2.msra.mxu0 0.0
  %1379 = vmatprep.subr.mxu0 0.0
  %1380 = vmatpush2.msra.mxu0 0.0
  %1381 = vmatprep.subr.mxu0 0.0
  %1382 = vmatpush2.msra.mxu0 0.0
  %1383 = vmatprep.subr.mxu0 0.0
  %1384 = vmatpush2.msra.mxu0 0.0
  %1385 = vmatprep.subr.mxu0 0.0
  %1386 = vmatpush2.msra.mxu0 0.0
  %1387 = vmatprep.subr.mxu0 0.0
  %1388 = vmatpush2.msra.mxu0 0.0
  %1389 = vmatprep.subr.mxu0 0.0
  %1390 = vmatpush2.msra.mxu0 0.0
  %1391 = vmatprep.mubr.f32.mxu0 0.0
  %1392 = vmatmul.mubr.f32.gmra.mxu0 0.0
  %v1393 = vpop.f32.mrf.mxu0
  %v1394 = vadd.f32 0.0, %v1393
  %v1395 = vpop.f32.mrf.mxu0
  %v1396 = vadd.f32 0.0, %v1395
  %1397 = vdwg.mxu0
  %v1398 = vadd.f32 %v1188, %v1323
  %v1399 = vadd.f32 %v1189, %v1325
  %v1400 = vadd.f32 %v1190, %v1394
  %v1401 = vadd.f32 %v1191, %v1396
  %v1402 = vmul.f32 %v1398, 0.5
  %v1403 = vtanh.pop %v1402
  %v1404 = vmul.f32 %v1403, 0.5
  %v1405 = vadd.f32 %v1404, 0.5
  %v1406 = vmul.f32 %v1399, 0.5
  %v1407 = vtanh.pop %v1406
  %v1408 = vmul.f32 %v1407, 0.5
  %v1409 = vadd.f32 %v1408, 0.5
  %v1410 = vtanh.pop %v1400
  %v1411 = vmul.f32 %v1401, 0.5
  %v1412 = vtanh.pop %v1411
  %v1413 = vmul.f32 %v1412, 0.5
  %v1414 = vadd.f32 %v1413, 0.5
  %v1415 = vmul.f32 %v1409, 0.0
  %v1416 = vmul.f32 %v1405, %v1410
  %v1417 = vadd.f32 %v1415, %v1416
  %v1418 = vtanh.pop %v1417
  %v1419 = vmul.f32 %v1414, %v1418
  %s1420 = smul.u32 1, 4
  %s1421 = smul.addr %s1420, 8
  %s1422 = scalar_lea.vmem [#allocation2], %s1421
  %v1423 = vld [vmem:[%s1422] sm:$0xff]
  %v1424 = vld [vmem:[%s1422 + $0x8] sm:$0xff]
  %v1425 = vld [vmem:[%s1422 + $0x10] sm:$0xff]
  %v1426 = vld [vmem:[%s1422 + $0x18] sm:$0xff]
  %1427 = vmatprep.subr.mxu0 %v1253
  %1428 = vmatpush1.msra.mxu0 %v1252
  %1429 = vmatprep.subr.mxu0 %v1249
  %1430 = vmatpush1.msra.mxu0 %v1248
  %1431 = vmatprep.subr.mxu0 %v1245
  %1432 = vmatpush1.msra.mxu0 %v1244
  %1433 = vmatprep.subr.mxu0 %v1241
  %1434 = vmatpush1.msra.mxu0 %v1240
  %1435 = vmatprep.subr.mxu0 %v1237
  %1436 = vmatpush1.msra.mxu0 %v1236
  %1437 = vmatprep.subr.mxu0 %v1233
  %1438 = vmatpush1.msra.mxu0 %v1232
  %1439 = vmatprep.subr.mxu0 %v1229
  %1440 = vmatpush1.msra.mxu0 %v1228
  %1441 = vmatprep.subr.mxu0 %v1225
  %1442 = vmatpush1.msra.mxu0 %v1224
  %1443 = vmatprep.subr.mxu0 %v1221
  %1444 = vmatpush1.msra.mxu0 %v1220
  %1445 = vmatprep.subr.mxu0 %v1217
  %1446 = vmatpush1.msra.mxu0 %v1216
  %1447 = vmatprep.subr.mxu0 %v1213
  %1448 = vmatpush1.msra.mxu0 %v1212
  %1449 = vmatprep.subr.mxu0 %v1209
  %1450 = vmatpush1.msra.mxu0 %v1208
  %1451 = vmatprep.subr.mxu0 %v1205
  %1452 = vmatpush1.msra.mxu0 %v1204
  %1453 = vmatprep.subr.mxu0 %v1201
  %1454 = vmatpush1.msra.mxu0 %v1200
  %1455 = vmatprep.subr.mxu0 %v1197
  %1456 = vmatpush1.msra.mxu0 %v1196
  %1457 = vmatprep.subr.mxu0 %v1193
  %1458 = vmatpush1.msra.mxu0 %v1192
  %1459 = vmatprep.subr.mxu0 0.0
  %1460 = vmatpush2.msra.mxu0 0.0
  %1461 = vmatprep.subr.mxu0 0.0
  %1462 = vmatpush2.msra.mxu0 0.0
  %1463 = vmatprep.subr.mxu0 0.0
  %1464 = vmatpush2.msra.mxu0 0.0
  %1465 = vmatprep.subr.mxu0 0.0
  %1466 = vmatpush2.msra.mxu0 0.0
  %1467 = vmatprep.subr.mxu0 0.0
  %1468 = vmatpush2.msra.mxu0 0.0
  %1469 = vmatprep.subr.mxu0 0.0
  %1470 = vmatpush2.msra.mxu0 0.0
  %1471 = vmatprep.subr.mxu0 0.0
  %1472 = vmatpush2.msra.mxu0 0.0
  %1473 = vmatprep.subr.mxu0 0.0
  %1474 = vmatpush2.msra.mxu0 0.0
  %1475 = vmatprep.subr.mxu0 0.0
  %1476 = vmatpush2.msra.mxu0 0.0
  %1477 = vmatprep.subr.mxu0 0.0
  %1478 = vmatpush2.msra.mxu0 0.0
  %1479 = vmatprep.subr.mxu0 0.0
  %1480 = vmatpush2.msra.mxu0 0.0
  %1481 = vmatprep.subr.mxu0 0.0
  %1482 = vmatpush2.msra.mxu0 0.0
  %1483 = vmatprep.subr.mxu0 0.0
  %1484 = vmatpush2.msra.mxu0 0.0
  %1485 = vmatprep.subr.mxu0 0.0
  %1486 = vmatpush2.msra.mxu0 0.0
  %1487 = vmatprep.subr.mxu0 0.0
  %1488 = vmatpush2.msra.mxu0 0.0
  %1489 = vmatprep.subr.mxu0 0.0
  %1490 = vmatpush2.msra.mxu0 0.0
  %1491 = vmatprep.mubr.f32.mxu0 0.0
  %1492 = vmatmul.mubr.f32.gmra.mxu0 %v1419
  %v1493 = vpop.f32.mrf.mxu0
  %v1494 = vadd.f32 0.0, %v1493
  %v1495 = vpop.f32.mrf.mxu0
  %v1496 = vadd.f32 0.0, %v1495
  %1497 = vdwg.mxu0
  %1498 = vmatprep.subr.mxu0 %v1255
  %1499 = vmatpush1.msra.mxu0 %v1254
  %1500 = vmatprep.subr.mxu0 %v1251
  %1501 = vmatpush1.msra.mxu0 %v1250
  %1502 = vmatprep.subr.mxu0 %v1247
  %1503 = vmatpush1.msra.mxu0 %v1246
  %1504 = vmatprep.subr.mxu0 %v1243
  %1505 = vmatpush1.msra.mxu0 %v1242
  %1506 = vmatprep.subr.mxu0 %v1239
  %1507 = vmatpush1.msra.mxu0 %v1238
  %1508 = vmatprep.subr.mxu0 %v1235
  %1509 = vmatpush1.msra.mxu0 %v1234
  %1510 = vmatprep.subr.mxu0 %v1231
  %1511 = vmatpush1.msra.mxu0 %v1230
  %1512 = vmatprep.subr.mxu0 %v1227
  %1513 = vmatpush1.msra.mxu0 %v1226
  %1514 = vmatprep.subr.mxu0 %v1223
  %1515 = vmatpush1.msra.mxu0 %v1222
  %1516 = vmatprep.subr.mxu0 %v1219
  %1517 = vmatpush1.msra.mxu0 %v1218
  %1518 = vmatprep.subr.mxu0 %v1215
  %1519 = vmatpush1.msra.mxu0 %v1214
  %1520 = vmatprep.subr.mxu0 %v1211
  %1521 = vmatpush1.msra.mxu0 %v1210
  %1522 = vmatprep.subr.mxu0 %v1207
  %1523 = vmatpush1.msra.mxu0 %v1206
  %1524 = vmatprep.subr.mxu0 %v1203
  %1525 = vmatpush1.msra.mxu0 %v1202
  %1526 = vmatprep.subr.mxu0 %v1199
  %1527 = vmatpush1.msra.mxu0 %v1198
  %1528 = vmatprep.subr.mxu0 %v1195
  %1529 = vmatpush1.msra.mxu0 %v1194
  %1530 = vmatprep.subr.mxu0 0.0
  %1531 = vmatpush2.msra.mxu0 0.0
  %1532 = vmatprep.subr.mxu0 0.0
  %1533 = vmatpush2.msra.mxu0 0.0
  %1534 = vmatprep.subr.mxu0 0.0
  %1535 = vmatpush2.msra.mxu0 0.0
  %1536 = vmatprep.subr.mxu0 0.0
  %1537 = vmatpush2.msra.mxu0 0.0
  %1538 = vmatprep.subr.mxu0 0.0
  %1539 = vmatpush2.msra.mxu0 0.0
  %1540 = vmatprep.subr.mxu0 0.0
  %1541 = vmatpush2.msra.mxu0 0.0
  %1542 = vmatprep.subr.mxu0 0.0
  %1543 = vmatpush2.msra.mxu0 0.0
  %1544 = vmatprep.subr.mxu0 0.0
  %1545 = vmatpush2.msra.mxu0 0.0
  %1546 = vmatprep.subr.mxu0 0.0
  %1547 = vmatpush2.msra.mxu0 0.0
  %1548 = vmatprep.subr.mxu0 0.0
  %1549 = vmatpush2.msra.mxu0 0.0
  %1550 = vmatprep.subr.mxu0 0.0
  %1551 = vmatpush2.msra.mxu0 0.0
  %1552 = vmatprep.subr.mxu0 0.0
  %1553 = vmatpush2.msra.mxu0 0.0
  %1554 = vmatprep.subr.mxu0 0.0
  %1555 = vmatpush2.msra.mxu0 0.0
  %1556 = vmatprep.subr.mxu0 0.0
  %1557 = vmatpush2.msra.mxu0 0.0
  %1558 = vmatprep.subr.mxu0 0.0
  %1559 = vmatpush2.msra.mxu0 0.0
  %1560 = vmatprep.subr.mxu0 0.0
  %1561 = vmatpush2.msra.mxu0 0.0
  %1562 = vmatprep.mubr.f32.mxu0 0.0
  %1563 = vmatmul.mubr.f32.gmra.mxu0 %v1419
  %v1564 = vpop.f32.mrf.mxu0
  %v1565 = vadd.f32 0.0, %v1564
  %v1566 = vpop.f32.mrf.mxu0
  %v1567 = vadd.f32 0.0, %v1566
  %1568 = vdwg.mxu0
  %v1569 = vadd.f32 %v1423, %v1494
  %v1570 = vadd.f32 %v1424, %v1496
  %v1571 = vadd.f32 %v1425, %v1565
  %v1572 = vadd.f32 %v1426, %v1567
  %v1573 = vmul.f32 %v1569, 0.5
  %v1574 = vtanh.pop %v1573
  %v1575 = vmul.f32 %v1574, 0.5
  %v1576 = vadd.f32 %v1575, 0.5
  %v1577 = vmul.f32 %v1570, 0.5
  %v1578 = vtanh.pop %v1577
  %v1579 = vmul.f32 %v1578, 0.5
  %v1580 = vadd.f32 %v1579, 0.5
  %v1581 = vtanh.pop %v1571
  %v1582 = vmul.f32 %v1572, 0.5
  %v1583 = vtanh.pop %v1582
  %v1584 = vmul.f32 %v1583, 0.5
  %v1585 = vadd.f32 %v1584, 0.5
  %v1586 = vmul.f32 %v1580, %v1417
  %v1587 = vmul.f32 %v1576, %v1581
  %v1588 = vadd.f32 %v1586, %v1587
  %v1589 = vtanh.pop %v1588
  %v1590 = vmul.f32 %v1585, %v1589
  %s1591 = smul.u32 2, 4
  %s1592 = smul.addr %s1591, 8
  %s1593 = scalar_lea.vmem [#allocation2], %s1592
  %v1594 = vld [vmem:[%s1593] sm:$0xff]
  %v1595 = vld [vmem:[%s1593 + $0x8] sm:$0xff]
  %v1596 = vld [vmem:[%s1593 + $0x10] sm:$0xff]
  %v1597 = vld [vmem:[%s1593 + $0x18] sm:$0xff]
  %1598 = vmatprep.subr.mxu0 %v1253
  %1599 = vmatpush1.msra.mxu0 %v1252
  %1600 = vmatprep.subr.mxu0 %v1249
  %1601 = vmatpush1.msra.mxu0 %v1248
  %1602 = vmatprep.subr.mxu0 %v1245
  %1603 = vmatpush1.msra.mxu0 %v1244
  %1604 = vmatprep.subr.mxu0 %v1241
  %1605 = vmatpush1.msra.mxu0 %v1240
  %1606 = vmatprep.subr.mxu0 %v1237
  %1607 = vmatpush1.msra.mxu0 %v1236
  %1608 = vmatprep.subr.mxu0 %v1233
  %1609 = vmatpush1.msra.mxu0 %v1232
  %1610 = vmatprep.subr.mxu0 %v1229
  %1611 = vmatpush1.msra.mxu0 %v1228
  %1612 = vmatprep.subr.mxu0 %v1225
  %1613 = vmatpush1.msra.mxu0 %v1224
  %1614 = vmatprep.subr.mxu0 %v1221
  %1615 = vmatpush1.msra.mxu0 %v1220
  %1616 = vmatprep.subr.mxu0 %v1217
  %1617 = vmatpush1.msra.mxu0 %v1216
  %1618 = vmatprep.subr.mxu0 %v1213
  %1619 = vmatpush1.msra.mxu0 %v1212
  %1620 = vmatprep.subr.mxu0 %v1209
  %1621 = vmatpush1.msra.mxu0 %v1208
  %1622 = vmatprep.subr.mxu0 %v1205
  %1623 = vmatpush1.msra.mxu0 %v1204
  %1624 = vmatprep.subr.mxu0 %v1201
  %1625 = vmatpush1.msra.mxu0 %v1200
  %1626 = vmatprep.subr.mxu0 %v1197
  %1627 = vmatpush1.msra.mxu0 %v1196
  %1628 = vmatprep.subr.mxu0 %v1193
  %1629 = vmatpush1.msra.mxu0 %v1192
  %1630 = vmatprep.subr.mxu0 0.0
  %1631 = vmatpush2.msra.mxu0 0.0
  %1632 = vmatprep.subr.mxu0 0.0
  %1633 = vmatpush2.msra.mxu0 0.0
  %1634 = vmatprep.subr.mxu0 0.0
  %1635 = vmatpush2.msra.mxu0 0.0
  %1636 = vmatprep.subr.mxu0 0.0
  %1637 = vmatpush2.msra.mxu0 0.0
  %1638 = vmatprep.subr.mxu0 0.0
  %1639 = vmatpush2.msra.mxu0 0.0
  %1640 = vmatprep.subr.mxu0 0.0
  %1641 = vmatpush2.msra.mxu0 0.0
  %1642 = vmatprep.subr.mxu0 0.0
  %1643 = vmatpush2.msra.mxu0 0.0
  %1644 = vmatprep.subr.mxu0 0.0
  %1645 = vmatpush2.msra.mxu0 0.0
  %1646 = vmatprep.subr.mxu0 0.0
  %1647 = vmatpush2.msra.mxu0 0.0
  %1648 = vmatprep.subr.mxu0 0.0
  %1649 = vmatpush2.msra.mxu0 0.0
  %1650 = vmatprep.subr.mxu0 0.0
  %1651 = vmatpush2.msra.mxu0 0.0
  %1652 = vmatprep.subr.mxu0 0.0
  %1653 = vmatpush2.msra.mxu0 0.0
  %1654 = vmatprep.subr.mxu0 0.0
  %1655 = vmatpush2.msra.mxu0 0.0
  %1656 = vmatprep.subr.mxu0 0.0
  %1657 = vmatpush2.msra.mxu0 0.0
  %1658 = vmatprep.subr.mxu0 0.0
  %1659 = vmatpush2.msra.mxu0 0.0
  %1660 = vmatprep.subr.mxu0 0.0
  %1661 = vmatpush2.msra.mxu0 0.0
  %1662 = vmatprep.mubr.f32.mxu0 0.0
  %1663 = vmatmul.mubr.f32.gmra.mxu0 %v1590
  %v1664 = vpop.f32.mrf.mxu0
  %v1665 = vadd.f32 0.0, %v1664
  %v1666 = vpop.f32.mrf.mxu0
  %v1667 = vadd.f32 0.0, %v1666
  %1668 = vdwg.mxu0
  %1669 = vmatprep.subr.mxu0 %v1255
  %1670 = vmatpush1.msra.mxu0 %v1254
  %1671 = vmatprep.subr.mxu0 %v1251
  %1672 = vmatpush1.msra.mxu0 %v1250
  %1673 = vmatprep.subr.mxu0 %v1247
  %1674 = vmatpush1.msra.mxu0 %v1246
  %1675 = vmatprep.subr.mxu0 %v1243
  %1676 = vmatpush1.msra.mxu0 %v1242
  %1677 = vmatprep.subr.mxu0 %v1239
  %1678 = vmatpush1.msra.mxu0 %v1238
  %1679 = vmatprep.subr.mxu0 %v1235
  %1680 = vmatpush1.msra.mxu0 %v1234
  %1681 = vmatprep.subr.mxu0 %v1231
  %1682 = vmatpush1.msra.mxu0 %v1230
  %1683 = vmatprep.subr.mxu0 %v1227
  %1684 = vmatpush1.msra.mxu0 %v1226
  %1685 = vmatprep.subr.mxu0 %v1223
  %1686 = vmatpush1.msra.mxu0 %v1222
  %1687 = vmatprep.subr.mxu0 %v1219
  %1688 = vmatpush1.msra.mxu0 %v1218
  %1689 = vmatprep.subr.mxu0 %v1215
  %1690 = vmatpush1.msra.mxu0 %v1214
  %1691 = vmatprep.subr.mxu0 %v1211
  %1692 = vmatpush1.msra.mxu0 %v1210
  %1693 = vmatprep.subr.mxu0 %v1207
  %1694 = vmatpush1.msra.mxu0 %v1206
  %1695 = vmatprep.subr.mxu0 %v1203
  %1696 = vmatpush1.msra.mxu0 %v1202
  %1697 = vmatprep.subr.mxu0 %v1199
  %1698 = vmatpush1.msra.mxu0 %v1198
  %1699 = vmatprep.subr.mxu0 %v1195
  %1700 = vmatpush1.msra.mxu0 %v1194
  %1701 = vmatprep.subr.mxu0 0.0
  %1702 = vmatpush2.msra.mxu0 0.0
  %1703 = vmatprep.subr.mxu0 0.0
  %1704 = vmatpush2.msra.mxu0 0.0
  %1705 = vmatprep.subr.mxu0 0.0
  %1706 = vmatpush2.msra.mxu0 0.0
  %1707 = vmatprep.subr.mxu0 0.0
  %1708 = vmatpush2.msra.mxu0 0.0
  %1709 = vmatprep.subr.mxu0 0.0
  %1710 = vmatpush2.msra.mxu0 0.0
  %1711 = vmatprep.subr.mxu0 0.0
  %1712 = vmatpush2.msra.mxu0 0.0
  %1713 = vmatprep.subr.mxu0 0.0
  %1714 = vmatpush2.msra.mxu0 0.0
  %1715 = vmatprep.subr.mxu0 0.0
  %1716 = vmatpush2.msra.mxu0 0.0
  %1717 = vmatprep.subr.mxu0 0.0
  %1718 = vmatpush2.msra.mxu0 0.0
  %1719 = vmatprep.subr.mxu0 0.0
  %1720 = vmatpush2.msra.mxu0 0.0
  %1721 = vmatprep.subr.mxu0 0.0
  %1722 = vmatpush2.msra.mxu0 0.0
  %1723 = vmatprep.subr.mxu0 0.0
  %1724 = vmatpush2.msra.mxu0 0.0
  %1725 = vmatprep.subr.mxu0 0.0
  %1726 = vmatpush2.msra.mxu0 0.0
  %1727 = vmatprep.subr.mxu0 0.0
  %1728 = vmatpush2.msra.mxu0 0.0
  %1729 = vmatprep.subr.mxu0 0.0
  %1730 = vmatpush2.msra.mxu0 0.0
  %1731 = vmatprep.subr.mxu0 0.0
  %1732 = vmatpush2.msra.mxu0 0.0
  %1733 = vmatprep.mubr.f32.mxu0 0.0
  %1734 = vmatmul.mubr.f32.gmra.mxu0 %v1590
  %v1735 = vpop.f32.mrf.mxu0
  %v1736 = vadd.f32 0.0, %v1735
  %v1737 = vpop.f32.mrf.mxu0
  %v1738 = vadd.f32 0.0, %v1737
  %1739 = vdwg.mxu0
  %v1740 = vadd.f32 %v1594, %v1665
  %v1741 = vadd.f32 %v1595, %v1667
  %v1742 = vadd.f32 %v1596, %v1736
  %v1743 = vadd.f32 %v1597, %v1738
  %v1744 = vmul.f32 %v1740, 0.5
  %v1745 = vtanh.pop %v1744
  %v1746 = vmul.f32 %v1745, 0.5
  %v1747 = vadd.f32 %v1746, 0.5
  %v1748 = vmul.f32 %v1741, 0.5
  %v1749 = vtanh.pop %v1748
  %v1750 = vmul.f32 %v1749, 0.5
  %v1751 = vadd.f32 %v1750, 0.5
  %v1752 = vtanh.pop %v1742
  %v1753 = vmul.f32 %v1743, 0.5
  %v1754 = vtanh.pop %v1753
  %v1755 = vmul.f32 %v1754, 0.5
  %v1756 = vadd.f32 %v1755, 0.5
  %v1757 = vmul.f32 %v1751, %v1588
  %v1758 = vmul.f32 %v1747, %v1752
  %v1759 = vadd.f32 %v1757, %v1758
  %v1760 = vtanh.pop %v1759
  %v1761 = vmul.f32 %v1756, %v1760
  %s1762 = smul.u32 3, 4
  %s1763 = smul.addr %s1762, 8
  %s1764 = scalar_lea.vmem [#allocation2], %s1763
  %v1765 = vld [vmem:[%s1764] sm:$0xff]
  %v1766 = vld [vmem:[%s1764 + $0x8] sm:$0xff]
  %v1767 = vld [vmem:[%s1764 + $0x10] sm:$0xff]
  %v1768 = vld [vmem:[%s1764 + $0x18] sm:$0xff]
  %1769 = vmatprep.subr.mxu0 %v1253
  %1770 = vmatpush1.msra.mxu0 %v1252
  %1771 = vmatprep.subr.mxu0 %v1249
  %1772 = vmatpush1.msra.mxu0 %v1248
  %1773 = vmatprep.subr.mxu0 %v1245
  %1774 = vmatpush1.msra.mxu0 %v1244
  %1775 = vmatprep.subr.mxu0 %v1241
  %1776 = vmatpush1.msra.mxu0 %v1240
  %1777 = vmatprep.subr.mxu0 %v1237
  %1778 = vmatpush1.msra.mxu0 %v1236
  %1779 = vmatprep.subr.mxu0 %v1233
  %1780 = vmatpush1.msra.mxu0 %v1232
  %1781 = vmatprep.subr.mxu0 %v1229
  %1782 = vmatpush1.msra.mxu0 %v1228
  %1783 = vmatprep.subr.mxu0 %v1225
  %1784 = vmatpush1.msra.mxu0 %v1224
  %1785 = vmatprep.subr.mxu0 %v1221
  %1786 = vmatpush1.msra.mxu0 %v1220
  %1787 = vmatprep.subr.mxu0 %v1217
  %1788 = vmatpush1.msra.mxu0 %v1216
  %1789 = vmatprep.subr.mxu0 %v1213
  %1790 = vmatpush1.msra.mxu0 %v1212
  %1791 = vmatprep.subr.mxu0 %v1209
  %1792 = vmatpush1.msra.mxu0 %v1208
  %1793 = vmatprep.subr.mxu0 %v1205
  %1794 = vmatpush1.msra.mxu0 %v1204
  %1795 = vmatprep.subr.mxu0 %v1201
  %1796 = vmatpush1.msra.mxu0 %v1200
  %1797 = vmatprep.subr.mxu0 %v1197
  %1798 = vmatpush1.msra.mxu0 %v1196
  %1799 = vmatprep.subr.mxu0 %v1193
  %1800 = vmatpush1.msra.mxu0 %v1192
  %1801 = vmatprep.subr.mxu0 0.0
  %1802 = vmatpush2.msra.mxu0 0.0
  %1803 = vmatprep.subr.mxu0 0.0
  %1804 = vmatpush2.msra.mxu0 0.0
  %1805 = vmatprep.subr.mxu0 0.0
  %1806 = vmatpush2.msra.mxu0 0.0
  %1807 = vmatprep.subr.mxu0 0.0
  %1808 = vmatpush2.msra.mxu0 0.0
  %1809 = vmatprep.subr.mxu0 0.0
  %1810 = vmatpush2.msra.mxu0 0.0
  %1811 = vmatprep.subr.mxu0 0.0
  %1812 = vmatpush2.msra.mxu0 0.0
  %1813 = vmatprep.subr.mxu0 0.0
  %1814 = vmatpush2.msra.mxu0 0.0
  %1815 = vmatprep.subr.mxu0 0.0
  %1816 = vmatpush2.msra.mxu0 0.0
  %1817 = vmatprep.subr.mxu0 0.0
  %1818 = vmatpush2.msra.mxu0 0.0
  %1819 = vmatprep.subr.mxu0 0.0
  %1820 = vmatpush2.msra.mxu0 0.0
  %1821 = vmatprep.subr.mxu0 0.0
  %1822 = vmatpush2.msra.mxu0 0.0
  %1823 = vmatprep.subr.mxu0 0.0
  %1824 = vmatpush2.msra.mxu0 0.0
  %1825 = vmatprep.subr.mxu0 0.0
  %1826 = vmatpush2.msra.mxu0 0.0
  %1827 = vmatprep.subr.mxu0 0.0
  %1828 = vmatpush2.msra.mxu0 0.0
  %1829 = vmatprep.subr.mxu0 0.0
  %1830 = vmatpush2.msra.mxu0 0.0
  %1831 = vmatprep.subr.mxu0 0.0
  %1832 = vmatpush2.msra.mxu0 0.0
  %1833 = vmatprep.mubr.f32.mxu0 0.0
  %1834 = vmatmul.mubr.f32.gmra.mxu0 %v1761
  %v1835 = vpop.f32.mrf.mxu0
  %v1836 = vadd.f32 0.0, %v1835
  %v1837 = vpop.f32.mrf.mxu0
  %v1838 = vadd.f32 0.0, %v1837
  %1839 = vdwg.mxu0
  %1840 = vmatprep.subr.mxu0 %v1255
  %1841 = vmatpush1.msra.mxu0 %v1254
  %1842 = vmatprep.subr.mxu0 %v1251
  %1843 = vmatpush1.msra.mxu0 %v1250
  %1844 = vmatprep.subr.mxu0 %v1247
  %1845 = vmatpush1.msra.mxu0 %v1246
  %1846 = vmatprep.subr.mxu0 %v1243
  %1847 = vmatpush1.msra.mxu0 %v1242
  %1848 = vmatprep.subr.mxu0 %v1239
  %1849 = vmatpush1.msra.mxu0 %v1238
  %1850 = vmatprep.subr.mxu0 %v1235
  %1851 = vmatpush1.msra.mxu0 %v1234
  %1852 = vmatprep.subr.mxu0 %v1231
  %1853 = vmatpush1.msra.mxu0 %v1230
  %1854 = vmatprep.subr.mxu0 %v1227
  %1855 = vmatpush1.msra.mxu0 %v1226
  %1856 = vmatprep.subr.mxu0 %v1223
  %1857 = vmatpush1.msra.mxu0 %v1222
  %1858 = vmatprep.subr.mxu0 %v1219
  %1859 = vmatpush1.msra.mxu0 %v1218
  %1860 = vmatprep.subr.mxu0 %v1215
  %1861 = vmatpush1.msra.mxu0 %v1214
  %1862 = vmatprep.subr.mxu0 %v1211
  %1863 = vmatpush1.msra.mxu0 %v1210
  %1864 = vmatprep.subr.mxu0 %v1207
  %1865 = vmatpush1.msra.mxu0 %v1206
  %1866 = vmatprep.subr.mxu0 %v1203
  %1867 = vmatpush1.msra.mxu0 %v1202
  %1868 = vmatprep.subr.mxu0 %v1199
  %1869 = vmatpush1.msra.mxu0 %v1198
  %1870 = vmatprep.subr.mxu0 %v1195
  %1871 = vmatpush1.msra.mxu0 %v1194
  %1872 = vmatprep.subr.mxu0 0.0
  %1873 = vmatpush2.msra.mxu0 0.0
  %1874 = vmatprep.subr.mxu0 0.0
  %1875 = vmatpush2.msra.mxu0 0.0
  %1876 = vmatprep.subr.mxu0 0.0
  %1877 = vmatpush2.msra.mxu0 0.0
  %1878 = vmatprep.subr.mxu0 0.0
  %1879 = vmatpush2.msra.mxu0 0.0
  %1880 = vmatprep.subr.mxu0 0.0
  %1881 = vmatpush2.msra.mxu0 0.0
  %1882 = vmatprep.subr.mxu0 0.0
  %1883 = vmatpush2.msra.mxu0 0.0
  %1884 = vmatprep.subr.mxu0 0.0
  %1885 = vmatpush2.msra.mxu0 0.0
  %1886 = vmatprep.subr.mxu0 0.0
  %1887 = vmatpush2.msra.mxu0 0.0
  %1888 = vmatprep.subr.mxu0 0.0
  %1889 = vmatpush2.msra.mxu0 0.0
  %1890 = vmatprep.subr.mxu0 0.0
  %1891 = vmatpush2.msra.mxu0 0.0
  %1892 = vmatprep.subr.mxu0 0.0
  %1893 = vmatpush2.msra.mxu0 0.0
  %1894 = vmatprep.subr.mxu0 0.0
  %1895 = vmatpush2.msra.mxu0 0.0
  %1896 = vmatprep.subr.mxu0 0.0
  %1897 = vmatpush2.msra.mxu0 0.0
  %1898 = vmatprep.subr.mxu0 0.0
  %1899 = vmatpush2.msra.mxu0 0.0
  %1900 = vmatprep.subr.mxu0 0.0
  %1901 = vmatpush2.msra.mxu0 0.0
  %1902 = vmatprep.subr.mxu0 0.0
  %1903 = vmatpush2.msra.mxu0 0.0
  %1904 = vmatprep.mubr.f32.mxu0 0.0
  %1905 = vmatmul.mubr.f32.gmra.mxu0 %v1761
  %v1906 = vpop.f32.mrf.mxu0
  %v1907 = vadd.f32 0.0, %v1906
  %v1908 = vpop.f32.mrf.mxu0
  %v1909 = vadd.f32 0.0, %v1908
  %1910 = vdwg.mxu0
  %v1911 = vadd.f32 %v1765, %v1836
  %v1912 = vadd.f32 %v1766, %v1838
  %v1913 = vadd.f32 %v1767, %v1907
  %v1914 = vadd.f32 %v1768, %v1909
  %v1915 = vmul.f32 %v1911, 0.5
  %v1916 = vtanh.pop %v1915
  %v1917 = vmul.f32 %v1916, 0.5
  %v1918 = vadd.f32 %v1917, 0.5
  %v1919 = vmul.f32 %v1912, 0.5
  %v1920 = vtanh.pop %v1919
  %v1921 = vmul.f32 %v1920, 0.5
  %v1922 = vadd.f32 %v1921, 0.5
  %v1923 = vtanh.pop %v1913
  %v1924 = vmul.f32 %v1914, 0.5
  %v1925 = vtanh.pop %v1924
  %v1926 = vmul.f32 %v1925, 0.5
  %v1927 = vadd.f32 %v1926, 0.5
  %v1928 = vmul.f32 %v1922, %v1759
  %v1929 = vmul.f32 %v1918, %v1923
  %v1930 = vadd.f32 %v1928, %v1929
  %v1931 = vtanh.pop %v1930
  %v1932 = vmul.f32 %v1927, %v1931
  %s1933 = smul.u32 4, 4
  %s1934 = smul.addr %s1933, 8
  %s1935 = scalar_lea.vmem [#allocation2], %s1934
  %v1936 = vld [vmem:[%s1935] sm:$0xff]
  %v1937 = vld [vmem:[%s1935 + $0x8] sm:$0xff]
  %v1938 = vld [vmem:[%s1935 + $0x10] sm:$0xff]
  %v1939 = vld [vmem:[%s1935 + $0x18] sm:$0xff]
  %1940 = vmatprep.subr.mxu0 %v1253
  %1941 = vmatpush1.msra.mxu0 %v1252
  %1942 = vmatprep.subr.mxu0 %v1249
  %1943 = vmatpush1.msra.mxu0 %v1248
  %1944 = vmatprep.subr.mxu0 %v1245
  %1945 = vmatpush1.msra.mxu0 %v1244
  %1946 = vmatprep.subr.mxu0 %v1241
  %1947 = vmatpush1.msra.mxu0 %v1240
  %1948 = vmatprep.subr.mxu0 %v1237
  %1949 = vmatpush1.msra.mxu0 %v1236
  %1950 = vmatprep.subr.mxu0 %v1233
  %1951 = vmatpush1.msra.mxu0 %v1232
  %1952 = vmatprep.subr.mxu0 %v1229
  %1953 = vmatpush1.msra.mxu0 %v1228
  %1954 = vmatprep.subr.mxu0 %v1225
  %1955 = vmatpush1.msra.mxu0 %v1224
  %1956 = vmatprep.subr.mxu0 %v1221
  %1957 = vmatpush1.msra.mxu0 %v1220
  %1958 = vmatprep.subr.mxu0 %v1217
  %1959 = vmatpush1.msra.mxu0 %v1216
  %1960 = vmatprep.subr.mxu0 %v1213
  %1961 = vmatpush1.msra.mxu0 %v1212
  %1962 = vmatprep.subr.mxu0 %v1209
  %1963 = vmatpush1.msra.mxu0 %v1208
  %1964 = vmatprep.subr.mxu0 %v1205
  %1965 = vmatpush1.msra.mxu0 %v1204
  %1966 = vmatprep.subr.mxu0 %v1201
  %1967 = vmatpush1.msra.mxu0 %v1200
  %1968 = vmatprep.subr.mxu0 %v1197
  %1969 = vmatpush1.msra.mxu0 %v1196
  %1970 = vmatprep.subr.mxu0 %v1193
  %1971 = vmatpush1.msra.mxu0 %v1192
  %1972 = vmatprep.subr.mxu0 0.0
  %1973 = vmatpush2.msra.mxu0 0.0
  %1974 = vmatprep.subr.mxu0 0.0
  %1975 = vmatpush2.msra.mxu0 0.0
  %1976 = vmatprep.subr.mxu0 0.0
  %1977 = vmatpush2.msra.mxu0 0.0
  %1978 = vmatprep.subr.mxu0 0.0
  %1979 = vmatpush2.msra.mxu0 0.0
  %1980 = vmatprep.subr.mxu0 0.0
  %1981 = vmatpush2.msra.mxu0 0.0
  %1982 = vmatprep.subr.mxu0 0.0
  %1983 = vmatpush2.msra.mxu0 0.0
  %1984 = vmatprep.subr.mxu0 0.0
  %1985 = vmatpush2.msra.mxu0 0.0
  %1986 = vmatprep.subr.mxu0 0.0
  %1987 = vmatpush2.msra.mxu0 0.0
  %1988 = vmatprep.subr.mxu0 0.0
  %1989 = vmatpush2.msra.mxu0 0.0
  %1990 = vmatprep.subr.mxu0 0.0
  %1991 = vmatpush2.msra.mxu0 0.0
  %1992 = vmatprep.subr.mxu0 0.0
  %1993 = vmatpush2.msra.mxu0 0.0
  %1994 = vmatprep.subr.mxu0 0.0
  %1995 = vmatpush2.msra.mxu0 0.0
  %1996 = vmatprep.subr.mxu0 0.0
  %1997 = vmatpush2.msra.mxu0 0.0
  %1998 = vmatprep.subr.mxu0 0.0
  %1999 = vmatpush2.msra.mxu0 0.0
  %2000 = vmatprep.subr.mxu0 0.0
  %2001 = vmatpush2.msra.mxu0 0.0
  %2002 = vmatprep.subr.mxu0 0.0
  %2003 = vmatpush2.msra.mxu0 0.0
  %2004 = vmatprep.mubr.f32.mxu0 0.0
  %2005 = vmatmul.mubr.f32.gmra.mxu0 %v1932
  %v2006 = vpop.f32.mrf.mxu0
  %v2007 = vadd.f32 0.0, %v2006
  %v2008 = vpop.f32.mrf.mxu0
  %v2009 = vadd.f32 0.0, %v2008
  %2010 = vdwg.mxu0
  %2011 = vmatprep.subr.mxu0 %v1255
  %2012 = vmatpush1.msra.mxu0 %v1254
  %2013 = vmatprep.subr.mxu0 %v1251
  %2014 = vmatpush1.msra.mxu0 %v1250
  %2015 = vmatprep.subr.mxu0 %v1247
  %2016 = vmatpush1.msra.mxu0 %v1246
  %2017 = vmatprep.subr.mxu0 %v1243
  %2018 = vmatpush1.msra.mxu0 %v1242
  %2019 = vmatprep.subr.mxu0 %v1239
  %2020 = vmatpush1.msra.mxu0 %v1238
  %2021 = vmatprep.subr.mxu0 %v1235
  %2022 = vmatpush1.msra.mxu0 %v1234
  %2023 = vmatprep.subr.mxu0 %v1231
  %2024 = vmatpush1.msra.mxu0 %v1230
  %2025 = vmatprep.subr.mxu0 %v1227
  %2026 = vmatpush1.msra.mxu0 %v1226
  %2027 = vmatprep.subr.mxu0 %v1223
  %2028 = vmatpush1.msra.mxu0 %v1222
  %2029 = vmatprep.subr.mxu0 %v1219
  %2030 = vmatpush1.msra.mxu0 %v1218
  %2031 = vmatprep.subr.mxu0 %v1215
  %2032 = vmatpush1.msra.mxu0 %v1214
  %2033 = vmatprep.subr.mxu0 %v1211
  %2034 = vmatpush1.msra.mxu0 %v1210
  %2035 = vmatprep.subr.mxu0 %v1207
  %2036 = vmatpush1.msra.mxu0 %v1206
  %2037 = vmatprep.subr.mxu0 %v1203
  %2038 = vmatpush1.msra.mxu0 %v1202
  %2039 = vmatprep.subr.mxu0 %v1199
  %2040 = vmatpush1.msra.mxu0 %v1198
  %2041 = vmatprep.subr.mxu0 %v1195
  %2042 = vmatpush1.msra.mxu0 %v1194
  %2043 = vmatprep.subr.mxu0 0.0
  %2044 = vmatpush2.msra.mxu0 0.0
  %2045 = vmatprep.subr.mxu0 0.0
  %2046 = vmatpush2.msra.mxu0 0.0
  %2047 = vmatprep.subr.mxu0 0.0
  %2048 = vmatpush2.msra.mxu0 0.0
  %2049 = vmatprep.subr.mxu0 0.0
  %2050 = vmatpush2.msra.mxu0 0.0
  %2051 = vmatprep.subr.mxu0 0.0
  %2052 = vmatpush2.msra.mxu0 0.0
  %2053 = vmatprep.subr.mxu0 0.0
  %2054 = vmatpush2.msra.mxu0 0.0
  %2055 = vmatprep.subr.mxu0 0.0
  %2056 = vmatpush2.msra.mxu0 0.0
  %2057 = vmatprep.subr.mxu0 0.0
  %2058 = vmatpush2.msra.mxu0 0.0
  %2059 = vmatprep.subr.mxu0 0.0
  %2060 = vmatpush2.msra.mxu0 0.0
  %2061 = vmatprep.subr.mxu0 0.0
  %2062 = vmatpush2.msra.mxu0 0.0
  %2063 = vmatprep.subr.mxu0 0.0
  %2064 = vmatpush2.msra.mxu0 0.0
  %2065 = vmatprep.subr.mxu0 0.0
  %2066 = vmatpush2.msra.mxu0 0.0
  %2067 = vmatprep.subr.mxu0 0.0
  %2068 = vmatpush2.msra.mxu0 0.0
  %2069 = vmatprep.subr.mxu0 0.0
  %2070 = vmatpush2.msra.mxu0 0.0
  %2071 = vmatprep.subr.mxu0 0.0
  %2072 = vmatpush2.msra.mxu0 0.0
  %2073 = vmatprep.subr.mxu0 0.0
  %2074 = vmatpush2.msra.mxu0 0.0
  %2075 = vmatprep.mubr.f32.mxu0 0.0
  %2076 = vmatmul.mubr.f32.gmra.mxu0 %v1932
  %v2077 = vpop.f32.mrf.mxu0
  %v2078 = vadd.f32 0.0, %v2077
  %v2079 = vpop.f32.mrf.mxu0
  %v2080 = vadd.f32 0.0, %v2079
  %2081 = vdwg.mxu0
  %v2082 = vadd.f32 %v1936, %v2007
  %v2083 = vadd.f32 %v1937, %v2009
  %v2084 = vadd.f32 %v1938, %v2078
  %v2085 = vadd.f32 %v1939, %v2080
  %v2086 = vmul.f32 %v2082, 0.5
  %v2087 = vtanh.pop %v2086
  %v2088 = vmul.f32 %v2087, 0.5
  %v2089 = vadd.f32 %v2088, 0.5
  %v2090 = vmul.f32 %v2083, 0.5
  %v2091 = vtanh.pop %v2090
  %v2092 = vmul.f32 %v2091, 0.5
  %v2093 = vadd.f32 %v2092, 0.5
  %v2094 = vtanh.pop %v2084
  %v2095 = vmul.f32 %v2085, 0.5
  %v2096 = vtanh.pop %v2095
  %v2097 = vmul.f32 %v2096, 0.5
  %v2098 = vadd.f32 %v2097, 0.5
  %v2099 = vmul.f32 %v2093, %v1930
  %v2100 = vmul.f32 %v2089, %v2094
  %v2101 = vadd.f32 %v2099, %v2100
  %v2102 = vtanh.pop %v2101
  %v2103 = vmul.f32 %v2098, %v2102
  %s2104 = smul.u32 5, 4
  %s2105 = smul.addr %s2104, 8
  %s2106 = scalar_lea.vmem [#allocation2], %s2105
  %v2107 = vld [vmem:[%s2106] sm:$0xff]
  %v2108 = vld [vmem:[%s2106 + $0x8] sm:$0xff]
  %v2109 = vld [vmem:[%s2106 + $0x10] sm:$0xff]
  %v2110 = vld [vmem:[%s2106 + $0x18] sm:$0xff]
  %2111 = vmatprep.subr.mxu0 %v1253
  %2112 = vmatpush1.msra.mxu0 %v1252
  %2113 = vmatprep.subr.mxu0 %v1249
  %2114 = vmatpush1.msra.mxu0 %v1248
  %2115 = vmatprep.subr.mxu0 %v1245
  %2116 = vmatpush1.msra.mxu0 %v1244
  %2117 = vmatprep.subr.mxu0 %v1241
  %2118 = vmatpush1.msra.mxu0 %v1240
  %2119 = vmatprep.subr.mxu0 %v1237
  %2120 = vmatpush1.msra.mxu0 %v1236
  %2121 = vmatprep.subr.mxu0 %v1233
  %2122 = vmatpush1.msra.mxu0 %v1232
  %2123 = vmatprep.subr.mxu0 %v1229
  %2124 = vmatpush1.msra.mxu0 %v1228
  %2125 = vmatprep.subr.mxu0 %v1225
  %2126 = vmatpush1.msra.mxu0 %v1224
  %2127 = vmatprep.subr.mxu0 %v1221
  %2128 = vmatpush1.msra.mxu0 %v1220
  %2129 = vmatprep.subr.mxu0 %v1217
  %2130 = vmatpush1.msra.mxu0 %v1216
  %2131 = vmatprep.subr.mxu0 %v1213
  %2132 = vmatpush1.msra.mxu0 %v1212
  %2133 = vmatprep.subr.mxu0 %v1209
  %2134 = vmatpush1.msra.mxu0 %v1208
  %2135 = vmatprep.subr.mxu0 %v1205
  %2136 = vmatpush1.msra.mxu0 %v1204
  %2137 = vmatprep.subr.mxu0 %v1201
  %2138 = vmatpush1.msra.mxu0 %v1200
  %2139 = vmatprep.subr.mxu0 %v1197
  %2140 = vmatpush1.msra.mxu0 %v1196
  %2141 = vmatprep.subr.mxu0 %v1193
  %2142 = vmatpush1.msra.mxu0 %v1192
  %2143 = vmatprep.subr.mxu0 0.0
  %2144 = vmatpush2.msra.mxu0 0.0
  %2145 = vmatprep.subr.mxu0 0.0
  %2146 = vmatpush2.msra.mxu0 0.0
  %2147 = vmatprep.subr.mxu0 0.0
  %2148 = vmatpush2.msra.mxu0 0.0
  %2149 = vmatprep.subr.mxu0 0.0
  %2150 = vmatpush2.msra.mxu0 0.0
  %2151 = vmatprep.subr.mxu0 0.0
  %2152 = vmatpush2.msra.mxu0 0.0
  %2153 = vmatprep.subr.mxu0 0.0
  %2154 = vmatpush2.msra.mxu0 0.0
  %2155 = vmatprep.subr.mxu0 0.0
  %2156 = vmatpush2.msra.mxu0 0.0
  %2157 = vmatprep.subr.mxu0 0.0
  %2158 = vmatpush2.msra.mxu0 0.0
  %2159 = vmatprep.subr.mxu0 0.0
  %2160 = vmatpush2.msra.mxu0 0.0
  %2161 = vmatprep.subr.mxu0 0.0
  %2162 = vmatpush2.msra.mxu0 0.0
  %2163 = vmatprep.subr.mxu0 0.0
  %2164 = vmatpush2.msra.mxu0 0.0
  %2165 = vmatprep.subr.mxu0 0.0
  %2166 = vmatpush2.msra.mxu0 0.0
  %2167 = vmatprep.subr.mxu0 0.0
  %2168 = vmatpush2.msra.mxu0 0.0
  %2169 = vmatprep.subr.mxu0 0.0
  %2170 = vmatpush2.msra.mxu0 0.0
  %2171 = vmatprep.subr.mxu0 0.0
  %2172 = vmatpush2.msra.mxu0 0.0
  %2173 = vmatprep.subr.mxu0 0.0
  %2174 = vmatpush2.msra.mxu0 0.0
  %2175 = vmatprep.mubr.f32.mxu0 0.0
  %2176 = vmatmul.mubr.f32.gmra.mxu0 %v2103
  %v2177 = vpop.f32.mrf.mxu0
  %v2178 = vadd.f32 0.0, %v2177
  %v2179 = vpop.f32.mrf.mxu0
  %v2180 = vadd.f32 0.0, %v2179
  %2181 = vdwg.mxu0
  %2182 = vmatprep.subr.mxu0 %v1255
  %2183 = vmatpush1.msra.mxu0 %v1254
  %2184 = vmatprep.subr.mxu0 %v1251
  %2185 = vmatpush1.msra.mxu0 %v1250
  %2186 = vmatprep.subr.mxu0 %v1247
  %2187 = vmatpush1.msra.mxu0 %v1246
  %2188 = vmatprep.subr.mxu0 %v1243
  %2189 = vmatpush1.msra.mxu0 %v1242
  %2190 = vmatprep.subr.mxu0 %v1239
  %2191 = vmatpush1.msra.mxu0 %v1238
  %2192 = vmatprep.subr.mxu0 %v1235
  %2193 = vmatpush1.msra.mxu0 %v1234
  %2194 = vmatprep.subr.mxu0 %v1231
  %2195 = vmatpush1.msra.mxu0 %v1230
  %2196 = vmatprep.subr.mxu0 %v1227
  %2197 = vmatpush1.msra.mxu0 %v1226
  %2198 = vmatprep.subr.mxu0 %v1223
  %2199 = vmatpush1.msra.mxu0 %v1222
  %2200 = vmatprep.subr.mxu0 %v1219
  %2201 = vmatpush1.msra.mxu0 %v1218
  %2202 = vmatprep.subr.mxu0 %v1215
  %2203 = vmatpush1.msra.mxu0 %v1214
  %2204 = vmatprep.subr.mxu0 %v1211
  %2205 = vmatpush1.msra.mxu0 %v1210
  %2206 = vmatprep.subr.mxu0 %v1207
  %2207 = vmatpush1.msra.mxu0 %v1206
  %2208 = vmatprep.subr.mxu0 %v1203
  %2209 = vmatpush1.msra.mxu0 %v1202
  %2210 = vmatprep.subr.mxu0 %v1199
  %2211 = vmatpush1.msra.mxu0 %v1198
  %2212 = vmatprep.subr.mxu0 %v1195
  %2213 = vmatpush1.msra.mxu0 %v1194
  %2214 = vmatprep.subr.mxu0 0.0
  %2215 = vmatpush2.msra.mxu0 0.0
  %2216 = vmatprep.subr.mxu0 0.0
  %2217 = vmatpush2.msra.mxu0 0.0
  %2218 = vmatprep.subr.mxu0 0.0
  %2219 = vmatpush2.msra.mxu0 0.0
  %2220 = vmatprep.subr.mxu0 0.0
  %2221 = vmatpush2.msra.mxu0 0.0
  %2222 = vmatprep.subr.mxu0 0.0
  %2223 = vmatpush2.msra.mxu0 0.0
  %2224 = vmatprep.subr.mxu0 0.0
  %2225 = vmatpush2.msra.mxu0 0.0
  %2226 = vmatprep.subr.mxu0 0.0
  %2227 = vmatpush2.msra.mxu0 0.0
  %2228 = vmatprep.subr.mxu0 0.0
  %2229 = vmatpush2.msra.mxu0 0.0
  %2230 = vmatprep.subr.mxu0 0.0
  %2231 = vmatpush2.msra.mxu0 0.0
  %2232 = vmatprep.subr.mxu0 0.0
  %2233 = vmatpush2.msra.mxu0 0.0
  %2234 = vmatprep.subr.mxu0 0.0
  %2235 = vmatpush2.msra.mxu0 0.0
  %2236 = vmatprep.subr.mxu0 0.0
  %2237 = vmatpush2.msra.mxu0 0.0
  %2238 = vmatprep.subr.mxu0 0.0
  %2239 = vmatpush2.msra.mxu0 0.0
  %2240 = vmatprep.subr.mxu0 0.0
  %2241 = vmatpush2.msra.mxu0 0.0
  %2242 = vmatprep.subr.mxu0 0.0
  %2243 = vmatpush2.msra.mxu0 0.0
  %2244 = vmatprep.subr.mxu0 0.0
  %2245 = vmatpush2.msra.mxu0 0.0
  %2246 = vmatprep.mubr.f32.mxu0 0.0
  %2247 = vmatmul.mubr.f32.gmra.mxu0 %v2103
  %v2248 = vpop.f32.mrf.mxu0
  %v2249 = vadd.f32 0.0, %v2248
  %v2250 = vpop.f32.mrf.mxu0
  %v2251 = vadd.f32 0.0, %v2250
  %2252 = vdwg.mxu0
  %v2253 = vadd.f32 %v2107, %v2178
  %v2254 = vadd.f32 %v2108, %v2180
  %v2255 = vadd.f32 %v2109, %v2249
  %v2256 = vadd.f32 %v2110, %v2251
  %v2257 = vmul.f32 %v2253, 0.5
  %v2258 = vtanh.pop %v2257
  %v2259 = vmul.f32 %v2258, 0.5
  %v2260 = vadd.f32 %v2259, 0.5
  %v2261 = vmul.f32 %v2254, 0.5
  %v2262 = vtanh.pop %v2261
  %v2263 = vmul.f32 %v2262, 0.5
  %v2264 = vadd.f32 %v2263, 0.5
  %v2265 = vtanh.pop %v2255
  %v2266 = vmul.f32 %v2256, 0.5
  %v2267 = vtanh.pop %v2266
  %v2268 = vmul.f32 %v2267, 0.5
  %v2269 = vadd.f32 %v2268, 0.5
  %v2270 = vmul.f32 %v2264, %v2101
  %v2271 = vmul.f32 %v2260, %v2265
  %v2272 = vadd.f32 %v2270, %v2271
  %v2273 = vtanh.pop %v2272
  %v2274 = vmul.f32 %v2269, %v2273
  %s2275 = smul.u32 6, 4
  %s2276 = smul.addr %s2275, 8
  %s2277 = scalar_lea.vmem [#allocation2], %s2276
  %v2278 = vld [vmem:[%s2277] sm:$0xff]
  %v2279 = vld [vmem:[%s2277 + $0x8] sm:$0xff]
  %v2280 = vld [vmem:[%s2277 + $0x10] sm:$0xff]
  %v2281 = vld [vmem:[%s2277 + $0x18] sm:$0xff]
  %2282 = vmatprep.subr.mxu0 %v1253
  %2283 = vmatpush1.msra.mxu0 %v1252
  %2284 = vmatprep.subr.mxu0 %v1249
  %2285 = vmatpush1.msra.mxu0 %v1248
  %2286 = vmatprep.subr.mxu0 %v1245
  %2287 = vmatpush1.msra.mxu0 %v1244
  %2288 = vmatprep.subr.mxu0 %v1241
  %2289 = vmatpush1.msra.mxu0 %v1240
  %2290 = vmatprep.subr.mxu0 %v1237
  %2291 = vmatpush1.msra.mxu0 %v1236
  %2292 = vmatprep.subr.mxu0 %v1233
  %2293 = vmatpush1.msra.mxu0 %v1232
  %2294 = vmatprep.subr.mxu0 %v1229
  %2295 = vmatpush1.msra.mxu0 %v1228
  %2296 = vmatprep.subr.mxu0 %v1225
  %2297 = vmatpush1.msra.mxu0 %v1224
  %2298 = vmatprep.subr.mxu0 %v1221
  %2299 = vmatpush1.msra.mxu0 %v1220
  %2300 = vmatprep.subr.mxu0 %v1217
  %2301 = vmatpush1.msra.mxu0 %v1216
  %2302 = vmatprep.subr.mxu0 %v1213
  %2303 = vmatpush1.msra.mxu0 %v1212
  %2304 = vmatprep.subr.mxu0 %v1209
  %2305 = vmatpush1.msra.mxu0 %v1208
  %2306 = vmatprep.subr.mxu0 %v1205
  %2307 = vmatpush1.msra.mxu0 %v1204
  %2308 = vmatprep.subr.mxu0 %v1201
  %2309 = vmatpush1.msra.mxu0 %v1200
  %2310 = vmatprep.subr.mxu0 %v1197
  %2311 = vmatpush1.msra.mxu0 %v1196
  %2312 = vmatprep.subr.mxu0 %v1193
  %2313 = vmatpush1.msra.mxu0 %v1192
  %2314 = vmatprep.subr.mxu0 0.0
  %2315 = vmatpush2.msra.mxu0 0.0
  %2316 = vmatprep.subr.mxu0 0.0
  %2317 = vmatpush2.msra.mxu0 0.0
  %2318 = vmatprep.subr.mxu0 0.0
  %2319 = vmatpush2.msra.mxu0 0.0
  %2320 = vmatprep.subr.mxu0 0.0
  %2321 = vmatpush2.msra.mxu0 0.0
  %2322 = vmatprep.subr.mxu0 0.0
  %2323 = vmatpush2.msra.mxu0 0.0
  %2324 = vmatprep.subr.mxu0 0.0
  %2325 = vmatpush2.msra.mxu0 0.0
  %2326 = vmatprep.subr.mxu0 0.0
  %2327 = vmatpush2.msra.mxu0 0.0
  %2328 = vmatprep.subr.mxu0 0.0
  %2329 = vmatpush2.msra.mxu0 0.0
  %2330 = vmatprep.subr.mxu0 0.0
  %2331 = vmatpush2.msra.mxu0 0.0
  %2332 = vmatprep.subr.mxu0 0.0
  %2333 = vmatpush2.msra.mxu0 0.0
  %2334 = vmatprep.subr.mxu0 0.0
  %2335 = vmatpush2.msra.mxu0 0.0
  %2336 = vmatprep.subr.mxu0 0.0
  %2337 = vmatpush2.msra.mxu0 0.0
  %2338 = vmatprep.subr.mxu0 0.0
  %2339 = vmatpush2.msra.mxu0 0.0
  %2340 = vmatprep.subr.mxu0 0.0
  %2341 = vmatpush2.msra.mxu0 0.0
  %2342 = vmatprep.subr.mxu0 0.0
  %2343 = vmatpush2.msra.mxu0 0.0
  %2344 = vmatprep.subr.mxu0 0.0
  %2345 = vmatpush2.msra.mxu0 0.0
  %2346 = vmatprep.mubr.f32.mxu0 0.0
  %2347 = vmatmul.mubr.f32.gmra.mxu0 %v2274
  %v2348 = vpop.f32.mrf.mxu0
  %v2349 = vadd.f32 0.0, %v2348
  %v2350 = vpop.f32.mrf.mxu0
  %v2351 = vadd.f32 0.0, %v2350
  %2352 = vdwg.mxu0
  %2353 = vmatprep.subr.mxu0 %v1255
  %2354 = vmatpush1.msra.mxu0 %v1254
  %2355 = vmatprep.subr.mxu0 %v1251
  %2356 = vmatpush1.msra.mxu0 %v1250
  %2357 = vmatprep.subr.mxu0 %v1247
  %2358 = vmatpush1.msra.mxu0 %v1246
  %2359 = vmatprep.subr.mxu0 %v1243
  %2360 = vmatpush1.msra.mxu0 %v1242
  %2361 = vmatprep.subr.mxu0 %v1239
  %2362 = vmatpush1.msra.mxu0 %v1238
  %2363 = vmatprep.subr.mxu0 %v1235
  %2364 = vmatpush1.msra.mxu0 %v1234
  %2365 = vmatprep.subr.mxu0 %v1231
  %2366 = vmatpush1.msra.mxu0 %v1230
  %2367 = vmatprep.subr.mxu0 %v1227
  %2368 = vmatpush1.msra.mxu0 %v1226
  %2369 = vmatprep.subr.mxu0 %v1223
  %2370 = vmatpush1.msra.mxu0 %v1222
  %2371 = vmatprep.subr.mxu0 %v1219
  %2372 = vmatpush1.msra.mxu0 %v1218
  %2373 = vmatprep.subr.mxu0 %v1215
  %2374 = vmatpush1.msra.mxu0 %v1214
  %2375 = vmatprep.subr.mxu0 %v1211
  %2376 = vmatpush1.msra.mxu0 %v1210
  %2377 = vmatprep.subr.mxu0 %v1207
  %2378 = vmatpush1.msra.mxu0 %v1206
  %2379 = vmatprep.subr.mxu0 %v1203
  %2380 = vmatpush1.msra.mxu0 %v1202
  %2381 = vmatprep.subr.mxu0 %v1199
  %2382 = vmatpush1.msra.mxu0 %v1198
  %2383 = vmatprep.subr.mxu0 %v1195
  %2384 = vmatpush1.msra.mxu0 %v1194
  %2385 = vmatprep.subr.mxu0 0.0
  %2386 = vmatpush2.msra.mxu0 0.0
  %2387 = vmatprep.subr.mxu0 0.0
  %2388 = vmatpush2.msra.mxu0 0.0
  %2389 = vmatprep.subr.mxu0 0.0
  %2390 = vmatpush2.msra.mxu0 0.0
  %2391 = vmatprep.subr.mxu0 0.0
  %2392 = vmatpush2.msra.mxu0 0.0
  %2393 = vmatprep.subr.mxu0 0.0
  %2394 = vmatpush2.msra.mxu0 0.0
  %2395 = vmatprep.subr.mxu0 0.0
  %2396 = vmatpush2.msra.mxu0 0.0
  %2397 = vmatprep.subr.mxu0 0.0
  %2398 = vmatpush2.msra.mxu0 0.0
  %2399 = vmatprep.subr.mxu0 0.0
  %2400 = vmatpush2.msra.mxu0 0.0
  %2401 = vmatprep.subr.mxu0 0.0
  %2402 = vmatpush2.msra.mxu0 0.0
  %2403 = vmatprep.subr.mxu0 0.0
  %2404 = vmatpush2.msra.mxu0 0.0
  %2405 = vmatprep.subr.mxu0 0.0
  %2406 = vmatpush2.msra.mxu0 0.0
  %2407 = vmatprep.subr.mxu0 0.0
  %2408 = vmatpush2.msra.mxu0 0.0
  %2409 = vmatprep.subr.mxu0 0.0
  %2410 = vmatpush2.msra.mxu0 0.0
  %2411 = vmatprep.subr.mxu0 0.0
  %2412 = vmatpush2.msra.mxu0 0.0
  %2413 = vmatprep.subr.mxu0 0.0
  %2414 = vmatpush2.msra.mxu0 0.0
  %2415 = vmatprep.subr.mxu0 0.0
  %2416 = vmatpush2.msra.mxu0 0.0
  %2417 = vmatprep.mubr.f32.mxu0 0.0
  %2418 = vmatmul.mubr.f32.gmra.mxu0 %v2274
  %v2419 = vpop.f32.mrf.mxu0
  %v2420 = vadd.f32 0.0, %v2419
  %v2421 = vpop.f32.mrf.mxu0
  %v2422 = vadd.f32 0.0, %v2421
  %2423 = vdwg.mxu0
  %v2424 = vadd.f32 %v2278, %v2349
  %v2425 = vadd.f32 %v2279, %v2351
  %v2426 = vadd.f32 %v2280, %v2420
  %v2427 = vadd.f32 %v2281, %v2422
  %v2428 = vmul.f32 %v2424, 0.5
  %v2429 = vtanh.pop %v2428
  %v2430 = vmul.f32 %v2429, 0.5
  %v2431 = vadd.f32 %v2430, 0.5
  %v2432 = vmul.f32 %v2425, 0.5
  %v2433 = vtanh.pop %v2432
  %v2434 = vmul.f32 %v2433, 0.5
  %v2435 = vadd.f32 %v2434, 0.5
  %v2436 = vtanh.pop %v2426
  %v2437 = vmul.f32 %v2427, 0.5
  %v2438 = vtanh.pop %v2437
  %v2439 = vmul.f32 %v2438, 0.5
  %v2440 = vadd.f32 %v2439, 0.5
  %v2441 = vmul.f32 %v2435, %v2272
  %v2442 = vmul.f32 %v2431, %v2436
  %v2443 = vadd.f32 %v2441, %v2442
  %v2444 = vtanh.pop %v2443
  %v2445 = vmul.f32 %v2440, %v2444
  %s2446 = smul.u32 7, 4
  %s2447 = smul.addr %s2446, 8
  %s2448 = scalar_lea.vmem [#allocation2], %s2447
  %v2449 = vld [vmem:[%s2448] sm:$0xff]
  %v2450 = vld [vmem:[%s2448 + $0x8] sm:$0xff]
  %v2451 = vld [vmem:[%s2448 + $0x10] sm:$0xff]
  %v2452 = vld [vmem:[%s2448 + $0x18] sm:$0xff]
  %2453 = vmatprep.subr.mxu0 %v1253
  %2454 = vmatpush1.msra.mxu0 %v1252
  %2455 = vmatprep.subr.mxu0 %v1249
  %2456 = vmatpush1.msra.mxu0 %v1248
  %2457 = vmatprep.subr.mxu0 %v1245
  %2458 = vmatpush1.msra.mxu0 %v1244
  %2459 = vmatprep.subr.mxu0 %v1241
  %2460 = vmatpush1.msra.mxu0 %v1240
  %2461 = vmatprep.subr.mxu0 %v1237
  %2462 = vmatpush1.msra.mxu0 %v1236
  %2463 = vmatprep.subr.mxu0 %v1233
  %2464 = vmatpush1.msra.mxu0 %v1232
  %2465 = vmatprep.subr.mxu0 %v1229
  %2466 = vmatpush1.msra.mxu0 %v1228
  %2467 = vmatprep.subr.mxu0 %v1225
  %2468 = vmatpush1.msra.mxu0 %v1224
  %2469 = vmatprep.subr.mxu0 %v1221
  %2470 = vmatpush1.msra.mxu0 %v1220
  %2471 = vmatprep.subr.mxu0 %v1217
  %2472 = vmatpush1.msra.mxu0 %v1216
  %2473 = vmatprep.subr.mxu0 %v1213
  %2474 = vmatpush1.msra.mxu0 %v1212
  %2475 = vmatprep.subr.mxu0 %v1209
  %2476 = vmatpush1.msra.mxu0 %v1208
  %2477 = vmatprep.subr.mxu0 %v1205
  %2478 = vmatpush1.msra.mxu0 %v1204
  %2479 = vmatprep.subr.mxu0 %v1201
  %2480 = vmatpush1.msra.mxu0 %v1200
  %2481 = vmatprep.subr.mxu0 %v1197
  %2482 = vmatpush1.msra.mxu0 %v1196
  %2483 = vmatprep.subr.mxu0 %v1193
  %2484 = vmatpush1.msra.mxu0 %v1192
  %2485 = vmatprep.subr.mxu0 0.0
  %2486 = vmatpush2.msra.mxu0 0.0
  %2487 = vmatprep.subr.mxu0 0.0
  %2488 = vmatpush2.msra.mxu0 0.0
  %2489 = vmatprep.subr.mxu0 0.0
  %2490 = vmatpush2.msra.mxu0 0.0
  %2491 = vmatprep.subr.mxu0 0.0
  %2492 = vmatpush2.msra.mxu0 0.0
  %2493 = vmatprep.subr.mxu0 0.0
  %2494 = vmatpush2.msra.mxu0 0.0
  %2495 = vmatprep.subr.mxu0 0.0
  %2496 = vmatpush2.msra.mxu0 0.0
  %2497 = vmatprep.subr.mxu0 0.0
  %2498 = vmatpush2.msra.mxu0 0.0
  %2499 = vmatprep.subr.mxu0 0.0
  %2500 = vmatpush2.msra.mxu0 0.0
  %2501 = vmatprep.subr.mxu0 0.0
  %2502 = vmatpush2.msra.mxu0 0.0
  %2503 = vmatprep.subr.mxu0 0.0
  %2504 = vmatpush2.msra.mxu0 0.0
  %2505 = vmatprep.subr.mxu0 0.0
  %2506 = vmatpush2.msra.mxu0 0.0
  %2507 = vmatprep.subr.mxu0 0.0
  %2508 = vmatpush2.msra.mxu0 0.0
  %2509 = vmatprep.subr.mxu0 0.0
  %2510 = vmatpush2.msra.mxu0 0.0
  %2511 = vmatprep.subr.mxu0 0.0
  %2512 = vmatpush2.msra.mxu0 0.0
  %2513 = vmatprep.subr.mxu0 0.0
  %2514 = vmatpush2.msra.mxu0 0.0
  %2515 = vmatprep.subr.mxu0 0.0
  %2516 = vmatpush2.msra.mxu0 0.0
  %2517 = vmatprep.mubr.f32.mxu0 0.0
  %2518 = vmatmul.mubr.f32.gmra.mxu0 %v2445
  %v2519 = vpop.f32.mrf.mxu0
  %v2520 = vadd.f32 0.0, %v2519
  %v2521 = vpop.f32.mrf.mxu0
  %v2522 = vadd.f32 0.0, %v2521
  %2523 = vdwg.mxu0
  %2524 = vmatprep.subr.mxu0 %v1255
  %2525 = vmatpush1.msra.mxu0 %v1254
  %2526 = vmatprep.subr.mxu0 %v1251
  %2527 = vmatpush1.msra.mxu0 %v1250
  %2528 = vmatprep.subr.mxu0 %v1247
  %2529 = vmatpush1.msra.mxu0 %v1246
  %2530 = vmatprep.subr.mxu0 %v1243
  %2531 = vmatpush1.msra.mxu0 %v1242
  %2532 = vmatprep.subr.mxu0 %v1239
  %2533 = vmatpush1.msra.mxu0 %v1238
  %2534 = vmatprep.subr.mxu0 %v1235
  %2535 = vmatpush1.msra.mxu0 %v1234
  %2536 = vmatprep.subr.mxu0 %v1231
  %2537 = vmatpush1.msra.mxu0 %v1230
  %2538 = vmatprep.subr.mxu0 %v1227
  %2539 = vmatpush1.msra.mxu0 %v1226
  %2540 = vmatprep.subr.mxu0 %v1223
  %2541 = vmatpush1.msra.mxu0 %v1222
  %2542 = vmatprep.subr.mxu0 %v1219
  %2543 = vmatpush1.msra.mxu0 %v1218
  %2544 = vmatprep.subr.mxu0 %v1215
  %2545 = vmatpush1.msra.mxu0 %v1214
  %2546 = vmatprep.subr.mxu0 %v1211
  %2547 = vmatpush1.msra.mxu0 %v1210
  %2548 = vmatprep.subr.mxu0 %v1207
  %2549 = vmatpush1.msra.mxu0 %v1206
  %2550 = vmatprep.subr.mxu0 %v1203
  %2551 = vmatpush1.msra.mxu0 %v1202
  %2552 = vmatprep.subr.mxu0 %v1199
  %2553 = vmatpush1.msra.mxu0 %v1198
  %2554 = vmatprep.subr.mxu0 %v1195
  %2555 = vmatpush1.msra.mxu0 %v1194
  %2556 = vmatprep.subr.mxu0 0.0
  %2557 = vmatpush2.msra.mxu0 0.0
  %2558 = vmatprep.subr.mxu0 0.0
  %2559 = vmatpush2.msra.mxu0 0.0
  %2560 = vmatprep.subr.mxu0 0.0
  %2561 = vmatpush2.msra.mxu0 0.0
  %2562 = vmatprep.subr.mxu0 0.0
  %2563 = vmatpush2.msra.mxu0 0.0
  %2564 = vmatprep.subr.mxu0 0.0
  %2565 = vmatpush2.msra.mxu0 0.0
  %2566 = vmatprep.subr.mxu0 0.0
  %2567 = vmatpush2.msra.mxu0 0.0
  %2568 = vmatprep.subr.mxu0 0.0
  %2569 = vmatpush2.msra.mxu0 0.0
  %2570 = vmatprep.subr.mxu0 0.0
  %2571 = vmatpush2.msra.mxu0 0.0
  %2572 = vmatprep.subr.mxu0 0.0
  %2573 = vmatpush2.msra.mxu0 0.0
  %2574 = vmatprep.subr.mxu0 0.0
  %2575 = vmatpush2.msra.mxu0 0.0
  %2576 = vmatprep.subr.mxu0 0.0
  %2577 = vmatpush2.msra.mxu0 0.0
  %2578 = vmatprep.subr.mxu0 0.0
  %2579 = vmatpush2.msra.mxu0 0.0
  %2580 = vmatprep.subr.mxu0 0.0
  %2581 = vmatpush2.msra.mxu0 0.0
  %2582 = vmatprep.subr.mxu0 0.0
  %2583 = vmatpush2.msra.mxu0 0.0
  %2584 = vmatprep.subr.mxu0 0.0
  %2585 = vmatpush2.msra.mxu0 0.0
  %2586 = vmatprep.subr.mxu0 0.0
  %2587 = vmatpush2.msra.mxu0 0.0
  %2588 = vmatprep.mubr.f32.mxu0 0.0
  %2589 = vmatmul.mubr.f32.gmra.mxu0 %v2445
  %v2590 = vpop.f32.mrf.mxu0
  %v2591 = vadd.f32 0.0, %v2590
  %v2592 = vpop.f32.mrf.mxu0
  %v2593 = vadd.f32 0.0, %v2592
  %2594 = vdwg.mxu0
  %v2595 = vadd.f32 %v2449, %v2520
  %v2596 = vadd.f32 %v2450, %v2522
  %v2597 = vadd.f32 %v2451, %v2591
  %v2598 = vadd.f32 %v2452, %v2593
  %v2599 = vmul.f32 %v2595, 0.5
  %v2600 = vtanh.pop %v2599
  %v2601 = vmul.f32 %v2600, 0.5
  %v2602 = vadd.f32 %v2601, 0.5
  %v2603 = vmul.f32 %v2596, 0.5
  %v2604 = vtanh.pop %v2603
  %v2605 = vmul.f32 %v2604, 0.5
  %v2606 = vadd.f32 %v2605, 0.5
  %v2607 = vtanh.pop %v2597
  %v2608 = vmul.f32 %v2598, 0.5
  %v2609 = vtanh.pop %v2608
  %v2610 = vmul.f32 %v2609, 0.5
  %v2611 = vadd.f32 %v2610, 0.5
  %v2612 = vmul.f32 %v2606, %v2443
  %v2613 = vmul.f32 %v2602, %v2607
  %v2614 = vadd.f32 %v2612, %v2613
  %v2615 = vtanh.pop %v2614
  %v2616 = vmul.f32 %v2611, %v2615
  %v2617 = vld [vmem:[%s0 + $0x40] sm:$0xff]
  %v2618 = vld [vmem:[%s3] sm:$0xff]
  %v2619 = vld [vmem:[%s3 + $0x8] sm:$0xff]
  %v2620 = vld [vmem:[%s3 + $0x10] sm:$0xff]
  %v2621 = vld [vmem:[%s3 + $0x18] sm:$0xff]
  %v2622 = vld [vmem:[%s3 + $0x20] sm:$0xff]
  %v2623 = vld [vmem:[%s3 + $0x28] sm:$0xff]
  %v2624 = vld [vmem:[%s3 + $0x30] sm:$0xff]
  %v2625 = vld [vmem:[%s3 + $0x38] sm:$0xff]
  %v2626 = vld [vmem:[%s3 + $0x40] sm:$0xff]
  %v2627 = vld [vmem:[%s3 + $0x48] sm:$0xff]
  %v2628 = vld [vmem:[%s3 + $0x50] sm:$0xff]
  %v2629 = vld [vmem:[%s3 + $0x58] sm:$0xff]
  %v2630 = vld [vmem:[%s3 + $0x60] sm:$0xff]
  %v2631 = vld [vmem:[%s3 + $0x68] sm:$0xff]
  %v2632 = vld [vmem:[%s3 + $0x70] sm:$0xff]
  %v2633 = vld [vmem:[%s3 + $0x78] sm:$0xff]
  %v2634 = vld [vmem:[%s3 + $0x80] sm:$0xff]
  %v2635 = vld [vmem:[%s3 + $0x88] sm:$0xff]
  %v2637 = vsel %vm42, %v2617, 0
  %2639 = vmatprep.subr.mxu0 0.0
  %2640 = vmatpush1.msra.mxu0 0.0
  %2641 = vmatprep.subr.mxu0 0.0
  %2642 = vmatpush1.msra.mxu0 0.0
  %2643 = vmatprep.subr.mxu0 0.0
  %2644 = vmatpush1.msra.mxu0 0.0
  %2645 = vmatprep.subr.mxu0 0.0
  %2646 = vmatpush1.msra.mxu0 0.0
  %2647 = vmatprep.subr.mxu0 0.0
  %2648 = vmatpush1.msra.mxu0 0.0
  %2649 = vmatprep.subr.mxu0 0.0
  %2650 = vmatpush1.msra.mxu0 0.0
  %2651 = vmatprep.subr.mxu0 0.0
  %2652 = vmatpush1.msra.mxu0 0.0
  %2653 = vmatprep.subr.mxu0 0.0
  %2654 = vmatpush1.msra.mxu0 0.0
  %2655 = vmatprep.subr.mxu0 0.0
  %2656 = vmatpush1.msra.mxu0 0.0
  %2657 = vmatprep.subr.mxu0 0.0
  %2658 = vmatpush1.msra.mxu0 0.0
  %2659 = vmatprep.subr.mxu0 0.0
  %2660 = vmatpush1.msra.mxu0 0.0
  %2661 = vmatprep.subr.mxu0 0.0
  %2662 = vmatpush1.msra.mxu0 0.0
  %2663 = vmatprep.subr.mxu0 0.0
  %2664 = vmatpush1.msra.mxu0 0.0
  %2665 = vmatprep.subr.mxu0 0.0
  %2666 = vmatpush1.msra.mxu0 0.0
  %2667 = vmatprep.subr.mxu0 0.0
  %2668 = vmatpush1.msra.mxu0 %v2635
  %2669 = vmatprep.subr.mxu0 0.0
  %2670 = vmatpush1.msra.mxu0 %v2634
  %2671 = vmatprep.subr.mxu0 0.0
  %2672 = vmatpush2.msra.mxu0 0.0
  %2673 = vmatprep.subr.mxu0 0.0
  %2674 = vmatpush2.msra.mxu0 0.0
  %2675 = vmatprep.subr.mxu0 0.0
  %2676 = vmatpush2.msra.mxu0 0.0
  %2677 = vmatprep.subr.mxu0 0.0
  %2678 = vmatpush2.msra.mxu0 0.0
  %2679 = vmatprep.subr.mxu0 0.0
  %2680 = vmatpush2.msra.mxu0 0.0
  %2681 = vmatprep.subr.mxu0 0.0
  %2682 = vmatpush2.msra.mxu0 0.0
  %2683 = vmatprep.subr.mxu0 0.0
  %2684 = vmatpush2.msra.mxu0 0.0
  %2685 = vmatprep.subr.mxu0 0.0
  %2686 = vmatpush2.msra.mxu0 0.0
  %2687 = vmatprep.subr.mxu0 0.0
  %2688 = vmatpush2.msra.mxu0 0.0
  %2689 = vmatprep.subr.mxu0 0.0
  %2690 = vmatpush2.msra.mxu0 0.0
  %2691 = vmatprep.subr.mxu0 0.0
  %2692 = vmatpush2.msra.mxu0 0.0
  %2693 = vmatprep.subr.mxu0 0.0
  %2694 = vmatpush2.msra.mxu0 0.0
  %2695 = vmatprep.subr.mxu0 0.0
  %2696 = vmatpush2.msra.mxu0 0.0
  %2697 = vmatprep.subr.mxu0 0.0
  %2698 = vmatpush2.msra.mxu0 0.0
  %2699 = vmatprep.subr.mxu0 0.0
  %2700 = vmatpush2.msra.mxu0 0.0
  %2701 = vmatprep.subr.mxu0 0.0
  %2702 = vmatpush2.msra.mxu0 0.0
  %2703 = vmatprep.mubr.f32.mxu0 0.0
  %2704 = vmatmul.mubr.f32.gmra.mxu0 %v2637
  %v2705 = vpop.f32.mrf.mxu0
  %v2706 = vadd.f32 0.0, %v2705
  %v2707 = vpop.f32.mrf.mxu0
  %2708 = vdwg.mxu0
  %2709 = vmatprep.subr.mxu0 0.0
  %2710 = vmatpush1.msra.mxu0 %v2633
  %2711 = vmatprep.subr.mxu0 0.0
  %2712 = vmatpush1.msra.mxu0 %v2632
  %2713 = vmatprep.subr.mxu0 0.0
  %2714 = vmatpush1.msra.mxu0 %v2631
  %2715 = vmatprep.subr.mxu0 0.0
  %2716 = vmatpush1.msra.mxu0 %v2630
  %2717 = vmatprep.subr.mxu0 0.0
  %2718 = vmatpush1.msra.mxu0 %v2629
  %2719 = vmatprep.subr.mxu0 0.0
  %2720 = vmatpush1.msra.mxu0 %v2628
  %2721 = vmatprep.subr.mxu0 0.0
  %2722 = vmatpush1.msra.mxu0 %v2627
  %2723 = vmatprep.subr.mxu0 0.0
  %2724 = vmatpush1.msra.mxu0 %v2626
  %2725 = vmatprep.subr.mxu0 0.0
  %2726 = vmatpush1.msra.mxu0 %v2625
  %2727 = vmatprep.subr.mxu0 0.0
  %2728 = vmatpush1.msra.mxu0 %v2624
  %2729 = vmatprep.subr.mxu0 0.0
  %2730 = vmatpush1.msra.mxu0 %v2623
  %2731 = vmatprep.subr.mxu0 0.0
  %2732 = vmatpush1.msra.mxu0 %v2622
  %2733 = vmatprep.subr.mxu0 0.0
  %2734 = vmatpush1.msra.mxu0 %v2621
  %2735 = vmatprep.subr.mxu0 0.0
  %2736 = vmatpush1.msra.mxu0 %v2620
  %2737 = vmatprep.subr.mxu0 0.0
  %2738 = vmatpush1.msra.mxu0 %v2619
  %2739 = vmatprep.subr.mxu0 0.0
  %2740 = vmatpush1.msra.mxu0 %v2618
  %2741 = vmatprep.subr.mxu0 0.0
  %2742 = vmatpush2.msra.mxu0 0.0
  %2743 = vmatprep.subr.mxu0 0.0
  %2744 = vmatpush2.msra.mxu0 0.0
  %2745 = vmatprep.subr.mxu0 0.0
  %2746 = vmatpush2.msra.mxu0 0.0
  %2747 = vmatprep.subr.mxu0 0.0
  %2748 = vmatpush2.msra.mxu0 0.0
  %2749 = vmatprep.subr.mxu0 0.0
  %2750 = vmatpush2.msra.mxu0 0.0
  %2751 = vmatprep.subr.mxu0 0.0
  %2752 = vmatpush2.msra.mxu0 0.0
  %2753 = vmatprep.subr.mxu0 0.0
  %2754 = vmatpush2.msra.mxu0 0.0
  %2755 = vmatprep.subr.mxu0 0.0
  %2756 = vmatpush2.msra.mxu0 0.0
  %2757 = vmatprep.subr.mxu0 0.0
  %2758 = vmatpush2.msra.mxu0 0.0
  %2759 = vmatprep.subr.mxu0 0.0
  %2760 = vmatpush2.msra.mxu0 0.0
  %2761 = vmatprep.subr.mxu0 0.0
  %2762 = vmatpush2.msra.mxu0 0.0
  %2763 = vmatprep.subr.mxu0 0.0
  %2764 = vmatpush2.msra.mxu0 0.0
  %2765 = vmatprep.subr.mxu0 0.0
  %2766 = vmatpush2.msra.mxu0 0.0
  %2767 = vmatprep.subr.mxu0 0.0
  %2768 = vmatpush2.msra.mxu0 0.0
  %2769 = vmatprep.subr.mxu0 0.0
  %2770 = vmatpush2.msra.mxu0 0.0
  %2771 = vmatprep.subr.mxu0 0.0
  %2772 = vmatpush2.msra.mxu0 0.0
  %2773 = vmatprep.mubr.f32.mxu0 0.0
  %2774 = vmatmul.mubr.f32.gmra.mxu0 %v2616
  %v2775 = vpop.f32.mrf.mxu0
  %v2776 = vadd.f32 %v2706, %v2775
  %v2777 = vpop.f32.mrf.mxu0
  %2778 = vdwg.mxu0
  %v2779 = vld [vmem:[%s3 + $0x90] sm:$0x1]
  %v2780 = vlaneseq
  %v2781 = vshrl.u32 %v2780, 7
  %v2782 = vsub.s32 0, %v2781
  %v2783 = vrot.slane %v2779, %v2782
  %v2784 = vadd.f32 %v2776, %v2783
  %v2785 = vmax.f32 %v2784, 0.0
  %v2786 = vld [vmem:[%s3 + $0x98] sm:$0xff]
  %v2787 = vld [vmem:[%s3 + $0xa0] sm:$0xff]
  %v2788 = vld [vmem:[%s3 + $0xa8] sm:$0xff]
  %v2789 = vld [vmem:[%s3 + $0xb0] sm:$0xff]
  %v2790 = vld [vmem:[%s3 + $0xb8] sm:$0xff]
  %v2791 = vld [vmem:[%s3 + $0xc0] sm:$0xff]
  %v2792 = vld [vmem:[%s3 + $0xc8] sm:$0xff]
  %v2793 = vld [vmem:[%s3 + $0xd0] sm:$0xff]
  %v2794 = vld [vmem:[%s3 + $0xd8] sm:$0x1]
  %v2795 = vlaneseq
  %v2796 = vshrl.u32 %v2795, 7
  %v2797 = vsub.s32 0, %v2796
  %v2798 = vrot.slane %v2794, %v2797
  %v2800 = vsel %vm246, %v2785, 0
  %2802 = vmatprep.subr.mxu0 0.0
  %2803 = vmatpush1.msra.mxu0 0.0
  %2804 = vmatprep.subr.mxu0 0.0
  %2805 = vmatpush1.msra.mxu0 0.0
  %2806 = vmatprep.subr.mxu0 0.0
  %2807 = vmatpush1.msra.mxu0 0.0
  %2808 = vmatprep.subr.mxu0 0.0
  %2809 = vmatpush1.msra.mxu0 0.0
  %2810 = vmatprep.subr.mxu0 0.0
  %2811 = vmatpush1.msra.mxu0 0.0
  %2812 = vmatprep.subr.mxu0 0.0
  %2813 = vmatpush1.msra.mxu0 0.0
  %2814 = vmatprep.subr.mxu0 0.0
  %2815 = vmatpush1.msra.mxu0 0.0
  %2816 = vmatprep.subr.mxu0 0.0
  %2817 = vmatpush1.msra.mxu0 0.0
  %2818 = vmatprep.subr.mxu0 0.0
  %2819 = vmatpush1.msra.mxu0 %v2793
  %2820 = vmatprep.subr.mxu0 0.0
  %2821 = vmatpush1.msra.mxu0 %v2792
  %2822 = vmatprep.subr.mxu0 0.0
  %2823 = vmatpush1.msra.mxu0 %v2791
  %2824 = vmatprep.subr.mxu0 0.0
  %2825 = vmatpush1.msra.mxu0 %v2790
  %2826 = vmatprep.subr.mxu0 0.0
  %2827 = vmatpush1.msra.mxu0 %v2789
  %2828 = vmatprep.subr.mxu0 0.0
  %2829 = vmatpush1.msra.mxu0 %v2788
  %2830 = vmatprep.subr.mxu0 0.0
  %2831 = vmatpush1.msra.mxu0 %v2787
  %2832 = vmatprep.subr.mxu0 0.0
  %2833 = vmatpush1.msra.mxu0 %v2786
  %2834 = vmatprep.subr.mxu0 0.0
  %2835 = vmatpush2.msra.mxu0 0.0
  %2836 = vmatprep.subr.mxu0 0.0
  %2837 = vmatpush2.msra.mxu0 0.0
  %2838 = vmatprep.subr.mxu0 0.0
  %2839 = vmatpush2.msra.mxu0 0.0
  %2840 = vmatprep.subr.mxu0 0.0
  %2841 = vmatpush2.msra.mxu0 0.0
  %2842 = vmatprep.subr.mxu0 0.0
  %2843 = vmatpush2.msra.mxu0 0.0
  %2844 = vmatprep.subr.mxu0 0.0
  %2845 = vmatpush2.msra.mxu0 0.0
  %2846 = vmatprep.subr.mxu0 0.0
  %2847 = vmatpush2.msra.mxu0 0.0
  %2848 = vmatprep.subr.mxu0 0.0
  %2849 = vmatpush2.msra.mxu0 0.0
  %2850 = vmatprep.subr.mxu0 0.0
  %2851 = vmatpush2.msra.mxu0 0.0
  %2852 = vmatprep.subr.mxu0 0.0
  %2853 = vmatpush2.msra.mxu0 0.0
  %2854 = vmatprep.subr.mxu0 0.0
  %2855 = vmatpush2.msra.mxu0 0.0
  %2856 = vmatprep.subr.mxu0 0.0
  %2857 = vmatpush2.msra.mxu0 0.0
  %2858 = vmatprep.subr.mxu0 0.0
  %2859 = vmatpush2.msra.mxu0 0.0
  %2860 = vmatprep.subr.mxu0 0.0
  %2861 = vmatpush2.msra.mxu0 0.0
  %2862 = vmatprep.subr.mxu0 0.0
  %2863 = vmatpush2.msra.mxu0 0.0
  %2864 = vmatprep.subr.mxu0 0.0
  %2865 = vmatpush2.msra.mxu0 0.0
  %2866 = vmatprep.mubr.f32.mxu0 0.0
  %2867 = vmatmul.mubr.f32.gmra.mxu0 %v2800
  %v2868 = vpop.f32.mrf.mxu0
  %v2869 = vadd.f32 %v2798, %v2868
  %v2870 = vpop.f32.mrf.mxu0
  %2871 = vdwg.mxu0
  %v2872 = vmax.f32 %v2869, 0.0
  %v2873 = vld [vmem:[%s3 + $0xe0] sm:$0xff]
  %v2874 = vld [vmem:[%s3 + $0xe8] sm:$0xff]
  %v2875 = vld [vmem:[%s3 + $0xf0] sm:$0xff]
  %v2876 = vld [vmem:[%s3 + $0xf8] sm:$0xff]
  %v2877 = vld [vmem:[%s3 + $0x100] sm:$0xff]
  %v2878 = vld [vmem:[%s3 + $0x108] sm:$0xff]
  %v2879 = vld [vmem:[%s3 + $0x110] sm:$0xff]
  %v2880 = vld [vmem:[%s3 + $0x118] sm:$0xff]
  %v2881 = vld [vmem:[%s3 + $0x120] sm:$0x1]
  %v2882 = vlaneseq
  %v2883 = vshrl.u32 %v2882, 7
  %v2884 = vsub.s32 0, %v2883
  %v2885 = vrot.slane %v2881, %v2884
  %v2887 = vsel %vm246, %v2872, 0
  %2889 = vmatprep.subr.mxu0 0.0
  %2890 = vmatpush1.msra.mxu0 0.0
  %2891 = vmatprep.subr.mxu0 0.0
  %2892 = vmatpush1.msra.mxu0 0.0
  %2893 = vmatprep.subr.mxu0 0.0
  %2894 = vmatpush1.msra.mxu0 0.0
  %2895 = vmatprep.subr.mxu0 0.0
  %2896 = vmatpush1.msra.mxu0 0.0
  %2897 = vmatprep.subr.mxu0 0.0
  %2898 = vmatpush1.msra.mxu0 0.0
  %2899 = vmatprep.subr.mxu0 0.0
  %2900 = vmatpush1.msra.mxu0 0.0
  %2901 = vmatprep.subr.mxu0 0.0
  %2902 = vmatpush1.msra.mxu0 0.0
  %2903 = vmatprep.subr.mxu0 0.0
  %2904 = vmatpush1.msra.mxu0 0.0
  %2905 = vmatprep.subr.mxu0 0.0
  %2906 = vmatpush1.msra.mxu0 %v2880
  %2907 = vmatprep.subr.mxu0 0.0
  %2908 = vmatpush1.msra.mxu0 %v2879
  %2909 = vmatprep.subr.mxu0 0.0
  %2910 = vmatpush1.msra.mxu0 %v2878
  %2911 = vmatprep.subr.mxu0 0.0
  %2912 = vmatpush1.msra.mxu0 %v2877
  %2913 = vmatprep.subr.mxu0 0.0
  %2914 = vmatpush1.msra.mxu0 %v2876
  %2915 = vmatprep.subr.mxu0 0.0
  %2916 = vmatpush1.msra.mxu0 %v2875
  %2917 = vmatprep.subr.mxu0 0.0
  %2918 = vmatpush1.msra.mxu0 %v2874
  %2919 = vmatprep.subr.mxu0 0.0
  %2920 = vmatpush1.msra.mxu0 %v2873
  %2921 = vmatprep.subr.mxu0 0.0
  %2922 = vmatpush2.msra.mxu0 0.0
  %2923 = vmatprep.subr.mxu0 0.0
  %2924 = vmatpush2.msra.mxu0 0.0
  %2925 = vmatprep.subr.mxu0 0.0
  %2926 = vmatpush2.msra.mxu0 0.0
  %2927 = vmatprep.subr.mxu0 0.0
  %2928 = vmatpush2.msra.mxu0 0.0
  %2929 = vmatprep.subr.mxu0 0.0
  %2930 = vmatpush2.msra.mxu0 0.0
  %2931 = vmatprep.subr.mxu0 0.0
  %2932 = vmatpush2.msra.mxu0 0.0
  %2933 = vmatprep.subr.mxu0 0.0
  %2934 = vmatpush2.msra.mxu0 0.0
  %2935 = vmatprep.subr.mxu0 0.0
  %2936 = vmatpush2.msra.mxu0 0.0
  %2937 = vmatprep.subr.mxu0 0.0
  %2938 = vmatpush2.msra.mxu0 0.0
  %2939 = vmatprep.subr.mxu0 0.0
  %2940 = vmatpush2.msra.mxu0 0.0
  %2941 = vmatprep.subr.mxu0 0.0
  %2942 = vmatpush2.msra.mxu0 0.0
  %2943 = vmatprep.subr.mxu0 0.0
  %2944 = vmatpush2.msra.mxu0 0.0
  %2945 = vmatprep.subr.mxu0 0.0
  %2946 = vmatpush2.msra.mxu0 0.0
  %2947 = vmatprep.subr.mxu0 0.0
  %2948 = vmatpush2.msra.mxu0 0.0
  %2949 = vmatprep.subr.mxu0 0.0
  %2950 = vmatpush2.msra.mxu0 0.0
  %2951 = vmatprep.subr.mxu0 0.0
  %2952 = vmatpush2.msra.mxu0 0.0
  %2953 = vmatprep.mubr.f32.mxu0 0.0
  %2954 = vmatmul.mubr.f32.gmra.mxu0 %v2887
  %v2955 = vpop.f32.mrf.mxu0
  %v2956 = vadd.f32 %v2885, %v2955
  %v2957 = vpop.f32.mrf.mxu0
  %2958 = vdwg.mxu0
  %2959 = vst.msk [vmem:[%s4] sm:$0xff] %vm246, %v2956
  // Predicated region
  $region18: #{rnn2_forward.1} parent=0 // pred_check
    _
  $region19: #{rnn2_forward.1} parent=0 // pred_check_branch
    %2961 = sbr.rel (0) target = $region21
  $region20: #{rnn2_forward.1} parent=0 // pred_region
    _
  $region21: #{rnn2_forward.1} parent=0 // pred_fallthru
    _
  // Predicated region
  $region22: #{rnn2_forward.1} parent=0 // pred_check
    _
  $region23: #{rnn2_forward.1} parent=0 // pred_check_branch
    %2963 = sbr.rel (0) target = $region25
  $region24: #{rnn2_forward.1} parent=0 // pred_region
    _
  $region25: #{rnn2_forward.1} parent=0 // pred_fallthru
    _

</llo_original>
